<compile_context>
chip_gen: v5e
topology: v5e:2x2
jax: 0.10.0
libtpu: 0.0.40
codegen_flags: <defaults>
</compile_context>

<pallas_src>
import functools

import numpy as np

import jax
import jax.numpy as jnp
from jax.experimental import pallas as pl
from jax.experimental.pallas import tpu as pltpu

BN_EPS = 1e-5
FC_TILE_B = 1024      # cap on batch-rows per grid step for the fused MLP


# ----------------------------- Pallas kernels ------------------------------

def _conv_bn_relu_pool_kernel(x_ref, ge_ref, go_ref, s_ref, t_ref, o_ref,
                              y_ref, *, kh, oh, ph):
    """One image: valid conv (stride 1) + BN affine + ReLU + 2x2 maxpool.

    x_ref : [1, H, W*C]        bf16 image slab (lane-dense)
    ge_ref: [KH, W*C, PW*OC]   bf16 block-Toeplitz weights, even output cols
    go_ref: [KH, W*C, PW*OC]   bf16 block-Toeplitz weights, odd  output cols
    s_ref : [1, PW*OC]         f32 BN scale, tiled over PW
    t_ref : [1, PW*OC]         f32 BN shift (conv bias folded in), tiled
    o_ref : [1, PH, PW*OC]     bf16 pooled output (lane-dense)
    y_ref : [OH, PW*OC]        f32 VMEM scratch (after W-direction pooling)
    """
    cols = o_ref.shape[-1]
    acc_e = jnp.zeros((oh, cols), jnp.float32)
    acc_o = jnp.zeros((oh, cols), jnp.float32)
    for i in range(kh):                              # static unroll, KH = 3/4
        xi = x_ref[0, i:i + oh, :]                   # [OH, W*C]
        acc_e = acc_e + jnp.dot(xi, ge_ref[i], preferred_element_type=jnp.float32)
        acc_o = acc_o + jnp.dot(xi, go_ref[i], preferred_element_type=jnp.float32)
    s = s_ref[...]
    t = t_ref[...]
    # BN affine, then max over the two pooling columns (W direction).
    y_ref[...] = jnp.maximum(acc_e * s + t, acc_o * s + t)
    # Max over the two pooling rows (H direction) + ReLU, stored lane-dense.
    for p in range(ph):                              # static unroll, PH = 15/6
        pair = y_ref[2 * p:2 * p + 2, :]                      # [2, PW*OC]
        row = jnp.max(pair, axis=0, keepdims=True)            # [1, PW*OC]
        o_ref[0, p:p + 1, :] = jnp.maximum(row, 0.0).astype(o_ref.dtype)


def _fused_mlp_kernel(x_ref, w1_ref, s1_ref, t1_ref, w2_ref, s2_ref, t2_ref,
                      w3_ref, b3_ref, o_ref):
    # relu(bn1(fc1(x))) -> relu(bn2(fc2(.))) -> fc3(.), all in one kernel.
    h = jnp.dot(x_ref[...], w1_ref[...], preferred_element_type=jnp.float32)
    h = jnp.maximum(h * s1_ref[...] + t1_ref[...], 0.0).astype(jnp.bfloat16)
    h = jnp.dot(h, w2_ref[...], preferred_element_type=jnp.float32)
    h = jnp.maximum(h * s2_ref[...] + t2_ref[...], 0.0).astype(jnp.bfloat16)
    out = jnp.dot(h, w3_ref[...], preferred_element_type=jnp.float32) + b3_ref[...]
    o_ref[...] = out.astype(o_ref.dtype)


# ----------------------------- pallas_call wrappers -------------------------

def conv_bn_relu_pool(x, ge, go, s, t):
    """x: [N, H, W*C] bf16 -> pooled activation [N, PH, PW*OC] bf16."""
    n, h, wc = x.shape
    kh, wc_w, cols = ge.shape
    assert wc_w == wc
    oh = h - kh + 1
    ph = oh // 2
    kernel = functools.partial(_conv_bn_relu_pool_kernel, kh=kh, oh=oh, ph=ph)
    return pl.pallas_call(
        kernel,
        grid=(n,),
        in_specs=[
            pl.BlockSpec((1, h, wc), lambda i: (i, 0, 0)),
            pl.BlockSpec((kh, wc, cols), lambda i: (0, 0, 0)),
            pl.BlockSpec((kh, wc, cols), lambda i: (0, 0, 0)),
            pl.BlockSpec((1, cols), lambda i: (0, 0)),
            pl.BlockSpec((1, cols), lambda i: (0, 0)),
        ],
        out_specs=pl.BlockSpec((1, ph, cols), lambda i: (i, 0, 0)),
        out_shape=jax.ShapeDtypeStruct((n, ph, cols), jnp.bfloat16),
        scratch_shapes=[pltpu.VMEM((oh, cols), jnp.float32)],
        compiler_params=pltpu.CompilerParams(dimension_semantics=("parallel",)),
    )(x, ge, go, s, t)


def _row_tile(m, cap):
    # Full dim if tiny; otherwise a multiple-of-8 tile that yields >=2 grid
    # steps (two TensorCores on v7x), capped so blocks stay far under VMEM.
    if m <= 8:
        return m
    return min(cap, 8 * pl.cdiv(m, 16))


def fused_mlp(x, w1, s1, t1, w2, s2, t2, w3, b3):
    m, k1 = x.shape
    n1, n2, n3 = w1.shape[1], w2.shape[1], w3.shape[1]
    tb = _row_tile(m, FC_TILE_B)

    def const(shape):
        return pl.BlockSpec(shape, lambda i: (0, 0))

    return pl.pallas_call(
        _fused_mlp_kernel,
        grid=(pl.cdiv(m, tb),),
        in_specs=[
            pl.BlockSpec((tb, k1), lambda i: (i, 0)),
            const((k1, n1)), const((1, n1)), const((1, n1)),
            const((n1, n2)), const((1, n2)), const((1, n2)),
            const((n2, n3)), const((1, n3)),
        ],
        out_specs=pl.BlockSpec((tb, n3), lambda i: (i, 0)),
        out_shape=jax.ShapeDtypeStruct((m, n3), jnp.float32),
        compiler_params=pltpu.CompilerParams(dimension_semantics=("parallel",)),
    )(x, w1, s1, t1, w2, s2, t2, w3, b3)


# ----------------------------- parameter prep --------------------------------

def bn_fold(gamma, beta, mean, var):
    s = gamma / jnp.sqrt(var + BN_EPS)
    return s, beta - mean * s


def conv_toeplitz_even_odd(w, w_in):
    """PyTorch conv weight [OC, IC, KH, KW] -> two block-Toeplitz matrices.

    g_par[i, w*IC + ic, q*OC + oc] = w[oc, ic, i, w - (2q + par)] (0 if the
    tap is out of range), so that for row-slabs X_i = x2d[i:i+OH, :]:
        sum_i X_i @ g_par[i]  ==  conv output at columns ow = 2q + par.
    """
    w = np.asarray(w, np.float32)
    oc, ic, kh, kw = w.shape
    ow = w_in - kw + 1
    pw = ow // 2
    wt = np.transpose(w, (2, 3, 1, 0))                 # [kh, kw, ic, oc]
    g = np.zeros((2, kh, w_in * ic, pw * oc), np.float32)
    for par in range(2):
        for i in range(kh):
            for q in range(pw):
                for j in range(kw):
                    col = 2 * q + par + j              # input W position
                    g[par, i, col * ic:(col + 1) * ic, q * oc:(q + 1) * oc] = wt[i, j]
    return g[0], g[1]


def init_params(key):
    ks = jax.random.split(key, 32)
    it = iter(range(32))

    def nrm(shape, scale=0.05):
        return scale * jax.random.normal(ks[next(it)], shape, dtype=jnp.float32)

    def bn_params(c):
        gamma = 1.0 + 0.1 * jax.random.normal(ks[next(it)], (c,), dtype=jnp.float32)
        beta = 0.1 * jax.random.normal(ks[next(it)], (c,), dtype=jnp.float32)
        mean = 0.05 * jax.random.normal(ks[next(it)], (c,), dtype=jnp.float32)
        var = 1.0 + 0.1 * jax.random.uniform(ks[next(it)], (c,), dtype=jnp.float32)
        return gamma, beta, mean, var

    p = {}
    p['conv1_w'], p['conv1_b'] = nrm((20, 3, 3, 3)), nrm((20,))
    p['conv2_w'], p['conv2_b'] = nrm((40, 20, 4, 4)), nrm((40,))
    p['fc1_w'], p['fc1_b'] = nrm((32, 40 * 6 * 6)), nrm((32,))
    p['fc2_w'], p['fc2_b'] = nrm((16, 32)), nrm((16,))
    p['fc3_w'], p['fc3_b'] = nrm((10, 16)), nrm((10,))
    p['bn1'] = bn_params(20)
    p['bn2'] = bn_params(40)
    p['bnfc1'] = bn_params(32)
    p['bnfc2'] = bn_params(16)
    return p


def prepare_params(p):
    """One-time weight layout / BN folding (hoisted out of forward)."""
    q = {}

    def conv_prep(prefix, w, b, bn, w_in):
        oc, kw = w.shape[0], w.shape[3]
        pw = (w_in - kw + 1) // 2
        s, t = bn_fold(*bn)
        ge, go = conv_toeplitz_even_odd(w, w_in)
        q[prefix + '_ge'] = jnp.asarray(ge, jnp.bfloat16)
        q[prefix + '_go'] = jnp.asarray(go, jnp.bfloat16)
        q[prefix + '_s'] = jnp.tile(s, pw).reshape(1, pw * oc).astype(jnp.float32)
        q[prefix + '_t'] = jnp.tile(b * s + t, pw).reshape(1, pw * oc).astype(jnp.float32)

    conv_prep('c1', p['conv1_w'], p['conv1_b'], p['bn1'], w_in=32)
    conv_prep('c2', p['conv2_w'], p['conv2_b'], p['bn2'], w_in=15)

    # fc1 + bnfc1 : permute fc1's input columns from the NCHW flatten order
    # (c, h, w) to the (h, w, c) order produced by the conv2 kernel's output.
    sf1, tf1 = bn_fold(*p['bnfc1'])
    w1 = p['fc1_w'].reshape(32, 40, 6, 6).transpose(0, 2, 3, 1).reshape(32, 40 * 6 * 6)
    q['f1_w'] = w1.T.astype(jnp.bfloat16)                  # [1440, 32]
    q['f1_s'] = sf1.reshape(1, -1).astype(jnp.float32)
    q['f1_t'] = (p['fc1_b'] * sf1 + tf1).reshape(1, -1).astype(jnp.float32)
    # fc2 + bnfc2
    sf2, tf2 = bn_fold(*p['bnfc2'])
    q['f2_w'] = p['fc2_w'].T.astype(jnp.bfloat16)           # [32, 16]
    q['f2_s'] = sf2.reshape(1, -1).astype(jnp.float32)
    q['f2_t'] = (p['fc2_b'] * sf2 + tf2).reshape(1, -1).astype(jnp.float32)
    # fc3
    q['f3_w'] = p['fc3_w'].T.astype(jnp.bfloat16)           # [16, 10]
    q['f3_b'] = p['fc3_b'].reshape(1, -1).astype(jnp.float32)
    return q


# ----------------------------- forward ---------------------------------------

def forward(q, x_nchw):
    n = x_nchw.shape[0]
    # NCHW -> lane-dense [N, H, W*C] bf16 (tiny XLA glue, once per call).
    x = jnp.transpose(x_nchw, (0, 2, 3, 1)).reshape(n, 32, 32 * 3).astype(jnp.bfloat16)

    # conv1(3x3, 3->20) + bn1 + relu + pool : [N,32,96] -> [N,15,300]
    h = conv_bn_relu_pool(x, q['c1_ge'], q['c1_go'], q['c1_s'], q['c1_t'])
    # conv2(4x4, 20->40) + bn2 + relu + pool : [N,15,300] -> [N,6,240]
    h = conv_bn_relu_pool(h, q['c2_ge'], q['c2_go'], q['c2_s'], q['c2_t'])

    flat = h.reshape(n, 6 * 240)                            # [N, 1440] bf16
    # fc1 -> bnfc1 -> relu -> fc2 -> bnfc2 -> relu -> fc3, fused in one kernel.
    return fused_mlp(flat,
                     q['f1_w'], q['f1_s'], q['f1_t'],
                     q['f2_w'], q['f2_s'], q['f2_t'],
                     q['f3_w'], q['f3_b'])                  # [N, 10] f32


# ----------------------------- pure-JAX reference ----------------------------

def reference_forward(p, x):
    def bn2d(y, bn):
        g, b, m, v = bn
        sc = (g / jnp.sqrt(v + BN_EPS))[None, :, None, None]
        return (y - m[None, :, None, None]) * sc + b[None, :, None, None]

    def bn1d(y, bn):
        g, b, m, v = bn
        return (y - m[None, :]) * (g / jnp.sqrt(v + BN_EPS))[None, :] + b[None, :]

    def pool(y):
        return jnp.maximum(jnp.maximum(y[:, :, 0::2, 0::2], y[:, :, 0::2, 1::2]),
                           jnp.maximum(y[:, :, 1::2, 0::2], y[:, :, 1::2, 1::2]))

    dn = ('NCHW', 'OIHW', 'NCHW')
    y = jax.lax.conv_general_dilated(x, p['conv1_w'], (1, 1), 'VALID',
                                     dimension_numbers=dn)
    y = bn2d(y + p['conv1_b'][None, :, None, None], p['bn1'])
    y = pool(jax.nn.relu(y))
    y = jax.lax.conv_general_dilated(y, p['conv2_w'], (1, 1), 'VALID',
                                     dimension_numbers=dn)
    y = bn2d(y + p['conv2_b'][None, :, None, None], p['bn2'])
    y = pool(jax.nn.relu(y))
    flat = y.reshape(y.shape[0], -1)
    h = jax.nn.relu(bn1d(flat @ p['fc1_w'].T + p['fc1_b'], p['bnfc1']))
    h = jax.nn.relu(bn1d(h @ p['fc2_w'].T + p['fc2_b'], p['bnfc2']))
    return h @ p['fc3_w'].T + p['fc3_b']


if __name__ == "__main__":
    key = jax.random.PRNGKey(0)
    pkey, xkey = jax.random.split(key)
    params = init_params(pkey)
    prepped = prepare_params(params)
    x = jax.random.normal(xkey, (2, 3, 32, 32), dtype=jnp.float32)   # CIFAR-size

    out = jax.jit(forward)(prepped, x)
    out = jax.block_until_ready(out)
    assert out.shape == (2, 10) and out.dtype == jnp.float32

    # Loose sanity check vs. a pure-JAX f32 reference (Pallas path is bf16).
    ref = reference_forward(params, x)
    rel = float(jnp.max(jnp.abs(out - ref)) / (jnp.max(jnp.abs(ref)) + 1e-6))
    assert rel < 0.15, f"mismatch vs reference: rel-max-err={rel}"
    print("KERNEL_OK")
</pallas_src>

<mosaic_0001>
module attributes {stable_mosaic.version = 11 : i64} {
  func.func @_conv_bn_relu_pool_kernel(%arg0: i32, %arg1: memref<1x32x96xbf16, #tpu.memory_space<vmem>>, %arg2: memref<3x96x300xbf16, #tpu.memory_space<vmem>>, %arg3: memref<3x96x300xbf16, #tpu.memory_space<vmem>>, %arg4: memref<1x300xf32, #tpu.memory_space<vmem>>, %arg5: memref<1x300xf32, #tpu.memory_space<vmem>>, %arg6: memref<1x15x300xbf16, #tpu.memory_space<vmem>>, %arg7: memref<30x300xf32, #tpu.memory_space<vmem>>) attributes {dimension_semantics = [#tpu.dimension_semantics<parallel>], iteration_bounds = array<i64: 2>, scalar_prefetch = 0 : i64, scratch_operands = 1 : i64, tpu.core_type = #tpu.core_type<tc>, window_params = [{transform_indices = @transform_0, window_bounds = array<i64: 1, 32, 96>}, {pipeline_mode = #tpu.pipeline_mode<synchronous>, transform_indices = @transform_1, window_bounds = array<i64: 3, 96, 300>}, {pipeline_mode = #tpu.pipeline_mode<synchronous>, transform_indices = @transform_2, window_bounds = array<i64: 3, 96, 300>}, {pipeline_mode = #tpu.pipeline_mode<synchronous>, transform_indices = @transform_3, window_bounds = array<i64: 1, 300>}, {pipeline_mode = #tpu.pipeline_mode<synchronous>, transform_indices = @transform_4, window_bounds = array<i64: 1, 300>}, {transform_indices = @transform_5, window_bounds = array<i64: 1, 15, 300>}]} {
    %cst = arith.constant 0.000000e+00 : f32
    %0 = vector.broadcast %cst : f32 to vector<30x300xf32>
    %cst_0 = arith.constant 0.000000e+00 : f32
    %1 = vector.broadcast %cst_0 : f32 to vector<30x300xf32>
    %c0 = arith.constant 0 : index
    %c0_1 = arith.constant 0 : index
    %c0_2 = arith.constant 0 : index
    %2 = vector.load %arg1[%c0, %c0_1, %c0_2] : memref<1x32x96xbf16, #tpu.memory_space<vmem>>, vector<1x30x96xbf16>
    %3 = vector.shape_cast %2 : vector<1x30x96xbf16> to vector<30x96xbf16>
    %c0_3 = arith.constant 0 : index
    %c0_4 = arith.constant 0 : index
    %c0_5 = arith.constant 0 : index
    %4 = vector.load %arg2[%c0_3, %c0_4, %c0_5] : memref<3x96x300xbf16, #tpu.memory_space<vmem>>, vector<1x96x300xbf16>
    %5 = vector.shape_cast %4 : vector<1x96x300xbf16> to vector<96x300xbf16>
    %cst_6 = arith.constant dense<0.000000e+00> : vector<30x300xf32>
    %6 = tpu.matmul %3, %5, %cst_6 {dimension_numbers = #tpu.dot_dimension_numbers<[1], [0], [0], [1], [0, 0, 1, 1], [], []>} : vector<30x96xbf16>, vector<96x300xbf16>, vector<30x300xf32> -> vector<30x300xf32>
    %7 = arith.addf %0, %6 : vector<30x300xf32>
    %c0_7 = arith.constant 0 : index
    %c0_8 = arith.constant 0 : index
    %c0_9 = arith.constant 0 : index
    %8 = vector.load %arg3[%c0_7, %c0_8, %c0_9] : memref<3x96x300xbf16, #tpu.memory_space<vmem>>, vector<1x96x300xbf16>
    %9 = vector.shape_cast %8 : vector<1x96x300xbf16> to vector<96x300xbf16>
    %cst_10 = arith.constant dense<0.000000e+00> : vector<30x300xf32>
    %10 = tpu.matmul %3, %9, %cst_10 {dimension_numbers = #tpu.dot_dimension_numbers<[1], [0], [0], [1], [0, 0, 1, 1], [], []>} : vector<30x96xbf16>, vector<96x300xbf16>, vector<30x300xf32> -> vector<30x300xf32>
    %11 = arith.addf %1, %10 : vector<30x300xf32>
    %c0_11 = arith.constant 0 : index
    %c1 = arith.constant 1 : index
    %c0_12 = arith.constant 0 : index
    %12 = vector.load %arg1[%c0_11, %c1, %c0_12] : memref<1x32x96xbf16, #tpu.memory_space<vmem>>, vector<1x30x96xbf16>
    %13 = vector.shape_cast %12 : vector<1x30x96xbf16> to vector<30x96xbf16>
    %c1_13 = arith.constant 1 : index
    %c0_14 = arith.constant 0 : index
    %c0_15 = arith.constant 0 : index
    %14 = vector.load %arg2[%c1_13, %c0_14, %c0_15] : memref<3x96x300xbf16, #tpu.memory_space<vmem>>, vector<1x96x300xbf16>
    %15 = vector.shape_cast %14 : vector<1x96x300xbf16> to vector<96x300xbf16>
    %cst_16 = arith.constant dense<0.000000e+00> : vector<30x300xf32>
    %16 = tpu.matmul %13, %15, %cst_16 {dimension_numbers = #tpu.dot_dimension_numbers<[1], [0], [0], [1], [0, 0, 1, 1], [], []>} : vector<30x96xbf16>, vector<96x300xbf16>, vector<30x300xf32> -> vector<30x300xf32>
    %17 = arith.addf %7, %16 : vector<30x300xf32>
    %c1_17 = arith.constant 1 : index
    %c0_18 = arith.constant 0 : index
    %c0_19 = arith.constant 0 : index
    %18 = vector.load %arg3[%c1_17, %c0_18, %c0_19] : memref<3x96x300xbf16, #tpu.memory_space<vmem>>, vector<1x96x300xbf16>
    %19 = vector.shape_cast %18 : vector<1x96x300xbf16> to vector<96x300xbf16>
    %cst_20 = arith.constant dense<0.000000e+00> : vector<30x300xf32>
    %20 = tpu.matmul %13, %19, %cst_20 {dimension_numbers = #tpu.dot_dimension_numbers<[1], [0], [0], [1], [0, 0, 1, 1], [], []>} : vector<30x96xbf16>, vector<96x300xbf16>, vector<30x300xf32> -> vector<30x300xf32>
    %21 = arith.addf %11, %20 : vector<30x300xf32>
    %c0_21 = arith.constant 0 : index
    %c2 = arith.constant 2 : index
    %c0_22 = arith.constant 0 : index
    %22 = vector.load %arg1[%c0_21, %c2, %c0_22] : memref<1x32x96xbf16, #tpu.memory_space<vmem>>, vector<1x30x96xbf16>
    %23 = vector.shape_cast %22 : vector<1x30x96xbf16> to vector<30x96xbf16>
    %c2_23 = arith.constant 2 : index
    %c0_24 = arith.constant 0 : index
    %c0_25 = arith.constant 0 : index
    %24 = vector.load %arg2[%c2_23, %c0_24, %c0_25] : memref<3x96x300xbf16, #tpu.memory_space<vmem>>, vector<1x96x300xbf16>
    %25 = vector.shape_cast %24 : vector<1x96x300xbf16> to vector<96x300xbf16>
    %cst_26 = arith.constant dense<0.000000e+00> : vector<30x300xf32>
    %26 = tpu.matmul %23, %25, %cst_26 {dimension_numbers = #tpu.dot_dimension_numbers<[1], [0], [0], [1], [0, 0, 1, 1], [], []>} : vector<30x96xbf16>, vector<96x300xbf16>, vector<30x300xf32> -> vector<30x300xf32>
    %27 = arith.addf %17, %26 : vector<30x300xf32>
    %c2_27 = arith.constant 2 : index
    %c0_28 = arith.constant 0 : index
    %c0_29 = arith.constant 0 : index
    %28 = vector.load %arg3[%c2_27, %c0_28, %c0_29] : memref<3x96x300xbf16, #tpu.memory_space<vmem>>, vector<1x96x300xbf16>
    %29 = vector.shape_cast %28 : vector<1x96x300xbf16> to vector<96x300xbf16>
    %cst_30 = arith.constant dense<0.000000e+00> : vector<30x300xf32>
    %30 = tpu.matmul %23, %29, %cst_30 {dimension_numbers = #tpu.dot_dimension_numbers<[1], [0], [0], [1], [0, 0, 1, 1], [], []>} : vector<30x96xbf16>, vector<96x300xbf16>, vector<30x300xf32> -> vector<30x300xf32>
    %31 = arith.addf %21, %30 : vector<30x300xf32>
    %c0_31 = arith.constant 0 : index
    %c0_32 = arith.constant 0 : index
    %32 = vector.load %arg4[%c0_31, %c0_32] : memref<1x300xf32, #tpu.memory_space<vmem>>, vector<1x300xf32>
    %c0_33 = arith.constant 0 : index
    %c0_34 = arith.constant 0 : index
    %33 = vector.load %arg5[%c0_33, %c0_34] : memref<1x300xf32, #tpu.memory_space<vmem>>, vector<1x300xf32>
    %34 = vector.broadcast %32 : vector<1x300xf32> to vector<30x300xf32>
    %35 = arith.mulf %27, %34 : vector<30x300xf32>
    %36 = vector.broadcast %33 : vector<1x300xf32> to vector<30x300xf32>
    %37 = arith.addf %35, %36 : vector<30x300xf32>
    %38 = vector.broadcast %32 : vector<1x300xf32> to vector<30x300xf32>
    %39 = arith.mulf %31, %38 : vector<30x300xf32>
    %40 = vector.broadcast %33 : vector<1x300xf32> to vector<30x300xf32>
    %41 = arith.addf %39, %40 : vector<30x300xf32>
    %42 = arith.maximumf %37, %41 : vector<30x300xf32>
    %c0_35 = arith.constant 0 : index
    %c0_36 = arith.constant 0 : index
    %43 = vector.load %arg7[%c0_35, %c0_36] : memref<30x300xf32, #tpu.memory_space<vmem>>, vector<30x300xf32>
    tpu.vector_store %arg7[%c0_35, %c0_36], %42 {strides = array<i32>} : memref<30x300xf32, #tpu.memory_space<vmem>>, vector<30x300xf32>,
    %c0_37 = arith.constant 0 : index
    %c0_38 = arith.constant 0 : index
    %44 = vector.load %arg7[%c0_37, %c0_38] : memref<30x300xf32, #tpu.memory_space<vmem>>, vector<2x300xf32>
    %cst_39 = arith.constant dense<0xFF800000> : vector<300xf32>
    %45 = vector.multi_reduction <maximumf>, %44, %cst_39 [0] : vector<2x300xf32> to vector<300xf32>
    %46 = vector.shape_cast %45 : vector<300xf32> to vector<1x300xf32>
    %cst_40 = arith.constant 0.000000e+00 : f32
    %47 = vector.broadcast %cst_40 : f32 to vector<1x300xf32>
    %48 = arith.maximumf %46, %47 : vector<1x300xf32>
    %49 = arith.truncf %48 : vector<1x300xf32> to vector<1x300xbf16>
    %c0_41 = arith.constant 0 : index
    %c0_42 = arith.constant 0 : index
    %c0_43 = arith.constant 0 : index
    %50 = vector.load %arg6[%c0_41, %c0_42, %c0_43] : memref<1x15x300xbf16, #tpu.memory_space<vmem>>, vector<1x1x300xbf16>
    %51 = vector.shape_cast %50 : vector<1x1x300xbf16> to vector<1x300xbf16>
    %52 = vector.shape_cast %49 : vector<1x300xbf16> to vector<1x1x300xbf16>
    tpu.vector_store %arg6[%c0_41, %c0_42, %c0_43], %52 {strides = array<i32>} : memref<1x15x300xbf16, #tpu.memory_space<vmem>>, vector<1x1x300xbf16>,
    %c2_44 = arith.constant 2 : index
    %c0_45 = arith.constant 0 : index
    %53 = vector.load %arg7[%c2_44, %c0_45] : memref<30x300xf32, #tpu.memory_space<vmem>>, vector<2x300xf32>
    %cst_46 = arith.constant dense<0xFF800000> : vector<300xf32>
    %54 = vector.multi_reduction <maximumf>, %53, %cst_46 [0] : vector<2x300xf32> to vector<300xf32>
    %55 = vector.shape_cast %54 : vector<300xf32> to vector<1x300xf32>
    %cst_47 = arith.constant 0.000000e+00 : f32
    %56 = vector.broadcast %cst_47 : f32 to vector<1x300xf32>
    %57 = arith.maximumf %55, %56 : vector<1x300xf32>
    %58 = arith.truncf %57 : vector<1x300xf32> to vector<1x300xbf16>
    %c0_48 = arith.constant 0 : index
    %c1_49 = arith.constant 1 : index
    %c0_50 = arith.constant 0 : index
    %59 = vector.load %arg6[%c0_48, %c1_49, %c0_50] : memref<1x15x300xbf16, #tpu.memory_space<vmem>>, vector<1x1x300xbf16>
    %60 = vector.shape_cast %59 : vector<1x1x300xbf16> to vector<1x300xbf16>
    %61 = vector.shape_cast %58 : vector<1x300xbf16> to vector<1x1x300xbf16>
    tpu.vector_store %arg6[%c0_48, %c1_49, %c0_50], %61 {strides = array<i32>} : memref<1x15x300xbf16, #tpu.memory_space<vmem>>, vector<1x1x300xbf16>,
    %c4 = arith.constant 4 : index
    %c0_51 = arith.constant 0 : index
    %62 = vector.load %arg7[%c4, %c0_51] : memref<30x300xf32, #tpu.memory_space<vmem>>, vector<2x300xf32>
    %cst_52 = arith.constant dense<0xFF800000> : vector<300xf32>
    %63 = vector.multi_reduction <maximumf>, %62, %cst_52 [0] : vector<2x300xf32> to vector<300xf32>
    %64 = vector.shape_cast %63 : vector<300xf32> to vector<1x300xf32>
    %cst_53 = arith.constant 0.000000e+00 : f32
    %65 = vector.broadcast %cst_53 : f32 to vector<1x300xf32>
    %66 = arith.maximumf %64, %65 : vector<1x300xf32>
    %67 = arith.truncf %66 : vector<1x300xf32> to vector<1x300xbf16>
    %c0_54 = arith.constant 0 : index
    %c2_55 = arith.constant 2 : index
    %c0_56 = arith.constant 0 : index
    %68 = vector.load %arg6[%c0_54, %c2_55, %c0_56] : memref<1x15x300xbf16, #tpu.memory_space<vmem>>, vector<1x1x300xbf16>
    %69 = vector.shape_cast %68 : vector<1x1x300xbf16> to vector<1x300xbf16>
    %70 = vector.shape_cast %67 : vector<1x300xbf16> to vector<1x1x300xbf16>
    tpu.vector_store %arg6[%c0_54, %c2_55, %c0_56], %70 {strides = array<i32>} : memref<1x15x300xbf16, #tpu.memory_space<vmem>>, vector<1x1x300xbf16>,
    %c6 = arith.constant 6 : index
    %c0_57 = arith.constant 0 : index
    %71 = vector.load %arg7[%c6, %c0_57] : memref<30x300xf32, #tpu.memory_space<vmem>>, vector<2x300xf32>
    %cst_58 = arith.constant dense<0xFF800000> : vector<300xf32>
    %72 = vector.multi_reduction <maximumf>, %71, %cst_58 [0] : vector<2x300xf32> to vector<300xf32>
    %73 = vector.shape_cast %72 : vector<300xf32> to vector<1x300xf32>
    %cst_59 = arith.constant 0.000000e+00 : f32
    %74 = vector.broadcast %cst_59 : f32 to vector<1x300xf32>
    %75 = arith.maximumf %73, %74 : vector<1x300xf32>
    %76 = arith.truncf %75 : vector<1x300xf32> to vector<1x300xbf16>
    %c0_60 = arith.constant 0 : index
    %c3 = arith.constant 3 : index
    %c0_61 = arith.constant 0 : index
    %77 = vector.load %arg6[%c0_60, %c3, %c0_61] : memref<1x15x300xbf16, #tpu.memory_space<vmem>>, vector<1x1x300xbf16>
    %78 = vector.shape_cast %77 : vector<1x1x300xbf16> to vector<1x300xbf16>
    %79 = vector.shape_cast %76 : vector<1x300xbf16> to vector<1x1x300xbf16>
    tpu.vector_store %arg6[%c0_60, %c3, %c0_61], %79 {strides = array<i32>} : memref<1x15x300xbf16, #tpu.memory_space<vmem>>, vector<1x1x300xbf16>,
    %c8 = arith.constant 8 : index
    %c0_62 = arith.constant 0 : index
    %80 = vector.load %arg7[%c8, %c0_62] : memref<30x300xf32, #tpu.memory_space<vmem>>, vector<2x300xf32>
    %cst_63 = arith.constant dense<0xFF800000> : vector<300xf32>
    %81 = vector.multi_reduction <maximumf>, %80, %cst_63 [0] : vector<2x300xf32> to vector<300xf32>
    %82 = vector.shape_cast %81 : vector<300xf32> to vector<1x300xf32>
    %cst_64 = arith.constant 0.000000e+00 : f32
    %83 = vector.broadcast %cst_64 : f32 to vector<1x300xf32>
    %84 = arith.maximumf %82, %83 : vector<1x300xf32>
    %85 = arith.truncf %84 : vector<1x300xf32> to vector<1x300xbf16>
    %c0_65 = arith.constant 0 : index
    %c4_66 = arith.constant 4 : index
    %c0_67 = arith.constant 0 : index
    %86 = vector.load %arg6[%c0_65, %c4_66, %c0_67] : memref<1x15x300xbf16, #tpu.memory_space<vmem>>, vector<1x1x300xbf16>
    %87 = vector.shape_cast %86 : vector<1x1x300xbf16> to vector<1x300xbf16>
    %88 = vector.shape_cast %85 : vector<1x300xbf16> to vector<1x1x300xbf16>
    tpu.vector_store %arg6[%c0_65, %c4_66, %c0_67], %88 {strides = array<i32>} : memref<1x15x300xbf16, #tpu.memory_space<vmem>>, vector<1x1x300xbf16>,
    %c10 = arith.constant 10 : index
    %c0_68 = arith.constant 0 : index
    %89 = vector.load %arg7[%c10, %c0_68] : memref<30x300xf32, #tpu.memory_space<vmem>>, vector<2x300xf32>
    %cst_69 = arith.constant dense<0xFF800000> : vector<300xf32>
    %90 = vector.multi_reduction <maximumf>, %89, %cst_69 [0] : vector<2x300xf32> to vector<300xf32>
    %91 = vector.shape_cast %90 : vector<300xf32> to vector<1x300xf32>
    %cst_70 = arith.constant 0.000000e+00 : f32
    %92 = vector.broadcast %cst_70 : f32 to vector<1x300xf32>
    %93 = arith.maximumf %91, %92 : vector<1x300xf32>
    %94 = arith.truncf %93 : vector<1x300xf32> to vector<1x300xbf16>
    %c0_71 = arith.constant 0 : index
    %c5 = arith.constant 5 : index
    %c0_72 = arith.constant 0 : index
    %95 = vector.load %arg6[%c0_71, %c5, %c0_72] : memref<1x15x300xbf16, #tpu.memory_space<vmem>>, vector<1x1x300xbf16>
    %96 = vector.shape_cast %95 : vector<1x1x300xbf16> to vector<1x300xbf16>
    %97 = vector.shape_cast %94 : vector<1x300xbf16> to vector<1x1x300xbf16>
    tpu.vector_store %arg6[%c0_71, %c5, %c0_72], %97 {strides = array<i32>} : memref<1x15x300xbf16, #tpu.memory_space<vmem>>, vector<1x1x300xbf16>,
    %c12 = arith.constant 12 : index
    %c0_73 = arith.constant 0 : index
    %98 = vector.load %arg7[%c12, %c0_73] : memref<30x300xf32, #tpu.memory_space<vmem>>, vector<2x300xf32>
    %cst_74 = arith.constant dense<0xFF800000> : vector<300xf32>
    %99 = vector.multi_reduction <maximumf>, %98, %cst_74 [0] : vector<2x300xf32> to vector<300xf32>
    %100 = vector.shape_cast %99 : vector<300xf32> to vector<1x300xf32>
    %cst_75 = arith.constant 0.000000e+00 : f32
    %101 = vector.broadcast %cst_75 : f32 to vector<1x300xf32>
    %102 = arith.maximumf %100, %101 : vector<1x300xf32>
    %103 = arith.truncf %102 : vector<1x300xf32> to vector<1x300xbf16>
    %c0_76 = arith.constant 0 : index
    %c6_77 = arith.constant 6 : index
    %c0_78 = arith.constant 0 : index
    %104 = vector.load %arg6[%c0_76, %c6_77, %c0_78] : memref<1x15x300xbf16, #tpu.memory_space<vmem>>, vector<1x1x300xbf16>
    %105 = vector.shape_cast %104 : vector<1x1x300xbf16> to vector<1x300xbf16>
    %106 = vector.shape_cast %103 : vector<1x300xbf16> to vector<1x1x300xbf16>
    tpu.vector_store %arg6[%c0_76, %c6_77, %c0_78], %106 {strides = array<i32>} : memref<1x15x300xbf16, #tpu.memory_space<vmem>>, vector<1x1x300xbf16>,
    %c14 = arith.constant 14 : index
    %c0_79 = arith.constant 0 : index
    %107 = vector.load %arg7[%c14, %c0_79] : memref<30x300xf32, #tpu.memory_space<vmem>>, vector<2x300xf32>
    %cst_80 = arith.constant dense<0xFF800000> : vector<300xf32>
    %108 = vector.multi_reduction <maximumf>, %107, %cst_80 [0] : vector<2x300xf32> to vector<300xf32>
    %109 = vector.shape_cast %108 : vector<300xf32> to vector<1x300xf32>
    %cst_81 = arith.constant 0.000000e+00 : f32
    %110 = vector.broadcast %cst_81 : f32 to vector<1x300xf32>
    %111 = arith.maximumf %109, %110 : vector<1x300xf32>
    %112 = arith.truncf %111 : vector<1x300xf32> to vector<1x300xbf16>
    %c0_82 = arith.constant 0 : index
    %c7 = arith.constant 7 : index
    %c0_83 = arith.constant 0 : index
    %113 = vector.load %arg6[%c0_82, %c7, %c0_83] : memref<1x15x300xbf16, #tpu.memory_space<vmem>>, vector<1x1x300xbf16>
    %114 = vector.shape_cast %113 : vector<1x1x300xbf16> to vector<1x300xbf16>
    %115 = vector.shape_cast %112 : vector<1x300xbf16> to vector<1x1x300xbf16>
    tpu.vector_store %arg6[%c0_82, %c7, %c0_83], %115 {strides = array<i32>} : memref<1x15x300xbf16, #tpu.memory_space<vmem>>, vector<1x1x300xbf16>,
    %c16 = arith.constant 16 : index
    %c0_84 = arith.constant 0 : index
    %116 = vector.load %arg7[%c16, %c0_84] : memref<30x300xf32, #tpu.memory_space<vmem>>, vector<2x300xf32>
    %cst_85 = arith.constant dense<0xFF800000> : vector<300xf32>
    %117 = vector.multi_reduction <maximumf>, %116, %cst_85 [0] : vector<2x300xf32> to vector<300xf32>
    %118 = vector.shape_cast %117 : vector<300xf32> to vector<1x300xf32>
    %cst_86 = arith.constant 0.000000e+00 : f32
    %119 = vector.broadcast %cst_86 : f32 to vector<1x300xf32>
    %120 = arith.maximumf %118, %119 : vector<1x300xf32>
    %121 = arith.truncf %120 : vector<1x300xf32> to vector<1x300xbf16>
    %c0_87 = arith.constant 0 : index
    %c8_88 = arith.constant 8 : index
    %c0_89 = arith.constant 0 : index
    %122 = vector.load %arg6[%c0_87, %c8_88, %c0_89] : memref<1x15x300xbf16, #tpu.memory_space<vmem>>, vector<1x1x300xbf16>
    %123 = vector.shape_cast %122 : vector<1x1x300xbf16> to vector<1x300xbf16>
    %124 = vector.shape_cast %121 : vector<1x300xbf16> to vector<1x1x300xbf16>
    tpu.vector_store %arg6[%c0_87, %c8_88, %c0_89], %124 {strides = array<i32>} : memref<1x15x300xbf16, #tpu.memory_space<vmem>>, vector<1x1x300xbf16>,
    %c18 = arith.constant 18 : index
    %c0_90 = arith.constant 0 : index
    %125 = vector.load %arg7[%c18, %c0_90] : memref<30x300xf32, #tpu.memory_space<vmem>>, vector<2x300xf32>
    %cst_91 = arith.constant dense<0xFF800000> : vector<300xf32>
    %126 = vector.multi_reduction <maximumf>, %125, %cst_91 [0] : vector<2x300xf32> to vector<300xf32>
    %127 = vector.shape_cast %126 : vector<300xf32> to vector<1x300xf32>
    %cst_92 = arith.constant 0.000000e+00 : f32
    %128 = vector.broadcast %cst_92 : f32 to vector<1x300xf32>
    %129 = arith.maximumf %127, %128 : vector<1x300xf32>
    %130 = arith.truncf %129 : vector<1x300xf32> to vector<1x300xbf16>
    %c0_93 = arith.constant 0 : index
    %c9 = arith.constant 9 : index
    %c0_94 = arith.constant 0 : index
    %131 = vector.load %arg6[%c0_93, %c9, %c0_94] : memref<1x15x300xbf16, #tpu.memory_space<vmem>>, vector<1x1x300xbf16>
    %132 = vector.shape_cast %131 : vector<1x1x300xbf16> to vector<1x300xbf16>
    %133 = vector.shape_cast %130 : vector<1x300xbf16> to vector<1x1x300xbf16>
    tpu.vector_store %arg6[%c0_93, %c9, %c0_94], %133 {strides = array<i32>} : memref<1x15x300xbf16, #tpu.memory_space<vmem>>, vector<1x1x300xbf16>,
    %c20 = arith.constant 20 : index
    %c0_95 = arith.constant 0 : index
    %134 = vector.load %arg7[%c20, %c0_95] : memref<30x300xf32, #tpu.memory_space<vmem>>, vector<2x300xf32>
    %cst_96 = arith.constant dense<0xFF800000> : vector<300xf32>
    %135 = vector.multi_reduction <maximumf>, %134, %cst_96 [0] : vector<2x300xf32> to vector<300xf32>
    %136 = vector.shape_cast %135 : vector<300xf32> to vector<1x300xf32>
    %cst_97 = arith.constant 0.000000e+00 : f32
    %137 = vector.broadcast %cst_97 : f32 to vector<1x300xf32>
    %138 = arith.maximumf %136, %137 : vector<1x300xf32>
    %139 = arith.truncf %138 : vector<1x300xf32> to vector<1x300xbf16>
    %c0_98 = arith.constant 0 : index
    %c10_99 = arith.constant 10 : index
    %c0_100 = arith.constant 0 : index
    %140 = vector.load %arg6[%c0_98, %c10_99, %c0_100] : memref<1x15x300xbf16, #tpu.memory_space<vmem>>, vector<1x1x300xbf16>
    %141 = vector.shape_cast %140 : vector<1x1x300xbf16> to vector<1x300xbf16>
    %142 = vector.shape_cast %139 : vector<1x300xbf16> to vector<1x1x300xbf16>
    tpu.vector_store %arg6[%c0_98, %c10_99, %c0_100], %142 {strides = array<i32>} : memref<1x15x300xbf16, #tpu.memory_space<vmem>>, vector<1x1x300xbf16>,
    %c22 = arith.constant 22 : index
    %c0_101 = arith.constant 0 : index
    %143 = vector.load %arg7[%c22, %c0_101] : memref<30x300xf32, #tpu.memory_space<vmem>>, vector<2x300xf32>
    %cst_102 = arith.constant dense<0xFF800000> : vector<300xf32>
    %144 = vector.multi_reduction <maximumf>, %143, %cst_102 [0] : vector<2x300xf32> to vector<300xf32>
    %145 = vector.shape_cast %144 : vector<300xf32> to vector<1x300xf32>
    %cst_103 = arith.constant 0.000000e+00 : f32
    %146 = vector.broadcast %cst_103 : f32 to vector<1x300xf32>
    %147 = arith.maximumf %145, %146 : vector<1x300xf32>
    %148 = arith.truncf %147 : vector<1x300xf32> to vector<1x300xbf16>
    %c0_104 = arith.constant 0 : index
    %c11 = arith.constant 11 : index
    %c0_105 = arith.constant 0 : index
    %149 = vector.load %arg6[%c0_104, %c11, %c0_105] : memref<1x15x300xbf16, #tpu.memory_space<vmem>>, vector<1x1x300xbf16>
    %150 = vector.shape_cast %149 : vector<1x1x300xbf16> to vector<1x300xbf16>
    %151 = vector.shape_cast %148 : vector<1x300xbf16> to vector<1x1x300xbf16>
    tpu.vector_store %arg6[%c0_104, %c11, %c0_105], %151 {strides = array<i32>} : memref<1x15x300xbf16, #tpu.memory_space<vmem>>, vector<1x1x300xbf16>,
    %c24 = arith.constant 24 : index
    %c0_106 = arith.constant 0 : index
    %152 = vector.load %arg7[%c24, %c0_106] : memref<30x300xf32, #tpu.memory_space<vmem>>, vector<2x300xf32>
    %cst_107 = arith.constant dense<0xFF800000> : vector<300xf32>
    %153 = vector.multi_reduction <maximumf>, %152, %cst_107 [0] : vector<2x300xf32> to vector<300xf32>
    %154 = vector.shape_cast %153 : vector<300xf32> to vector<1x300xf32>
    %cst_108 = arith.constant 0.000000e+00 : f32
    %155 = vector.broadcast %cst_108 : f32 to vector<1x300xf32>
    %156 = arith.maximumf %154, %155 : vector<1x300xf32>
    %157 = arith.truncf %156 : vector<1x300xf32> to vector<1x300xbf16>
    %c0_109 = arith.constant 0 : index
    %c12_110 = arith.constant 12 : index
    %c0_111 = arith.constant 0 : index
    %158 = vector.load %arg6[%c0_109, %c12_110, %c0_111] : memref<1x15x300xbf16, #tpu.memory_space<vmem>>, vector<1x1x300xbf16>
    %159 = vector.shape_cast %158 : vector<1x1x300xbf16> to vector<1x300xbf16>
    %160 = vector.shape_cast %157 : vector<1x300xbf16> to vector<1x1x300xbf16>
    tpu.vector_store %arg6[%c0_109, %c12_110, %c0_111], %160 {strides = array<i32>} : memref<1x15x300xbf16, #tpu.memory_space<vmem>>, vector<1x1x300xbf16>,
    %c26 = arith.constant 26 : index
    %c0_112 = arith.constant 0 : index
    %161 = vector.load %arg7[%c26, %c0_112] : memref<30x300xf32, #tpu.memory_space<vmem>>, vector<2x300xf32>
    %cst_113 = arith.constant dense<0xFF800000> : vector<300xf32>
    %162 = vector.multi_reduction <maximumf>, %161, %cst_113 [0] : vector<2x300xf32> to vector<300xf32>
    %163 = vector.shape_cast %162 : vector<300xf32> to vector<1x300xf32>
    %cst_114 = arith.constant 0.000000e+00 : f32
    %164 = vector.broadcast %cst_114 : f32 to vector<1x300xf32>
    %165 = arith.maximumf %163, %164 : vector<1x300xf32>
    %166 = arith.truncf %165 : vector<1x300xf32> to vector<1x300xbf16>
    %c0_115 = arith.constant 0 : index
    %c13 = arith.constant 13 : index
    %c0_116 = arith.constant 0 : index
    %167 = vector.load %arg6[%c0_115, %c13, %c0_116] : memref<1x15x300xbf16, #tpu.memory_space<vmem>>, vector<1x1x300xbf16>
    %168 = vector.shape_cast %167 : vector<1x1x300xbf16> to vector<1x300xbf16>
    %169 = vector.shape_cast %166 : vector<1x300xbf16> to vector<1x1x300xbf16>
    tpu.vector_store %arg6[%c0_115, %c13, %c0_116], %169 {strides = array<i32>} : memref<1x15x300xbf16, #tpu.memory_space<vmem>>, vector<1x1x300xbf16>,
    %c28 = arith.constant 28 : index
    %c0_117 = arith.constant 0 : index
    %170 = vector.load %arg7[%c28, %c0_117] : memref<30x300xf32, #tpu.memory_space<vmem>>, vector<2x300xf32>
    %cst_118 = arith.constant dense<0xFF800000> : vector<300xf32>
    %171 = vector.multi_reduction <maximumf>, %170, %cst_118 [0] : vector<2x300xf32> to vector<300xf32>
    %172 = vector.shape_cast %171 : vector<300xf32> to vector<1x300xf32>
    %cst_119 = arith.constant 0.000000e+00 : f32
    %173 = vector.broadcast %cst_119 : f32 to vector<1x300xf32>
    %174 = arith.maximumf %172, %173 : vector<1x300xf32>
    %175 = arith.truncf %174 : vector<1x300xf32> to vector<1x300xbf16>
    %c0_120 = arith.constant 0 : index
    %c14_121 = arith.constant 14 : index
    %c0_122 = arith.constant 0 : index
    %176 = vector.load %arg6[%c0_120, %c14_121, %c0_122] : memref<1x15x300xbf16, #tpu.memory_space<vmem>>, vector<1x1x300xbf16>
    %177 = vector.shape_cast %176 : vector<1x1x300xbf16> to vector<1x300xbf16>
    %178 = vector.shape_cast %175 : vector<1x300xbf16> to vector<1x1x300xbf16>
    tpu.vector_store %arg6[%c0_120, %c14_121, %c0_122], %178 {strides = array<i32>} : memref<1x15x300xbf16, #tpu.memory_space<vmem>>, vector<1x1x300xbf16>,
    return
  }
  func.func @transform_0(%arg0: i32) -> (i32, i32, i32) {
    %c0_i32 = arith.constant 0 : i32
    %c0_i32_0 = arith.constant 0 : i32
    %c0_i32_1 = arith.constant 0 : i32
    return %arg0, %c0_i32, %c0_i32_0 : i32, i32, i32
  }
  func.func @transform_1(%arg0: i32) -> (i32, i32, i32) {
    %c0_i32 = arith.constant 0 : i32
    %c0_i32_0 = arith.constant 0 : i32
    %c0_i32_1 = arith.constant 0 : i32
    %c0_i32_2 = arith.constant 0 : i32
    return %c0_i32, %c0_i32_0, %c0_i32_1 : i32, i32, i32
  }
  func.func @transform_2(%arg0: i32) -> (i32, i32, i32) {
    %c0_i32 = arith.constant 0 : i32
    %c0_i32_0 = arith.constant 0 : i32
    %c0_i32_1 = arith.constant 0 : i32
    %c0_i32_2 = arith.constant 0 : i32
    return %c0_i32, %c0_i32_0, %c0_i32_1 : i32, i32, i32
  }
  func.func @transform_3(%arg0: i32) -> (i32, i32) {
    %c0_i32 = arith.constant 0 : i32
    %c0_i32_0 = arith.constant 0 : i32
    %c0_i32_1 = arith.constant 0 : i32
    return %c0_i32, %c0_i32_0 : i32, i32
  }
  func.func @transform_4(%arg0: i32) -> (i32, i32) {
    %c0_i32 = arith.constant 0 : i32
    %c0_i32_0 = arith.constant 0 : i32
    %c0_i32_1 = arith.constant 0 : i32
    return %c0_i32, %c0_i32_0 : i32, i32
  }
  func.func @transform_5(%arg0: i32) -> (i32, i32, i32) {
    %c0_i32 = arith.constant 0 : i32
    %c0_i32_0 = arith.constant 0 : i32
    %c0_i32_1 = arith.constant 0 : i32
    return %arg0, %c0_i32, %c0_i32_0 : i32, i32, i32
  }
}

module attributes {stable_mosaic.version = 11 : i64} {
  func.func @_conv_bn_relu_pool_kernel(%arg0: i32, %arg1: memref<1x15x300xbf16, #tpu.memory_space<vmem>>, %arg2: memref<4x300x240xbf16, #tpu.memory_space<vmem>>, %arg3: memref<4x300x240xbf16, #tpu.memory_space<vmem>>, %arg4: memref<1x240xf32, #tpu.memory_space<vmem>>, %arg5: memref<1x240xf32, #tpu.memory_space<vmem>>, %arg6: memref<1x6x240xbf16, #tpu.memory_space<vmem>>, %arg7: memref<12x240xf32, #tpu.memory_space<vmem>>) attributes {dimension_semantics = [#tpu.dimension_semantics<parallel>], iteration_bounds = array<i64: 2>, scalar_prefetch = 0 : i64, scratch_operands = 1 : i64, tpu.core_type = #tpu.core_type<tc>, window_params = [{transform_indices = @transform_0, window_bounds = array<i64: 1, 15, 300>}, {pipeline_mode = #tpu.pipeline_mode<synchronous>, transform_indices = @transform_1, window_bounds = array<i64: 4, 300, 240>}, {pipeline_mode = #tpu.pipeline_mode<synchronous>, transform_indices = @transform_2, window_bounds = array<i64: 4, 300, 240>}, {pipeline_mode = #tpu.pipeline_mode<synchronous>, transform_indices = @transform_3, window_bounds = array<i64: 1, 240>}, {pipeline_mode = #tpu.pipeline_mode<synchronous>, transform_indices = @transform_4, window_bounds = array<i64: 1, 240>}, {transform_indices = @transform_5, window_bounds = array<i64: 1, 6, 240>}]} {
    %cst = arith.constant 0.000000e+00 : f32
    %0 = vector.broadcast %cst : f32 to vector<12x240xf32>
    %cst_0 = arith.constant 0.000000e+00 : f32
    %1 = vector.broadcast %cst_0 : f32 to vector<12x240xf32>
    %c0 = arith.constant 0 : index
    %c0_1 = arith.constant 0 : index
    %c0_2 = arith.constant 0 : index
    %2 = vector.load %arg1[%c0, %c0_1, %c0_2] : memref<1x15x300xbf16, #tpu.memory_space<vmem>>, vector<1x12x300xbf16>
    %3 = vector.shape_cast %2 : vector<1x12x300xbf16> to vector<12x300xbf16>
    %c0_3 = arith.constant 0 : index
    %c0_4 = arith.constant 0 : index
    %c0_5 = arith.constant 0 : index
    %4 = vector.load %arg2[%c0_3, %c0_4, %c0_5] : memref<4x300x240xbf16, #tpu.memory_space<vmem>>, vector<1x300x240xbf16>
    %5 = vector.shape_cast %4 : vector<1x300x240xbf16> to vector<300x240xbf16>
    %cst_6 = arith.constant dense<0.000000e+00> : vector<12x240xf32>
    %6 = tpu.matmul %3, %5, %cst_6 {dimension_numbers = #tpu.dot_dimension_numbers<[1], [0], [0], [1], [0, 0, 1, 1], [], []>} : vector<12x300xbf16>, vector<300x240xbf16>, vector<12x240xf32> -> vector<12x240xf32>
    %7 = arith.addf %0, %6 : vector<12x240xf32>
    %c0_7 = arith.constant 0 : index
    %c0_8 = arith.constant 0 : index
    %c0_9 = arith.constant 0 : index
    %8 = vector.load %arg3[%c0_7, %c0_8, %c0_9] : memref<4x300x240xbf16, #tpu.memory_space<vmem>>, vector<1x300x240xbf16>
    %9 = vector.shape_cast %8 : vector<1x300x240xbf16> to vector<300x240xbf16>
    %cst_10 = arith.constant dense<0.000000e+00> : vector<12x240xf32>
    %10 = tpu.matmul %3, %9, %cst_10 {dimension_numbers = #tpu.dot_dimension_numbers<[1], [0], [0], [1], [0, 0, 1, 1], [], []>} : vector<12x300xbf16>, vector<300x240xbf16>, vector<12x240xf32> -> vector<12x240xf32>
    %11 = arith.addf %1, %10 : vector<12x240xf32>
    %c0_11 = arith.constant 0 : index
    %c1 = arith.constant 1 : index
    %c0_12 = arith.constant 0 : index
    %12 = vector.load %arg1[%c0_11, %c1, %c0_12] : memref<1x15x300xbf16, #tpu.memory_space<vmem>>, vector<1x12x300xbf16>
    %13 = vector.shape_cast %12 : vector<1x12x300xbf16> to vector<12x300xbf16>
    %c1_13 = arith.constant 1 : index
    %c0_14 = arith.constant 0 : index
    %c0_15 = arith.constant 0 : index
    %14 = vector.load %arg2[%c1_13, %c0_14, %c0_15] : memref<4x300x240xbf16, #tpu.memory_space<vmem>>, vector<1x300x240xbf16>
    %15 = vector.shape_cast %14 : vector<1x300x240xbf16> to vector<300x240xbf16>
    %cst_16 = arith.constant dense<0.000000e+00> : vector<12x240xf32>
    %16 = tpu.matmul %13, %15, %cst_16 {dimension_numbers = #tpu.dot_dimension_numbers<[1], [0], [0], [1], [0, 0, 1, 1], [], []>} : vector<12x300xbf16>, vector<300x240xbf16>, vector<12x240xf32> -> vector<12x240xf32>
    %17 = arith.addf %7, %16 : vector<12x240xf32>
    %c1_17 = arith.constant 1 : index
    %c0_18 = arith.constant 0 : index
    %c0_19 = arith.constant 0 : index
    %18 = vector.load %arg3[%c1_17, %c0_18, %c0_19] : memref<4x300x240xbf16, #tpu.memory_space<vmem>>, vector<1x300x240xbf16>
    %19 = vector.shape_cast %18 : vector<1x300x240xbf16> to vector<300x240xbf16>
    %cst_20 = arith.constant dense<0.000000e+00> : vector<12x240xf32>
    %20 = tpu.matmul %13, %19, %cst_20 {dimension_numbers = #tpu.dot_dimension_numbers<[1], [0], [0], [1], [0, 0, 1, 1], [], []>} : vector<12x300xbf16>, vector<300x240xbf16>, vector<12x240xf32> -> vector<12x240xf32>
    %21 = arith.addf %11, %20 : vector<12x240xf32>
    %c0_21 = arith.constant 0 : index
    %c2 = arith.constant 2 : index
    %c0_22 = arith.constant 0 : index
    %22 = vector.load %arg1[%c0_21, %c2, %c0_22] : memref<1x15x300xbf16, #tpu.memory_space<vmem>>, vector<1x12x300xbf16>
    %23 = vector.shape_cast %22 : vector<1x12x300xbf16> to vector<12x300xbf16>
    %c2_23 = arith.constant 2 : index
    %c0_24 = arith.constant 0 : index
    %c0_25 = arith.constant 0 : index
    %24 = vector.load %arg2[%c2_23, %c0_24, %c0_25] : memref<4x300x240xbf16, #tpu.memory_space<vmem>>, vector<1x300x240xbf16>
    %25 = vector.shape_cast %24 : vector<1x300x240xbf16> to vector<300x240xbf16>
    %cst_26 = arith.constant dense<0.000000e+00> : vector<12x240xf32>
    %26 = tpu.matmul %23, %25, %cst_26 {dimension_numbers = #tpu.dot_dimension_numbers<[1], [0], [0], [1], [0, 0, 1, 1], [], []>} : vector<12x300xbf16>, vector<300x240xbf16>, vector<12x240xf32> -> vector<12x240xf32>
    %27 = arith.addf %17, %26 : vector<12x240xf32>
    %c2_27 = arith.constant 2 : index
    %c0_28 = arith.constant 0 : index
    %c0_29 = arith.constant 0 : index
    %28 = vector.load %arg3[%c2_27, %c0_28, %c0_29] : memref<4x300x240xbf16, #tpu.memory_space<vmem>>, vector<1x300x240xbf16>
    %29 = vector.shape_cast %28 : vector<1x300x240xbf16> to vector<300x240xbf16>
    %cst_30 = arith.constant dense<0.000000e+00> : vector<12x240xf32>
    %30 = tpu.matmul %23, %29, %cst_30 {dimension_numbers = #tpu.dot_dimension_numbers<[1], [0], [0], [1], [0, 0, 1, 1], [], []>} : vector<12x300xbf16>, vector<300x240xbf16>, vector<12x240xf32> -> vector<12x240xf32>
    %31 = arith.addf %21, %30 : vector<12x240xf32>
    %c0_31 = arith.constant 0 : index
    %c3 = arith.constant 3 : index
    %c0_32 = arith.constant 0 : index
    %32 = vector.load %arg1[%c0_31, %c3, %c0_32] : memref<1x15x300xbf16, #tpu.memory_space<vmem>>, vector<1x12x300xbf16>
    %33 = vector.shape_cast %32 : vector<1x12x300xbf16> to vector<12x300xbf16>
    %c3_33 = arith.constant 3 : index
    %c0_34 = arith.constant 0 : index
    %c0_35 = arith.constant 0 : index
    %34 = vector.load %arg2[%c3_33, %c0_34, %c0_35] : memref<4x300x240xbf16, #tpu.memory_space<vmem>>, vector<1x300x240xbf16>
    %35 = vector.shape_cast %34 : vector<1x300x240xbf16> to vector<300x240xbf16>
    %cst_36 = arith.constant dense<0.000000e+00> : vector<12x240xf32>
    %36 = tpu.matmul %33, %35, %cst_36 {dimension_numbers = #tpu.dot_dimension_numbers<[1], [0], [0], [1], [0, 0, 1, 1], [], []>} : vector<12x300xbf16>, vector<300x240xbf16>, vector<12x240xf32> -> vector<12x240xf32>
    %37 = arith.addf %27, %36 : vector<12x240xf32>
    %c3_37 = arith.constant 3 : index
    %c0_38 = arith.constant 0 : index
    %c0_39 = arith.constant 0 : index
    %38 = vector.load %arg3[%c3_37, %c0_38, %c0_39] : memref<4x300x240xbf16, #tpu.memory_space<vmem>>, vector<1x300x240xbf16>
    %39 = vector.shape_cast %38 : vector<1x300x240xbf16> to vector<300x240xbf16>
    %cst_40 = arith.constant dense<0.000000e+00> : vector<12x240xf32>
    %40 = tpu.matmul %33, %39, %cst_40 {dimension_numbers = #tpu.dot_dimension_numbers<[1], [0], [0], [1], [0, 0, 1, 1], [], []>} : vector<12x300xbf16>, vector<300x240xbf16>, vector<12x240xf32> -> vector<12x240xf32>
    %41 = arith.addf %31, %40 : vector<12x240xf32>
    %c0_41 = arith.constant 0 : index
    %c0_42 = arith.constant 0 : index
    %42 = vector.load %arg4[%c0_41, %c0_42] : memref<1x240xf32, #tpu.memory_space<vmem>>, vector<1x240xf32>
    %c0_43 = arith.constant 0 : index
    %c0_44 = arith.constant 0 : index
    %43 = vector.load %arg5[%c0_43, %c0_44] : memref<1x240xf32, #tpu.memory_space<vmem>>, vector<1x240xf32>
    %44 = vector.broadcast %42 : vector<1x240xf32> to vector<12x240xf32>
    %45 = arith.mulf %37, %44 : vector<12x240xf32>
    %46 = vector.broadcast %43 : vector<1x240xf32> to vector<12x240xf32>
    %47 = arith.addf %45, %46 : vector<12x240xf32>
    %48 = vector.broadcast %42 : vector<1x240xf32> to vector<12x240xf32>
    %49 = arith.mulf %41, %48 : vector<12x240xf32>
    %50 = vector.broadcast %43 : vector<1x240xf32> to vector<12x240xf32>
    %51 = arith.addf %49, %50 : vector<12x240xf32>
    %52 = arith.maximumf %47, %51 : vector<12x240xf32>
    %c0_45 = arith.constant 0 : index
    %c0_46 = arith.constant 0 : index
    %53 = vector.load %arg7[%c0_45, %c0_46] : memref<12x240xf32, #tpu.memory_space<vmem>>, vector<12x240xf32>
    tpu.vector_store %arg7[%c0_45, %c0_46], %52 {strides = array<i32>} : memref<12x240xf32, #tpu.memory_space<vmem>>, vector<12x240xf32>,
    %c0_47 = arith.constant 0 : index
    %c0_48 = arith.constant 0 : index
    %54 = vector.load %arg7[%c0_47, %c0_48] : memref<12x240xf32, #tpu.memory_space<vmem>>, vector<2x240xf32>
    %cst_49 = arith.constant dense<0xFF800000> : vector<240xf32>
    %55 = vector.multi_reduction <maximumf>, %54, %cst_49 [0] : vector<2x240xf32> to vector<240xf32>
    %56 = vector.shape_cast %55 : vector<240xf32> to vector<1x240xf32>
    %cst_50 = arith.constant 0.000000e+00 : f32
    %57 = vector.broadcast %cst_50 : f32 to vector<1x240xf32>
    %58 = arith.maximumf %56, %57 : vector<1x240xf32>
    %59 = arith.truncf %58 : vector<1x240xf32> to vector<1x240xbf16>
    %c0_51 = arith.constant 0 : index
    %c0_52 = arith.constant 0 : index
    %c0_53 = arith.constant 0 : index
    %60 = vector.load %arg6[%c0_51, %c0_52, %c0_53] : memref<1x6x240xbf16, #tpu.memory_space<vmem>>, vector<1x1x240xbf16>
    %61 = vector.shape_cast %60 : vector<1x1x240xbf16> to vector<1x240xbf16>
    %62 = vector.shape_cast %59 : vector<1x240xbf16> to vector<1x1x240xbf16>
    tpu.vector_store %arg6[%c0_51, %c0_52, %c0_53], %62 {strides = array<i32>} : memref<1x6x240xbf16, #tpu.memory_space<vmem>>, vector<1x1x240xbf16>,
    %c2_54 = arith.constant 2 : index
    %c0_55 = arith.constant 0 : index
    %63 = vector.load %arg7[%c2_54, %c0_55] : memref<12x240xf32, #tpu.memory_space<vmem>>, vector<2x240xf32>
    %cst_56 = arith.constant dense<0xFF800000> : vector<240xf32>
    %64 = vector.multi_reduction <maximumf>, %63, %cst_56 [0] : vector<2x240xf32> to vector<240xf32>
    %65 = vector.shape_cast %64 : vector<240xf32> to vector<1x240xf32>
    %cst_57 = arith.constant 0.000000e+00 : f32
    %66 = vector.broadcast %cst_57 : f32 to vector<1x240xf32>
    %67 = arith.maximumf %65, %66 : vector<1x240xf32>
    %68 = arith.truncf %67 : vector<1x240xf32> to vector<1x240xbf16>
    %c0_58 = arith.constant 0 : index
    %c1_59 = arith.constant 1 : index
    %c0_60 = arith.constant 0 : index
    %69 = vector.load %arg6[%c0_58, %c1_59, %c0_60] : memref<1x6x240xbf16, #tpu.memory_space<vmem>>, vector<1x1x240xbf16>
    %70 = vector.shape_cast %69 : vector<1x1x240xbf16> to vector<1x240xbf16>
    %71 = vector.shape_cast %68 : vector<1x240xbf16> to vector<1x1x240xbf16>
    tpu.vector_store %arg6[%c0_58, %c1_59, %c0_60], %71 {strides = array<i32>} : memref<1x6x240xbf16, #tpu.memory_space<vmem>>, vector<1x1x240xbf16>,
    %c4 = arith.constant 4 : index
    %c0_61 = arith.constant 0 : index
    %72 = vector.load %arg7[%c4, %c0_61] : memref<12x240xf32, #tpu.memory_space<vmem>>, vector<2x240xf32>
    %cst_62 = arith.constant dense<0xFF800000> : vector<240xf32>
    %73 = vector.multi_reduction <maximumf>, %72, %cst_62 [0] : vector<2x240xf32> to vector<240xf32>
    %74 = vector.shape_cast %73 : vector<240xf32> to vector<1x240xf32>
    %cst_63 = arith.constant 0.000000e+00 : f32
    %75 = vector.broadcast %cst_63 : f32 to vector<1x240xf32>
    %76 = arith.maximumf %74, %75 : vector<1x240xf32>
    %77 = arith.truncf %76 : vector<1x240xf32> to vector<1x240xbf16>
    %c0_64 = arith.constant 0 : index
    %c2_65 = arith.constant 2 : index
    %c0_66 = arith.constant 0 : index
    %78 = vector.load %arg6[%c0_64, %c2_65, %c0_66] : memref<1x6x240xbf16, #tpu.memory_space<vmem>>, vector<1x1x240xbf16>
    %79 = vector.shape_cast %78 : vector<1x1x240xbf16> to vector<1x240xbf16>
    %80 = vector.shape_cast %77 : vector<1x240xbf16> to vector<1x1x240xbf16>
    tpu.vector_store %arg6[%c0_64, %c2_65, %c0_66], %80 {strides = array<i32>} : memref<1x6x240xbf16, #tpu.memory_space<vmem>>, vector<1x1x240xbf16>,
    %c6 = arith.constant 6 : index
    %c0_67 = arith.constant 0 : index
    %81 = vector.load %arg7[%c6, %c0_67] : memref<12x240xf32, #tpu.memory_space<vmem>>, vector<2x240xf32>
    %cst_68 = arith.constant dense<0xFF800000> : vector<240xf32>
    %82 = vector.multi_reduction <maximumf>, %81, %cst_68 [0] : vector<2x240xf32> to vector<240xf32>
    %83 = vector.shape_cast %82 : vector<240xf32> to vector<1x240xf32>
    %cst_69 = arith.constant 0.000000e+00 : f32
    %84 = vector.broadcast %cst_69 : f32 to vector<1x240xf32>
    %85 = arith.maximumf %83, %84 : vector<1x240xf32>
    %86 = arith.truncf %85 : vector<1x240xf32> to vector<1x240xbf16>
    %c0_70 = arith.constant 0 : index
    %c3_71 = arith.constant 3 : index
    %c0_72 = arith.constant 0 : index
    %87 = vector.load %arg6[%c0_70, %c3_71, %c0_72] : memref<1x6x240xbf16, #tpu.memory_space<vmem>>, vector<1x1x240xbf16>
    %88 = vector.shape_cast %87 : vector<1x1x240xbf16> to vector<1x240xbf16>
    %89 = vector.shape_cast %86 : vector<1x240xbf16> to vector<1x1x240xbf16>
    tpu.vector_store %arg6[%c0_70, %c3_71, %c0_72], %89 {strides = array<i32>} : memref<1x6x240xbf16, #tpu.memory_space<vmem>>, vector<1x1x240xbf16>,
    %c8 = arith.constant 8 : index
    %c0_73 = arith.constant 0 : index
    %90 = vector.load %arg7[%c8, %c0_73] : memref<12x240xf32, #tpu.memory_space<vmem>>, vector<2x240xf32>
    %cst_74 = arith.constant dense<0xFF800000> : vector<240xf32>
    %91 = vector.multi_reduction <maximumf>, %90, %cst_74 [0] : vector<2x240xf32> to vector<240xf32>
    %92 = vector.shape_cast %91 : vector<240xf32> to vector<1x240xf32>
    %cst_75 = arith.constant 0.000000e+00 : f32
    %93 = vector.broadcast %cst_75 : f32 to vector<1x240xf32>
    %94 = arith.maximumf %92, %93 : vector<1x240xf32>
    %95 = arith.truncf %94 : vector<1x240xf32> to vector<1x240xbf16>
    %c0_76 = arith.constant 0 : index
    %c4_77 = arith.constant 4 : index
    %c0_78 = arith.constant 0 : index
    %96 = vector.load %arg6[%c0_76, %c4_77, %c0_78] : memref<1x6x240xbf16, #tpu.memory_space<vmem>>, vector<1x1x240xbf16>
    %97 = vector.shape_cast %96 : vector<1x1x240xbf16> to vector<1x240xbf16>
    %98 = vector.shape_cast %95 : vector<1x240xbf16> to vector<1x1x240xbf16>
    tpu.vector_store %arg6[%c0_76, %c4_77, %c0_78], %98 {strides = array<i32>} : memref<1x6x240xbf16, #tpu.memory_space<vmem>>, vector<1x1x240xbf16>,
    %c10 = arith.constant 10 : index
    %c0_79 = arith.constant 0 : index
    %99 = vector.load %arg7[%c10, %c0_79] : memref<12x240xf32, #tpu.memory_space<vmem>>, vector<2x240xf32>
    %cst_80 = arith.constant dense<0xFF800000> : vector<240xf32>
    %100 = vector.multi_reduction <maximumf>, %99, %cst_80 [0] : vector<2x240xf32> to vector<240xf32>
    %101 = vector.shape_cast %100 : vector<240xf32> to vector<1x240xf32>
    %cst_81 = arith.constant 0.000000e+00 : f32
    %102 = vector.broadcast %cst_81 : f32 to vector<1x240xf32>
    %103 = arith.maximumf %101, %102 : vector<1x240xf32>
    %104 = arith.truncf %103 : vector<1x240xf32> to vector<1x240xbf16>
    %c0_82 = arith.constant 0 : index
    %c5 = arith.constant 5 : index
    %c0_83 = arith.constant 0 : index
    %105 = vector.load %arg6[%c0_82, %c5, %c0_83] : memref<1x6x240xbf16, #tpu.memory_space<vmem>>, vector<1x1x240xbf16>
    %106 = vector.shape_cast %105 : vector<1x1x240xbf16> to vector<1x240xbf16>
    %107 = vector.shape_cast %104 : vector<1x240xbf16> to vector<1x1x240xbf16>
    tpu.vector_store %arg6[%c0_82, %c5, %c0_83], %107 {strides = array<i32>} : memref<1x6x240xbf16, #tpu.memory_space<vmem>>, vector<1x1x240xbf16>,
    return
  }
  func.func @transform_0(%arg0: i32) -> (i32, i32, i32) {
    %c0_i32 = arith.constant 0 : i32
    %c0_i32_0 = arith.constant 0 : i32
    %c0_i32_1 = arith.constant 0 : i32
    return %arg0, %c0_i32, %c0_i32_0 : i32, i32, i32
  }
  func.func @transform_1(%arg0: i32) -> (i32, i32, i32) {
    %c0_i32 = arith.constant 0 : i32
    %c0_i32_0 = arith.constant 0 : i32
    %c0_i32_1 = arith.constant 0 : i32
    %c0_i32_2 = arith.constant 0 : i32
    return %c0_i32, %c0_i32_0, %c0_i32_1 : i32, i32, i32
  }
  func.func @transform_2(%arg0: i32) -> (i32, i32, i32) {
    %c0_i32 = arith.constant 0 : i32
    %c0_i32_0 = arith.constant 0 : i32
    %c0_i32_1 = arith.constant 0 : i32
    %c0_i32_2 = arith.constant 0 : i32
    return %c0_i32, %c0_i32_0, %c0_i32_1 : i32, i32, i32
  }
  func.func @transform_3(%arg0: i32) -> (i32, i32) {
    %c0_i32 = arith.constant 0 : i32
    %c0_i32_0 = arith.constant 0 : i32
    %c0_i32_1 = arith.constant 0 : i32
    return %c0_i32, %c0_i32_0 : i32, i32
  }
  func.func @transform_4(%arg0: i32) -> (i32, i32) {
    %c0_i32 = arith.constant 0 : i32
    %c0_i32_0 = arith.constant 0 : i32
    %c0_i32_1 = arith.constant 0 : i32
    return %c0_i32, %c0_i32_0 : i32, i32
  }
  func.func @transform_5(%arg0: i32) -> (i32, i32, i32) {
    %c0_i32 = arith.constant 0 : i32
    %c0_i32_0 = arith.constant 0 : i32
    %c0_i32_1 = arith.constant 0 : i32
    return %arg0, %c0_i32, %c0_i32_0 : i32, i32, i32
  }
}

module attributes {stable_mosaic.version = 11 : i64} {
  func.func @_fused_mlp_kernel(%arg0: i32, %arg1: memref<2x1440xbf16, #tpu.memory_space<vmem>>, %arg2: memref<1440x32xbf16, #tpu.memory_space<vmem>>, %arg3: memref<1x32xf32, #tpu.memory_space<vmem>>, %arg4: memref<1x32xf32, #tpu.memory_space<vmem>>, %arg5: memref<32x16xbf16, #tpu.memory_space<vmem>>, %arg6: memref<1x16xf32, #tpu.memory_space<vmem>>, %arg7: memref<1x16xf32, #tpu.memory_space<vmem>>, %arg8: memref<16x10xbf16, #tpu.memory_space<vmem>>, %arg9: memref<1x10xf32, #tpu.memory_space<vmem>>, %arg10: memref<2x10xf32, #tpu.memory_space<vmem>>) attributes {dimension_semantics = [#tpu.dimension_semantics<parallel>], iteration_bounds = array<i64: 1>, scalar_prefetch = 0 : i64, scratch_operands = 0 : i64, tpu.core_type = #tpu.core_type<tc>, window_params = [{transform_indices = @transform_0, window_bounds = array<i64: 2, 1440>}, {pipeline_mode = #tpu.pipeline_mode<synchronous>, transform_indices = @transform_1, window_bounds = array<i64: 1440, 32>}, {pipeline_mode = #tpu.pipeline_mode<synchronous>, transform_indices = @transform_2, window_bounds = array<i64: 1, 32>}, {pipeline_mode = #tpu.pipeline_mode<synchronous>, transform_indices = @transform_3, window_bounds = array<i64: 1, 32>}, {pipeline_mode = #tpu.pipeline_mode<synchronous>, transform_indices = @transform_4, window_bounds = array<i64: 32, 16>}, {pipeline_mode = #tpu.pipeline_mode<synchronous>, transform_indices = @transform_5, window_bounds = array<i64: 1, 16>}, {pipeline_mode = #tpu.pipeline_mode<synchronous>, transform_indices = @transform_6, window_bounds = array<i64: 1, 16>}, {pipeline_mode = #tpu.pipeline_mode<synchronous>, transform_indices = @transform_7, window_bounds = array<i64: 16, 10>}, {pipeline_mode = #tpu.pipeline_mode<synchronous>, transform_indices = @transform_8, window_bounds = array<i64: 1, 10>}, {transform_indices = @transform_9, window_bounds = array<i64: 2, 10>}]} {
    %c0 = arith.constant 0 : index
    %c0_0 = arith.constant 0 : index
    %0 = vector.load %arg1[%c0, %c0_0] : memref<2x1440xbf16, #tpu.memory_space<vmem>>, vector<2x1440xbf16>
    %c0_1 = arith.constant 0 : index
    %c0_2 = arith.constant 0 : index
    %1 = vector.load %arg2[%c0_1, %c0_2] : memref<1440x32xbf16, #tpu.memory_space<vmem>>, vector<1440x32xbf16>
    %cst = arith.constant dense<0.000000e+00> : vector<2x32xf32>
    %2 = tpu.matmul %0, %1, %cst {dimension_numbers = #tpu.dot_dimension_numbers<[1], [0], [0], [1], [0, 0, 1, 1], [], []>} : vector<2x1440xbf16>, vector<1440x32xbf16>, vector<2x32xf32> -> vector<2x32xf32>
    %c0_3 = arith.constant 0 : index
    %c0_4 = arith.constant 0 : index
    %3 = vector.load %arg3[%c0_3, %c0_4] : memref<1x32xf32, #tpu.memory_space<vmem>>, vector<1x32xf32>
    %4 = vector.broadcast %3 : vector<1x32xf32> to vector<2x32xf32>
    %5 = arith.mulf %2, %4 : vector<2x32xf32>
    %c0_5 = arith.constant 0 : index
    %c0_6 = arith.constant 0 : index
    %6 = vector.load %arg4[%c0_5, %c0_6] : memref<1x32xf32, #tpu.memory_space<vmem>>, vector<1x32xf32>
    %7 = vector.broadcast %6 : vector<1x32xf32> to vector<2x32xf32>
    %8 = arith.addf %5, %7 : vector<2x32xf32>
    %cst_7 = arith.constant 0.000000e+00 : f32
    %9 = vector.broadcast %cst_7 : f32 to vector<2x32xf32>
    %10 = arith.maximumf %8, %9 : vector<2x32xf32>
    %11 = arith.truncf %10 : vector<2x32xf32> to vector<2x32xbf16>
    %c0_8 = arith.constant 0 : index
    %c0_9 = arith.constant 0 : index
    %12 = vector.load %arg5[%c0_8, %c0_9] : memref<32x16xbf16, #tpu.memory_space<vmem>>, vector<32x16xbf16>
    %cst_10 = arith.constant dense<0.000000e+00> : vector<2x16xf32>
    %13 = tpu.matmul %11, %12, %cst_10 {dimension_numbers = #tpu.dot_dimension_numbers<[1], [0], [0], [1], [0, 0, 1, 1], [], []>} : vector<2x32xbf16>, vector<32x16xbf16>, vector<2x16xf32> -> vector<2x16xf32>
    %c0_11 = arith.constant 0 : index
    %c0_12 = arith.constant 0 : index
    %14 = vector.load %arg6[%c0_11, %c0_12] : memref<1x16xf32, #tpu.memory_space<vmem>>, vector<1x16xf32>
    %15 = vector.broadcast %14 : vector<1x16xf32> to vector<2x16xf32>
    %16 = arith.mulf %13, %15 : vector<2x16xf32>
    %c0_13 = arith.constant 0 : index
    %c0_14 = arith.constant 0 : index
    %17 = vector.load %arg7[%c0_13, %c0_14] : memref<1x16xf32, #tpu.memory_space<vmem>>, vector<1x16xf32>
    %18 = vector.broadcast %17 : vector<1x16xf32> to vector<2x16xf32>
    %19 = arith.addf %16, %18 : vector<2x16xf32>
    %cst_15 = arith.constant 0.000000e+00 : f32
    %20 = vector.broadcast %cst_15 : f32 to vector<2x16xf32>
    %21 = arith.maximumf %19, %20 : vector<2x16xf32>
    %22 = arith.truncf %21 : vector<2x16xf32> to vector<2x16xbf16>
    %c0_16 = arith.constant 0 : index
    %c0_17 = arith.constant 0 : index
    %23 = vector.load %arg8[%c0_16, %c0_17] : memref<16x10xbf16, #tpu.memory_space<vmem>>, vector<16x10xbf16>
    %cst_18 = arith.constant dense<0.000000e+00> : vector<2x10xf32>
    %24 = tpu.matmul %22, %23, %cst_18 {dimension_numbers = #tpu.dot_dimension_numbers<[1], [0], [0], [1], [0, 0, 1, 1], [], []>} : vector<2x16xbf16>, vector<16x10xbf16>, vector<2x10xf32> -> vector<2x10xf32>
    %c0_19 = arith.constant 0 : index
    %c0_20 = arith.constant 0 : index
    %25 = vector.load %arg9[%c0_19, %c0_20] : memref<1x10xf32, #tpu.memory_space<vmem>>, vector<1x10xf32>
    %26 = vector.broadcast %25 : vector<1x10xf32> to vector<2x10xf32>
    %27 = arith.addf %24, %26 : vector<2x10xf32>
    %c0_21 = arith.constant 0 : index
    %c0_22 = arith.constant 0 : index
    %28 = vector.load %arg10[%c0_21, %c0_22] : memref<2x10xf32, #tpu.memory_space<vmem>>, vector<2x10xf32>
    tpu.vector_store %arg10[%c0_21, %c0_22], %27 {strides = array<i32>} : memref<2x10xf32, #tpu.memory_space<vmem>>, vector<2x10xf32>,
    return
  }
  func.func @transform_0(%arg0: i32) -> (i32, i32) {
    %c0_i32 = arith.constant 0 : i32
    %c0_i32_0 = arith.constant 0 : i32
    return %arg0, %c0_i32 : i32, i32
  }
  func.func @transform_1(%arg0: i32) -> (i32, i32) {
    %c0_i32 = arith.constant 0 : i32
    %c0_i32_0 = arith.constant 0 : i32
    %c0_i32_1 = arith.constant 0 : i32
    return %c0_i32, %c0_i32_0 : i32, i32
  }
  func.func @transform_2(%arg0: i32) -> (i32, i32) {
    %c0_i32 = arith.constant 0 : i32
    %c0_i32_0 = arith.constant 0 : i32
    %c0_i32_1 = arith.constant 0 : i32
    return %c0_i32, %c0_i32_0 : i32, i32
  }
  func.func @transform_3(%arg0: i32) -> (i32, i32) {
    %c0_i32 = arith.constant 0 : i32
    %c0_i32_0 = arith.constant 0 : i32
    %c0_i32_1 = arith.constant 0 : i32
    return %c0_i32, %c0_i32_0 : i32, i32
  }
  func.func @transform_4(%arg0: i32) -> (i32, i32) {
    %c0_i32 = arith.constant 0 : i32
    %c0_i32_0 = arith.constant 0 : i32
    %c0_i32_1 = arith.constant 0 : i32
    return %c0_i32, %c0_i32_0 : i32, i32
  }
  func.func @transform_5(%arg0: i32) -> (i32, i32) {
    %c0_i32 = arith.constant 0 : i32
    %c0_i32_0 = arith.constant 0 : i32
    %c0_i32_1 = arith.constant 0 : i32
    return %c0_i32, %c0_i32_0 : i32, i32
  }
  func.func @transform_6(%arg0: i32) -> (i32, i32) {
    %c0_i32 = arith.constant 0 : i32
    %c0_i32_0 = arith.constant 0 : i32
    %c0_i32_1 = arith.constant 0 : i32
    return %c0_i32, %c0_i32_0 : i32, i32
  }
  func.func @transform_7(%arg0: i32) -> (i32, i32) {
    %c0_i32 = arith.constant 0 : i32
    %c0_i32_0 = arith.constant 0 : i32
    %c0_i32_1 = arith.constant 0 : i32
    return %c0_i32, %c0_i32_0 : i32, i32
  }
  func.func @transform_8(%arg0: i32) -> (i32, i32) {
    %c0_i32 = arith.constant 0 : i32
    %c0_i32_0 = arith.constant 0 : i32
    %c0_i32_1 = arith.constant 0 : i32
    return %c0_i32, %c0_i32_0 : i32, i32
  }
  func.func @transform_9(%arg0: i32) -> (i32, i32) {
    %c0_i32 = arith.constant 0 : i32
    %c0_i32_0 = arith.constant 0 : i32
    return %arg0, %c0_i32 : i32, i32
  }
}

</mosaic_0001>

<llo_original>
// kernel: forward.3
$region0: #{forward.3}
  #allocation0 [shape = 'u32[]', space=smem, size = 0x4, offset = 0x4, fixed_abs, tag = 'smem constant byte address 0x4 - core index']
  #allocation1 [shape = 'u32[72,128]{1,0:T(1,128)}', space=vmem, size = 0x9000, scoped, tag = 'internal scratch']
  #allocation2 [shape = 'f32[30,300]{1,0:T(8,128)}', space=vmem, size = 0xc000, scoped, tag = 'scratch operand']
  %s0 = inlined_call_operand.vmem [shape: bf16[2,32,96], index: 0, kind: input, shape index: {}]
  %s1 = inlined_call_operand.vmem [shape: bf16[3,96,300], index: 1, kind: input, shape index: {}]
  %s2 = inlined_call_operand.hbm [shape: bf16[3,96,300], index: 2, kind: input, shape index: {}]
  %s3 = inlined_call_operand.vmem [shape: f32[1,300], index: 3, kind: input, shape index: {}]
  %s4 = inlined_call_operand.vmem [shape: f32[1,300], index: 4, kind: input, shape index: {}]
  %s5 = inlined_call_operand.vmem [shape: bf16[2,15,300], index: 5, kind: output, shape index: {}]
  %s6 = sld [smem:[#allocation0]]
  $region57: #{forward.3} parent=0
    _
  %s8 = ssub.s32 1, %s6
  %s9 = scalar_select 0, %s8, %s6
  $region1: #{forward.3} parent=0
    #allocation3 [shape = 'u8[221184]{0}', space=vmem, size = 0x36000, scoped, tag = 'input window, operand 2, single buffered']
    #allocation4 [shape = 's32[2]{0}', space=sflag, size = 0x8, scoped, tag = 'scoped memory for forward.3']
    %10 = vsyncpa [#allocation4], 0
    loop: start=0, step=1, limit=4
    $region2: #{forward.3} parent=1 // loop_pre_header
      _
    $region3: #{forward.3} parent=1 // loop_header
      %s12 = sphi 0, %s16
      %p13 = scmp.ge.s32.totalorder %s12, 4
      %s22 = sphi 0, %s24
      %s25 = sphi 0, %s22
      %s26 = sphi 0, %s25
      %s42 = sphi 0, %s26
      %s46 = sphi 0, %s46
      %s48 = sphi 0, %s46
      %s49 = sphi 0, %s48
      %s63 = sphi 0, %s49
      %s67 = sphi 0, %s67
      %s69 = sphi 0, %s67
      %s70 = sphi 0, %s69
      %s84 = sphi 0, %s70
      %s88 = sphi 0, %s88
      %s90 = sphi 0, %s88
      %s91 = sphi 0, %s90
      %s105 = sphi 0, %s91
      %s109 = sphi 0, %s109
      %s111 = sphi 0, %s109
      %s112 = sphi 0, %s111
      %s126 = sphi 0, %s112
      %s132 = sphi 0, %s134
      %s135 = sphi 0, %s132
      %s136 = sphi 0, %s135
      %s152 = sphi 0, %s136
    $region4: #{forward.3} parent=1 // loop_header_branch
      %15 = sbr.rel (%p13) target = $region8
    $region5: #{forward.3} parent=1 // loop_body
      %s17 = ssub.s32 %s12, 1
      %s18 = ssub.s32 %s12, 2
      %s19 = sadd.s32 %s12, 1
      %s20 = ssub.s32 %s12, %s19
      %p21 = scmp.eq.s32.totalorder %s20, 0
      %s23 = sadd.s32 %s22, 1
      %s24 = scalar_select %p21, %s22, %s23
      %p27 = pneg %p21
      %p28 = scmp.eq.s32.totalorder %s12, 1
      %p29 = por %p27, %p28
      %p30 = scmp.ne.s32.totalorder %s22, %s25
      %p31 = scmp.eq.s32.totalorder %s12, 0
      %p32 = por %p30, %p31
      %p33 = scmp.ne.s32.totalorder %s22, %s25
      %p34 = scmp.eq.s32.totalorder %s17, 1
      %p35 = por %p33, %p34
      %p36 = scmp.ne.s32.totalorder %s25, %s26
      %p37 = scmp.eq.s32.totalorder %s17, 0
      %p38 = por %p36, %p37
      %p39 = scmp.ne.s32.totalorder %s25, %s26
      %p40 = scmp.eq.s32.totalorder %s18, 1
      %p41 = por %p39, %p40
      %p43 = scmp.ne.s32.totalorder %s26, %s42
      %p44 = scmp.eq.s32.totalorder %s18, 0
      %p45 = por %p43, %p44
      %s47 = sadd.s32 %s46, 1
      %p50 = scmp.eq.s32.totalorder %s12, 1
      %p51 = scmp.ne.s32.totalorder %s46, %s48
      %p52 = scmp.eq.s32.totalorder %s12, 0
      %p53 = por %p51, %p52
      %p54 = scmp.ne.s32.totalorder %s46, %s48
      %p55 = scmp.eq.s32.totalorder %s17, 1
      %p56 = por %p54, %p55
      %p57 = scmp.ne.s32.totalorder %s48, %s49
      %p58 = scmp.eq.s32.totalorder %s17, 0
      %p59 = por %p57, %p58
      %p60 = scmp.ne.s32.totalorder %s48, %s49
      %p61 = scmp.eq.s32.totalorder %s18, 1
      %p62 = por %p60, %p61
      %p64 = scmp.ne.s32.totalorder %s49, %s63
      %p65 = scmp.eq.s32.totalorder %s18, 0
      %p66 = por %p64, %p65
      %s68 = sadd.s32 %s67, 1
      %p71 = scmp.eq.s32.totalorder %s12, 1
      %p72 = scmp.ne.s32.totalorder %s67, %s69
      %p73 = scmp.eq.s32.totalorder %s12, 0
      %p74 = por %p72, %p73
      %p75 = scmp.ne.s32.totalorder %s67, %s69
      %p76 = scmp.eq.s32.totalorder %s17, 1
      %p77 = por %p75, %p76
      %p78 = scmp.ne.s32.totalorder %s69, %s70
      %p79 = scmp.eq.s32.totalorder %s17, 0
      %p80 = por %p78, %p79
      %p81 = scmp.ne.s32.totalorder %s69, %s70
      %p82 = scmp.eq.s32.totalorder %s18, 1
      %p83 = por %p81, %p82
      %p85 = scmp.ne.s32.totalorder %s70, %s84
      %p86 = scmp.eq.s32.totalorder %s18, 0
      %p87 = por %p85, %p86
      %s89 = sadd.s32 %s88, 1
      %p92 = scmp.eq.s32.totalorder %s12, 1
      %p93 = scmp.ne.s32.totalorder %s88, %s90
      %p94 = scmp.eq.s32.totalorder %s12, 0
      %p95 = por %p93, %p94
      %p96 = scmp.ne.s32.totalorder %s88, %s90
      %p97 = scmp.eq.s32.totalorder %s17, 1
      %p98 = por %p96, %p97
      %p99 = scmp.ne.s32.totalorder %s90, %s91
      %p100 = scmp.eq.s32.totalorder %s17, 0
      %p101 = por %p99, %p100
      %p102 = scmp.ne.s32.totalorder %s90, %s91
      %p103 = scmp.eq.s32.totalorder %s18, 1
      %p104 = por %p102, %p103
      %p106 = scmp.ne.s32.totalorder %s91, %s105
      %p107 = scmp.eq.s32.totalorder %s18, 0
      %p108 = por %p106, %p107
      %s110 = sadd.s32 %s109, 1
      %p113 = scmp.eq.s32.totalorder %s12, 1
      %p114 = scmp.ne.s32.totalorder %s109, %s111
      %p115 = scmp.eq.s32.totalorder %s12, 0
      %p116 = por %p114, %p115
      %p117 = scmp.ne.s32.totalorder %s109, %s111
      %p118 = scmp.eq.s32.totalorder %s17, 1
      %p119 = por %p117, %p118
      %p120 = scmp.ne.s32.totalorder %s111, %s112
      %p121 = scmp.eq.s32.totalorder %s17, 0
      %p122 = por %p120, %p121
      %p123 = scmp.ne.s32.totalorder %s111, %s112
      %p124 = scmp.eq.s32.totalorder %s18, 1
      %p125 = por %p123, %p124
      %p127 = scmp.ne.s32.totalorder %s112, %s126
      %p128 = scmp.eq.s32.totalorder %s18, 0
      %p129 = por %p127, %p128
      %s130 = ssub.s32 %s12, %s19
      %p131 = scmp.eq.s32.totalorder %s130, 0
      %s133 = sadd.s32 %s132, 1
      %s134 = scalar_select %p131, %s132, %s133
      %p137 = pneg %p131
      %p138 = scmp.eq.s32.totalorder %s12, 1
      %p139 = por %p137, %p138
      %p140 = scmp.ne.s32.totalorder %s132, %s135
      %p141 = scmp.eq.s32.totalorder %s12, 0
      %p142 = por %p140, %p141
      %p143 = scmp.ne.s32.totalorder %s132, %s135
      %p144 = scmp.eq.s32.totalorder %s17, 1
      %p145 = por %p143, %p144
      %p146 = scmp.ne.s32.totalorder %s135, %s136
      %p147 = scmp.eq.s32.totalorder %s17, 0
      %p148 = por %p146, %p147
      %p149 = scmp.ne.s32.totalorder %s135, %s136
      %p150 = scmp.eq.s32.totalorder %s18, 1
      %p151 = por %p149, %p150
      %p153 = scmp.ne.s32.totalorder %s136, %s152
      %p154 = scmp.eq.s32.totalorder %s18, 0
      %p155 = por %p153, %p154
      %p156 = scmp.le.s32.totalorder 1, %s12
      %p157 = scmp.lt.s32.totalorder %s12, 3
      %p158 = pnand %p156, %p157
      %p159 = pneg %p158
      // Predicated region
      $region9: #{forward.3} parent=5 // pred_check
        _
      $region10: #{forward.3} parent=5 // pred_check_branch
        %161 = sbr.rel (%p158) target = $region12
      $region11: #{forward.3} parent=5 // pred_region
        %s162 = ssub.s32 %s12, 1
        // Predicated region
        $region13: #{forward.3} parent=11 // pred_check
          %p163 = pneg %p59
        $region14: #{forward.3} parent=11 // pred_check_branch
          %165 = sbr.rel (%p163) target = $region16
        $region15: #{forward.3} parent=11 // pred_region
          _
        $region16: #{forward.3} parent=11 // pred_fallthru
          _
        // Predicated region
        $region17: #{forward.3} parent=11 // pred_check
          %p166 = pneg %p80
        $region18: #{forward.3} parent=11 // pred_check_branch
          %168 = sbr.rel (%p166) target = $region20
        $region19: #{forward.3} parent=11 // pred_region
          %170 = vsyncadd [#allocation4], 0
          %s171 = sshll.u32 %s2, 4
          %s172 = int_to_ptr.hbm [resolvable:$true] %s171
          %s173 = sshll.u32 [#allocation3], 4
          %s174 = int_to_ptr.vmem [resolvable:$true] %s173
          %179 = dma.hbm_to_vmem [thread:$0]  %s172, 6912, %s174, [#allocation4], 192, 192, 12
        $region20: #{forward.3} parent=11 // pred_fallthru
          _
        // Predicated region
        $region21: #{forward.3} parent=11 // pred_check
          %p180 = pneg %p101
        $region22: #{forward.3} parent=11 // pred_check_branch
          %182 = sbr.rel (%p180) target = $region24
        $region23: #{forward.3} parent=11 // pred_region
          _
        $region24: #{forward.3} parent=11 // pred_fallthru
          _
        // Predicated region
        $region25: #{forward.3} parent=11 // pred_check
          %p183 = pneg %p122
        $region26: #{forward.3} parent=11 // pred_check_branch
          %185 = sbr.rel (%p183) target = $region28
        $region27: #{forward.3} parent=11 // pred_region
          _
        $region28: #{forward.3} parent=11 // pred_fallthru
          _
      $region12: #{forward.3} parent=5 // pred_fallthru
        _
      %p186 = scmp.lt.s32.totalorder %s12, 2
      // Predicated region
      $region29: #{forward.3} parent=5 // pred_check
        %p187 = pneg %p186
      $region30: #{forward.3} parent=5 // pred_check_branch
        %189 = sbr.rel (%p187) target = $region32
      $region31: #{forward.3} parent=5 // pred_region
        // Predicated region
        $region33: #{forward.3} parent=31 // pred_check
          %p190 = pneg %p32
        $region34: #{forward.3} parent=31 // pred_check_branch
          %192 = sbr.rel (%p190) target = $region36
        $region35: #{forward.3} parent=31 // pred_region
          %p193 = scmp.lt.s32.totalorder %s12, 1
          %s194 = scalar_select %p193, %s12, 1
          %s195 = smul.addr %s194, 4
          %s196 = smul.addr %s195, 4
          %s197 = scalar_lea.vmem %s0, %s196
        $region36: #{forward.3} parent=31 // pred_fallthru
          _
      $region32: #{forward.3} parent=5 // pred_fallthru
        _
      %p198 = scmp.le.s32.totalorder 1, %s12
      %p199 = scmp.lt.s32.totalorder %s12, 3
      %p200 = pnand %p198, %p199
      %p201 = pneg %p200
      // Predicated region
      $region37: #{forward.3} parent=5 // pred_check
        _
      $region38: #{forward.3} parent=5 // pred_check_branch
        %203 = sbr.rel (%p200) target = $region40
      $region39: #{forward.3} parent=5 // pred_region
        %s204 = ssub.s32 %s12, 1
        // Predicated region
        $region41: #{forward.3} parent=39 // pred_check
          %p205 = pneg %p80
        $region42: #{forward.3} parent=39 // pred_check_branch
          %207 = sbr.rel (%p205) target = $region44
        $region43: #{forward.3} parent=39 // pred_region
          %209 = dma.done [#allocation4], 6912
        $region44: #{forward.3} parent=39 // pred_fallthru
          _
        %p210 = scmp.lt.s32.totalorder %s17, 1
        %s211 = scalar_select %p210, %s17, 1
        %s212 = smul.addr %s211, 4
        %s213 = smul.addr %s212, 4
        %s214 = scalar_lea.vmem %s0, %s213
        %p215 = pneg %p38
        %p216 = pneg %p35
        %p217 = pneg %p59
        %p218 = pneg %p56
        %p219 = pneg %p80
        %p220 = pneg %p77
        %p221 = pneg %p101
        %p222 = pneg %p98
        %p223 = pneg %p122
        %p224 = pneg %p119
        %p225 = pneg %p148
        %p226 = pneg %p145
        %p227 = scmp.lt.s32.totalorder %s17, 1
        %s228 = scalar_select %p227, %s17, 1
        %s229 = smul.addr %s228, 6
        %s230 = smul.addr %s229, 4
        %s231 = scalar_lea.vmem %s5, %s230
        %p232 = scmp.lt.s32.totalorder %s17, 1
        %s233 = scalar_select %p232, %s17, 1
        %s234 = smul.addr %s233, 4
        %s235 = smul.addr %s234, 4
        %s236 = scalar_lea.vmem %s0, %s235
        %p237 = scmp.lt.s32.totalorder %s17, 1
        %s238 = scalar_select %p237, %s17, 1
        %s239 = smul.addr %s238, 6
        %s240 = smul.addr %s239, 4
        %s241 = scalar_lea.vmem %s5, %s240
        %v243 = vld [vmem:[%s236] sm:$0xf]
        %v244 = vld [vmem:[%s236 + $0x4] sm:$0xf]
        %v245 = vld [vmem:[%s236 + $0x8] sm:$0xf]
        %v246 = vld [vmem:[%s236 + $0xc] sm:$0x7]
        %v247 = vld [vmem:[%s1] sm:$0xff]
        %v248 = vld [vmem:[%s1 + $0x8] sm:$0xf]
        %v249 = vld [vmem:[%s1 + $0xc] sm:$0xff]
        %v250 = vld [vmem:[%s1 + $0x14] sm:$0xf]
        %v251 = vld [vmem:[%s1 + $0x18] sm:$0xff]
        %v252 = vld [vmem:[%s1 + $0x20] sm:$0xf]
        %v253 = vld [vmem:[%s1 + $0x24] sm:$0xff]
        %v254 = vld [vmem:[%s1 + $0x2c] sm:$0xf]
        %v255 = vld [vmem:[%s1 + $0x30] sm:$0xff]
        %v256 = vld [vmem:[%s1 + $0x38] sm:$0xf]
        %v257 = vld [vmem:[%s1 + $0x3c] sm:$0xff]
        %v258 = vld [vmem:[%s1 + $0x44] sm:$0xf]
        %v259 = vld [vmem:[%s1 + $0x48] sm:$0xff]
        %v260 = vld [vmem:[%s1 + $0x50] sm:$0xf]
        %v261 = vld [vmem:[%s1 + $0x54] sm:$0xff]
        %v262 = vld [vmem:[%s1 + $0x5c] sm:$0xf]
        %v263 = vld [vmem:[%s1 + $0x60] sm:$0xff]
        %v264 = vld [vmem:[%s1 + $0x68] sm:$0xf]
        %v265 = vld [vmem:[%s1 + $0x6c] sm:$0xff]
        %v266 = vld [vmem:[%s1 + $0x74] sm:$0xf]
        %v267 = vld [vmem:[%s1 + $0x78] sm:$0xff]
        %v268 = vld [vmem:[%s1 + $0x80] sm:$0xf]
        %v269 = vld [vmem:[%s1 + $0x84] sm:$0xff]
        %v270 = vld [vmem:[%s1 + $0x8c] sm:$0xf]
        %v271 = vld [vmem:[#allocation3] sm:$0xff]
        %v272 = vld [vmem:[#allocation3 + $0x8] sm:$0xf]
        %v273 = vld [vmem:[#allocation3 + $0xc] sm:$0xff]
        %v274 = vld [vmem:[#allocation3 + $0x14] sm:$0xf]
        %v275 = vld [vmem:[#allocation3 + $0x18] sm:$0xff]
        %v276 = vld [vmem:[#allocation3 + $0x20] sm:$0xf]
        %v277 = vld [vmem:[#allocation3 + $0x24] sm:$0xff]
        %v278 = vld [vmem:[#allocation3 + $0x2c] sm:$0xf]
        %v279 = vld [vmem:[#allocation3 + $0x30] sm:$0xff]
        %v280 = vld [vmem:[#allocation3 + $0x38] sm:$0xf]
        %v281 = vld [vmem:[#allocation3 + $0x3c] sm:$0xff]
        %v282 = vld [vmem:[#allocation3 + $0x44] sm:$0xf]
        %v283 = vld [vmem:[#allocation3 + $0x48] sm:$0xff]
        %v284 = vld [vmem:[#allocation3 + $0x50] sm:$0xf]
        %v285 = vld [vmem:[#allocation3 + $0x54] sm:$0xff]
        %v286 = vld [vmem:[#allocation3 + $0x5c] sm:$0xf]
        %v287 = vld [vmem:[#allocation3 + $0x60] sm:$0xff]
        %v288 = vld [vmem:[#allocation3 + $0x68] sm:$0xf]
        %v289 = vld [vmem:[#allocation3 + $0x6c] sm:$0xff]
        %v290 = vld [vmem:[#allocation3 + $0x74] sm:$0xf]
        %v291 = vld [vmem:[#allocation3 + $0x78] sm:$0xff]
        %v292 = vld [vmem:[#allocation3 + $0x80] sm:$0xf]
        %v293 = vld [vmem:[#allocation3 + $0x84] sm:$0xff]
        %v294 = vld [vmem:[#allocation3 + $0x8c] sm:$0xf]
        %v295 = vld [vmem:[%s236 + $0xc] sm:$0xf]
        %s296 = scalar_lea.vmem %s1, 144
        %v297 = vld [vmem:[%s296] sm:$0xff]
        %v298 = vld [vmem:[%s296 + $0x8] sm:$0xf]
        %v299 = vld [vmem:[%s296 + $0xc] sm:$0xff]
        %v300 = vld [vmem:[%s296 + $0x14] sm:$0xf]
        %v301 = vld [vmem:[%s296 + $0x18] sm:$0xff]
        %v302 = vld [vmem:[%s296 + $0x20] sm:$0xf]
        %v303 = vld [vmem:[%s296 + $0x24] sm:$0xff]
        %v304 = vld [vmem:[%s296 + $0x2c] sm:$0xf]
        %v305 = vld [vmem:[%s296 + $0x30] sm:$0xff]
        %v306 = vld [vmem:[%s296 + $0x38] sm:$0xf]
        %v307 = vld [vmem:[%s296 + $0x3c] sm:$0xff]
        %v308 = vld [vmem:[%s296 + $0x44] sm:$0xf]
        %v309 = vld [vmem:[%s296 + $0x48] sm:$0xff]
        %v310 = vld [vmem:[%s296 + $0x50] sm:$0xf]
        %v311 = vld [vmem:[%s296 + $0x54] sm:$0xff]
        %v312 = vld [vmem:[%s296 + $0x5c] sm:$0xf]
        %v313 = vld [vmem:[%s296 + $0x60] sm:$0xff]
        %v314 = vld [vmem:[%s296 + $0x68] sm:$0xf]
        %v315 = vld [vmem:[%s296 + $0x6c] sm:$0xff]
        %v316 = vld [vmem:[%s296 + $0x74] sm:$0xf]
        %v317 = vld [vmem:[%s296 + $0x78] sm:$0xff]
        %v318 = vld [vmem:[%s296 + $0x80] sm:$0xf]
        %v319 = vld [vmem:[%s296 + $0x84] sm:$0xff]
        %v320 = vld [vmem:[%s296 + $0x8c] sm:$0xf]
        %v325 = vunpack.c.l.b16 %v243
        %v326 = vunpack.c.l.b16 %v244
        %v327 = vunpack.c.l.b16 %v245
        %v328 = vunpack.c.l.b16 %v295
        %v329 = vpack.c.b16 %v326, %v325
        %v330 = vpack.c.b16 %v328, %v327
        %vm331 = vsmask.f32 7424
        %v333 = vshrl.u32 %v329, 16
        %v335 = vshll.u32 %v329, 16
        %v337 = vrot.slane %v335, 1
        %v338 = vor.u32 %v333, %v337
        %v340 = vshll.u32 %v330, 16
        %v342 = vrot.slane %v340, 1
        %v343 = vsel %vm331, %v338, %v342
        %v344 = vshrl.u32 %v330, 16
        %v346 = vor.u32 %v344, %v342
        %v371 = vunpack.c.l.b16 %v297
        %v372 = vunpack.c.h.b16 %v297
        %v373 = vunpack.c.l.b16 %v298
        %v374 = vunpack.c.l.b16 %v299
        %v375 = vunpack.c.h.b16 %v299
        %v376 = vunpack.c.l.b16 %v300
        %v377 = vunpack.c.l.b16 %v301
        %v378 = vunpack.c.h.b16 %v301
        %v379 = vunpack.c.l.b16 %v302
        %v380 = vunpack.c.l.b16 %v303
        %v381 = vunpack.c.h.b16 %v303
        %v382 = vunpack.c.l.b16 %v304
        %v383 = vunpack.c.l.b16 %v305
        %v384 = vunpack.c.h.b16 %v305
        %v385 = vunpack.c.l.b16 %v306
        %v386 = vunpack.c.l.b16 %v307
        %v387 = vunpack.c.h.b16 %v307
        %v388 = vunpack.c.l.b16 %v308
        %v389 = vunpack.c.l.b16 %v309
        %v390 = vunpack.c.h.b16 %v309
        %v391 = vunpack.c.l.b16 %v310
        %v392 = vunpack.c.l.b16 %v311
        %v393 = vunpack.c.h.b16 %v311
        %v394 = vunpack.c.l.b16 %v312
        %v395 = vunpack.c.l.b16 %v313
        %v396 = vunpack.c.h.b16 %v313
        %v397 = vunpack.c.l.b16 %v314
        %v398 = vunpack.c.l.b16 %v315
        %v399 = vunpack.c.h.b16 %v315
        %v400 = vunpack.c.l.b16 %v316
        %v401 = vunpack.c.l.b16 %v317
        %v402 = vunpack.c.h.b16 %v317
        %v403 = vunpack.c.l.b16 %v318
        %v404 = vunpack.c.l.b16 %v319
        %v405 = vunpack.c.h.b16 %v319
        %v406 = vunpack.c.l.b16 %v320
        %v407 = vpack.c.b16 %v374, %v371
        %v408 = vpack.c.b16 %v375, %v372
        %v409 = vpack.c.b16 %v376, %v373
        %v410 = vpack.c.b16 %v380, %v377
        %v411 = vpack.c.b16 %v381, %v378
        %v412 = vpack.c.b16 %v382, %v379
        %v413 = vpack.c.b16 %v386, %v383
        %v414 = vpack.c.b16 %v387, %v384
        %v415 = vpack.c.b16 %v388, %v385
        %v416 = vpack.c.b16 %v392, %v389
        %v417 = vpack.c.b16 %v393, %v390
        %v418 = vpack.c.b16 %v394, %v391
        %v419 = vpack.c.b16 %v398, %v395
        %v420 = vpack.c.b16 %v399, %v396
        %v421 = vpack.c.b16 %v400, %v397
        %v422 = vpack.c.b16 %v404, %v401
        %v423 = vpack.c.b16 %v405, %v402
        %v424 = vpack.c.b16 %v406, %v403
        %vm443 = vcmask 785408
        %v445 = vsel %vm443, %v343, 0
        %v448 = vsel %vm443, %v346, 0
        %450 = vmatpush.bf16.msra.mxu0 0
        %451 = vmatpush.bf16.msra.mxu0 0
        %452 = vmatpush.bf16.msra.mxu0 %v422
        %453 = vmatpush.bf16.msra.mxu0 %v419
        %454 = vmatpush.bf16.msra.mxu0 %v416
        %455 = vmatpush.bf16.msra.mxu0 %v413
        %456 = vmatpush.bf16.msra.mxu0 %v410
        %457 = vmatpush.bf16.msra.mxu0 %v407
        %458 = vmatmul.bf16.gmra.mxu0 %v445
        %v459 = vpop.f32.mrf.mxu0
        %v460 = vadd.f32 0.0, %v459
        %v461 = vpop.f32.mrf.mxu0
        %v462 = vadd.f32 0.0, %v461
        %463 = vmatmul.bf16.gmra.mxu0 %v448
        %v464 = vpop.f32.mrf.mxu0
        %v465 = vadd.f32 0.0, %v464
        %v466 = vpop.f32.mrf.mxu0
        %v467 = vadd.f32 0.0, %v466
        %468 = vdwg.mxu0
        %469 = vmatpush.bf16.msra.mxu0 0
        %470 = vmatpush.bf16.msra.mxu0 0
        %471 = vmatpush.bf16.msra.mxu0 %v423
        %472 = vmatpush.bf16.msra.mxu0 %v420
        %473 = vmatpush.bf16.msra.mxu0 %v417
        %474 = vmatpush.bf16.msra.mxu0 %v414
        %475 = vmatpush.bf16.msra.mxu0 %v411
        %476 = vmatpush.bf16.msra.mxu0 %v408
        %477 = vmatmul.bf16.gmra.mxu0 %v445
        %v478 = vpop.f32.mrf.mxu0
        %v479 = vadd.f32 0.0, %v478
        %v480 = vpop.f32.mrf.mxu0
        %v481 = vadd.f32 0.0, %v480
        %482 = vmatmul.bf16.gmra.mxu0 %v448
        %v483 = vpop.f32.mrf.mxu0
        %v484 = vadd.f32 0.0, %v483
        %v485 = vpop.f32.mrf.mxu0
        %v486 = vadd.f32 0.0, %v485
        %487 = vdwg.mxu0
        %488 = vmatpush.bf16.msra.mxu0 0
        %489 = vmatpush.bf16.msra.mxu0 0
        %490 = vmatpush.bf16.msra.mxu0 %v424
        %491 = vmatpush.bf16.msra.mxu0 %v421
        %492 = vmatpush.bf16.msra.mxu0 %v418
        %493 = vmatpush.bf16.msra.mxu0 %v415
        %494 = vmatpush.bf16.msra.mxu0 %v412
        %495 = vmatpush.bf16.msra.mxu0 %v409
        %496 = vmatmul.bf16.gmra.mxu0 %v445
        %v497 = vpop.f32.mrf.mxu0
        %v498 = vadd.f32 0.0, %v497
        %v499 = vpop.f32.mrf.mxu0
        %v500 = vadd.f32 0.0, %v499
        %501 = vmatmul.bf16.gmra.mxu0 %v448
        %v502 = vpop.f32.mrf.mxu0
        %v503 = vadd.f32 0.0, %v502
        %v504 = vpop.f32.mrf.mxu0
        %v505 = vadd.f32 0.0, %v504
        %506 = vdwg.mxu0
        %v508 = vunpack.c.l.b16 %v246
        %v509 = vpack.c.b16 %v508, %v327
        %v534 = vunpack.c.l.b16 %v247
        %v535 = vunpack.c.h.b16 %v247
        %v536 = vunpack.c.l.b16 %v248
        %v537 = vunpack.c.l.b16 %v249
        %v538 = vunpack.c.h.b16 %v249
        %v539 = vunpack.c.l.b16 %v250
        %v540 = vunpack.c.l.b16 %v251
        %v541 = vunpack.c.h.b16 %v251
        %v542 = vunpack.c.l.b16 %v252
        %v543 = vunpack.c.l.b16 %v253
        %v544 = vunpack.c.h.b16 %v253
        %v545 = vunpack.c.l.b16 %v254
        %v546 = vunpack.c.l.b16 %v255
        %v547 = vunpack.c.h.b16 %v255
        %v548 = vunpack.c.l.b16 %v256
        %v549 = vunpack.c.l.b16 %v257
        %v550 = vunpack.c.h.b16 %v257
        %v551 = vunpack.c.l.b16 %v258
        %v552 = vunpack.c.l.b16 %v259
        %v553 = vunpack.c.h.b16 %v259
        %v554 = vunpack.c.l.b16 %v260
        %v555 = vunpack.c.l.b16 %v261
        %v556 = vunpack.c.h.b16 %v261
        %v557 = vunpack.c.l.b16 %v262
        %v558 = vunpack.c.l.b16 %v263
        %v559 = vunpack.c.h.b16 %v263
        %v560 = vunpack.c.l.b16 %v264
        %v561 = vunpack.c.l.b16 %v265
        %v562 = vunpack.c.h.b16 %v265
        %v563 = vunpack.c.l.b16 %v266
        %v564 = vunpack.c.l.b16 %v267
        %v565 = vunpack.c.h.b16 %v267
        %v566 = vunpack.c.l.b16 %v268
        %v567 = vunpack.c.l.b16 %v269
        %v568 = vunpack.c.h.b16 %v269
        %v569 = vunpack.c.l.b16 %v270
        %v570 = vpack.c.b16 %v537, %v534
        %v571 = vpack.c.b16 %v538, %v535
        %v572 = vpack.c.b16 %v539, %v536
        %v573 = vpack.c.b16 %v543, %v540
        %v574 = vpack.c.b16 %v544, %v541
        %v575 = vpack.c.b16 %v545, %v542
        %v576 = vpack.c.b16 %v549, %v546
        %v577 = vpack.c.b16 %v550, %v547
        %v578 = vpack.c.b16 %v551, %v548
        %v579 = vpack.c.b16 %v555, %v552
        %v580 = vpack.c.b16 %v556, %v553
        %v581 = vpack.c.b16 %v557, %v554
        %v582 = vpack.c.b16 %v561, %v558
        %v583 = vpack.c.b16 %v562, %v559
        %v584 = vpack.c.b16 %v563, %v560
        %v585 = vpack.c.b16 %v567, %v564
        %v586 = vpack.c.b16 %v568, %v565
        %v587 = vpack.c.b16 %v569, %v566
        %v606 = vsel %vm443, %v329, 0
        %v609 = vsel %vm443, %v509, 0
        %611 = vmatpush.bf16.msra.mxu0 0
        %612 = vmatpush.bf16.msra.mxu0 0
        %613 = vmatpush.bf16.msra.mxu0 %v585
        %614 = vmatpush.bf16.msra.mxu0 %v582
        %615 = vmatpush.bf16.msra.mxu0 %v579
        %616 = vmatpush.bf16.msra.mxu0 %v576
        %617 = vmatpush.bf16.msra.mxu0 %v573
        %618 = vmatpush.bf16.msra.mxu0 %v570
        %619 = vmatmul.bf16.gmra.mxu0 %v606
        %v620 = vpop.f32.mrf.mxu0
        %v621 = vadd.f32 %v460, %v620
        %v622 = vpop.f32.mrf.mxu0
        %v623 = vadd.f32 %v462, %v622
        %624 = vmatmul.bf16.gmra.mxu0 %v609
        %v625 = vpop.f32.mrf.mxu0
        %v626 = vadd.f32 %v465, %v625
        %v627 = vpop.f32.mrf.mxu0
        %v628 = vadd.f32 %v467, %v627
        %629 = vdwg.mxu0
        %630 = vmatpush.bf16.msra.mxu0 0
        %631 = vmatpush.bf16.msra.mxu0 0
        %632 = vmatpush.bf16.msra.mxu0 %v586
        %633 = vmatpush.bf16.msra.mxu0 %v583
        %634 = vmatpush.bf16.msra.mxu0 %v580
        %635 = vmatpush.bf16.msra.mxu0 %v577
        %636 = vmatpush.bf16.msra.mxu0 %v574
        %637 = vmatpush.bf16.msra.mxu0 %v571
        %638 = vmatmul.bf16.gmra.mxu0 %v606
        %v639 = vpop.f32.mrf.mxu0
        %v640 = vadd.f32 %v479, %v639
        %v641 = vpop.f32.mrf.mxu0
        %v642 = vadd.f32 %v481, %v641
        %643 = vmatmul.bf16.gmra.mxu0 %v609
        %v644 = vpop.f32.mrf.mxu0
        %v645 = vadd.f32 %v484, %v644
        %v646 = vpop.f32.mrf.mxu0
        %v647 = vadd.f32 %v486, %v646
        %648 = vdwg.mxu0
        %649 = vmatpush.bf16.msra.mxu0 0
        %650 = vmatpush.bf16.msra.mxu0 0
        %651 = vmatpush.bf16.msra.mxu0 %v587
        %652 = vmatpush.bf16.msra.mxu0 %v584
        %653 = vmatpush.bf16.msra.mxu0 %v581
        %654 = vmatpush.bf16.msra.mxu0 %v578
        %655 = vmatpush.bf16.msra.mxu0 %v575
        %656 = vmatpush.bf16.msra.mxu0 %v572
        %657 = vmatmul.bf16.gmra.mxu0 %v606
        %v658 = vpop.f32.mrf.mxu0
        %v659 = vadd.f32 %v498, %v658
        %v660 = vpop.f32.mrf.mxu0
        %v661 = vadd.f32 %v500, %v660
        %662 = vmatmul.bf16.gmra.mxu0 %v609
        %v663 = vpop.f32.mrf.mxu0
        %v664 = vadd.f32 %v503, %v663
        %v665 = vpop.f32.mrf.mxu0
        %v666 = vadd.f32 %v505, %v665
        %667 = vdwg.mxu0
        %s668 = scalar_lea.vmem [#allocation3], 144
        %v669 = vld [vmem:[%s668] sm:$0xff]
        %v670 = vld [vmem:[%s668 + $0x8] sm:$0xf]
        %v671 = vld [vmem:[%s668 + $0xc] sm:$0xff]
        %v672 = vld [vmem:[%s668 + $0x14] sm:$0xf]
        %v673 = vld [vmem:[%s668 + $0x18] sm:$0xff]
        %v674 = vld [vmem:[%s668 + $0x20] sm:$0xf]
        %v675 = vld [vmem:[%s668 + $0x24] sm:$0xff]
        %v676 = vld [vmem:[%s668 + $0x2c] sm:$0xf]
        %v677 = vld [vmem:[%s668 + $0x30] sm:$0xff]
        %v678 = vld [vmem:[%s668 + $0x38] sm:$0xf]
        %v679 = vld [vmem:[%s668 + $0x3c] sm:$0xff]
        %v680 = vld [vmem:[%s668 + $0x44] sm:$0xf]
        %v681 = vld [vmem:[%s668 + $0x48] sm:$0xff]
        %v682 = vld [vmem:[%s668 + $0x50] sm:$0xf]
        %v683 = vld [vmem:[%s668 + $0x54] sm:$0xff]
        %v684 = vld [vmem:[%s668 + $0x5c] sm:$0xf]
        %v685 = vld [vmem:[%s668 + $0x60] sm:$0xff]
        %v686 = vld [vmem:[%s668 + $0x68] sm:$0xf]
        %v687 = vld [vmem:[%s668 + $0x6c] sm:$0xff]
        %v688 = vld [vmem:[%s668 + $0x74] sm:$0xf]
        %v689 = vld [vmem:[%s668 + $0x78] sm:$0xff]
        %v690 = vld [vmem:[%s668 + $0x80] sm:$0xf]
        %v691 = vld [vmem:[%s668 + $0x84] sm:$0xff]
        %v692 = vld [vmem:[%s668 + $0x8c] sm:$0xf]
        %v717 = vunpack.c.l.b16 %v669
        %v718 = vunpack.c.h.b16 %v669
        %v719 = vunpack.c.l.b16 %v670
        %v720 = vunpack.c.l.b16 %v671
        %v721 = vunpack.c.h.b16 %v671
        %v722 = vunpack.c.l.b16 %v672
        %v723 = vunpack.c.l.b16 %v673
        %v724 = vunpack.c.h.b16 %v673
        %v725 = vunpack.c.l.b16 %v674
        %v726 = vunpack.c.l.b16 %v675
        %v727 = vunpack.c.h.b16 %v675
        %v728 = vunpack.c.l.b16 %v676
        %v729 = vunpack.c.l.b16 %v677
        %v730 = vunpack.c.h.b16 %v677
        %v731 = vunpack.c.l.b16 %v678
        %v732 = vunpack.c.l.b16 %v679
        %v733 = vunpack.c.h.b16 %v679
        %v734 = vunpack.c.l.b16 %v680
        %v735 = vunpack.c.l.b16 %v681
        %v736 = vunpack.c.h.b16 %v681
        %v737 = vunpack.c.l.b16 %v682
        %v738 = vunpack.c.l.b16 %v683
        %v739 = vunpack.c.h.b16 %v683
        %v740 = vunpack.c.l.b16 %v684
        %v741 = vunpack.c.l.b16 %v685
        %v742 = vunpack.c.h.b16 %v685
        %v743 = vunpack.c.l.b16 %v686
        %v744 = vunpack.c.l.b16 %v687
        %v745 = vunpack.c.h.b16 %v687
        %v746 = vunpack.c.l.b16 %v688
        %v747 = vunpack.c.l.b16 %v689
        %v748 = vunpack.c.h.b16 %v689
        %v749 = vunpack.c.l.b16 %v690
        %v750 = vunpack.c.l.b16 %v691
        %v751 = vunpack.c.h.b16 %v691
        %v752 = vunpack.c.l.b16 %v692
        %v753 = vpack.c.b16 %v720, %v717
        %v754 = vpack.c.b16 %v721, %v718
        %v755 = vpack.c.b16 %v722, %v719
        %v756 = vpack.c.b16 %v726, %v723
        %v757 = vpack.c.b16 %v727, %v724
        %v758 = vpack.c.b16 %v728, %v725
        %v759 = vpack.c.b16 %v732, %v729
        %v760 = vpack.c.b16 %v733, %v730
        %v761 = vpack.c.b16 %v734, %v731
        %v762 = vpack.c.b16 %v738, %v735
        %v763 = vpack.c.b16 %v739, %v736
        %v764 = vpack.c.b16 %v740, %v737
        %v765 = vpack.c.b16 %v744, %v741
        %v766 = vpack.c.b16 %v745, %v742
        %v767 = vpack.c.b16 %v746, %v743
        %v768 = vpack.c.b16 %v750, %v747
        %v769 = vpack.c.b16 %v751, %v748
        %v770 = vpack.c.b16 %v752, %v749
        %789 = vmatpush.bf16.msra.mxu0 0
        %790 = vmatpush.bf16.msra.mxu0 0
        %791 = vmatpush.bf16.msra.mxu0 %v768
        %792 = vmatpush.bf16.msra.mxu0 %v765
        %793 = vmatpush.bf16.msra.mxu0 %v762
        %794 = vmatpush.bf16.msra.mxu0 %v759
        %795 = vmatpush.bf16.msra.mxu0 %v756
        %796 = vmatpush.bf16.msra.mxu0 %v753
        %797 = vmatmul.bf16.gmra.mxu0 %v445
        %v798 = vpop.f32.mrf.mxu0
        %v799 = vadd.f32 0.0, %v798
        %v800 = vpop.f32.mrf.mxu0
        %v801 = vadd.f32 0.0, %v800
        %802 = vmatmul.bf16.gmra.mxu0 %v448
        %v803 = vpop.f32.mrf.mxu0
        %v804 = vadd.f32 0.0, %v803
        %v805 = vpop.f32.mrf.mxu0
        %v806 = vadd.f32 0.0, %v805
        %807 = vdwg.mxu0
        %808 = vmatpush.bf16.msra.mxu0 0
        %809 = vmatpush.bf16.msra.mxu0 0
        %810 = vmatpush.bf16.msra.mxu0 %v769
        %811 = vmatpush.bf16.msra.mxu0 %v766
        %812 = vmatpush.bf16.msra.mxu0 %v763
        %813 = vmatpush.bf16.msra.mxu0 %v760
        %814 = vmatpush.bf16.msra.mxu0 %v757
        %815 = vmatpush.bf16.msra.mxu0 %v754
        %816 = vmatmul.bf16.gmra.mxu0 %v445
        %v817 = vpop.f32.mrf.mxu0
        %v818 = vadd.f32 0.0, %v817
        %v819 = vpop.f32.mrf.mxu0
        %v820 = vadd.f32 0.0, %v819
        %821 = vmatmul.bf16.gmra.mxu0 %v448
        %v822 = vpop.f32.mrf.mxu0
        %v823 = vadd.f32 0.0, %v822
        %v824 = vpop.f32.mrf.mxu0
        %v825 = vadd.f32 0.0, %v824
        %826 = vdwg.mxu0
        %827 = vmatpush.bf16.msra.mxu0 0
        %828 = vmatpush.bf16.msra.mxu0 0
        %829 = vmatpush.bf16.msra.mxu0 %v770
        %830 = vmatpush.bf16.msra.mxu0 %v767
        %831 = vmatpush.bf16.msra.mxu0 %v764
        %832 = vmatpush.bf16.msra.mxu0 %v761
        %833 = vmatpush.bf16.msra.mxu0 %v758
        %834 = vmatpush.bf16.msra.mxu0 %v755
        %835 = vmatmul.bf16.gmra.mxu0 %v445
        %v836 = vpop.f32.mrf.mxu0
        %v837 = vadd.f32 0.0, %v836
        %v838 = vpop.f32.mrf.mxu0
        %v839 = vadd.f32 0.0, %v838
        %840 = vmatmul.bf16.gmra.mxu0 %v448
        %v841 = vpop.f32.mrf.mxu0
        %v842 = vadd.f32 0.0, %v841
        %v843 = vpop.f32.mrf.mxu0
        %v844 = vadd.f32 0.0, %v843
        %845 = vdwg.mxu0
        %v870 = vunpack.c.l.b16 %v271
        %v871 = vunpack.c.h.b16 %v271
        %v872 = vunpack.c.l.b16 %v272
        %v873 = vunpack.c.l.b16 %v273
        %v874 = vunpack.c.h.b16 %v273
        %v875 = vunpack.c.l.b16 %v274
        %v876 = vunpack.c.l.b16 %v275
        %v877 = vunpack.c.h.b16 %v275
        %v878 = vunpack.c.l.b16 %v276
        %v879 = vunpack.c.l.b16 %v277
        %v880 = vunpack.c.h.b16 %v277
        %v881 = vunpack.c.l.b16 %v278
        %v882 = vunpack.c.l.b16 %v279
        %v883 = vunpack.c.h.b16 %v279
        %v884 = vunpack.c.l.b16 %v280
        %v885 = vunpack.c.l.b16 %v281
        %v886 = vunpack.c.h.b16 %v281
        %v887 = vunpack.c.l.b16 %v282
        %v888 = vunpack.c.l.b16 %v283
        %v889 = vunpack.c.h.b16 %v283
        %v890 = vunpack.c.l.b16 %v284
        %v891 = vunpack.c.l.b16 %v285
        %v892 = vunpack.c.h.b16 %v285
        %v893 = vunpack.c.l.b16 %v286
        %v894 = vunpack.c.l.b16 %v287
        %v895 = vunpack.c.h.b16 %v287
        %v896 = vunpack.c.l.b16 %v288
        %v897 = vunpack.c.l.b16 %v289
        %v898 = vunpack.c.h.b16 %v289
        %v899 = vunpack.c.l.b16 %v290
        %v900 = vunpack.c.l.b16 %v291
        %v901 = vunpack.c.h.b16 %v291
        %v902 = vunpack.c.l.b16 %v292
        %v903 = vunpack.c.l.b16 %v293
        %v904 = vunpack.c.h.b16 %v293
        %v905 = vunpack.c.l.b16 %v294
        %v906 = vpack.c.b16 %v873, %v870
        %v907 = vpack.c.b16 %v874, %v871
        %v908 = vpack.c.b16 %v875, %v872
        %v909 = vpack.c.b16 %v879, %v876
        %v910 = vpack.c.b16 %v880, %v877
        %v911 = vpack.c.b16 %v881, %v878
        %v912 = vpack.c.b16 %v885, %v882
        %v913 = vpack.c.b16 %v886, %v883
        %v914 = vpack.c.b16 %v887, %v884
        %v915 = vpack.c.b16 %v891, %v888
        %v916 = vpack.c.b16 %v892, %v889
        %v917 = vpack.c.b16 %v893, %v890
        %v918 = vpack.c.b16 %v897, %v894
        %v919 = vpack.c.b16 %v898, %v895
        %v920 = vpack.c.b16 %v899, %v896
        %v921 = vpack.c.b16 %v903, %v900
        %v922 = vpack.c.b16 %v904, %v901
        %v923 = vpack.c.b16 %v905, %v902
        %942 = vmatpush.bf16.msra.mxu0 0
        %943 = vmatpush.bf16.msra.mxu0 0
        %944 = vmatpush.bf16.msra.mxu0 %v921
        %945 = vmatpush.bf16.msra.mxu0 %v918
        %946 = vmatpush.bf16.msra.mxu0 %v915
        %947 = vmatpush.bf16.msra.mxu0 %v912
        %948 = vmatpush.bf16.msra.mxu0 %v909
        %949 = vmatpush.bf16.msra.mxu0 %v906
        %950 = vmatmul.bf16.gmra.mxu0 %v606
        %v951 = vpop.f32.mrf.mxu0
        %v952 = vadd.f32 %v799, %v951
        %v953 = vpop.f32.mrf.mxu0
        %v954 = vadd.f32 %v801, %v953
        %955 = vmatmul.bf16.gmra.mxu0 %v609
        %v956 = vpop.f32.mrf.mxu0
        %v957 = vadd.f32 %v804, %v956
        %v958 = vpop.f32.mrf.mxu0
        %v959 = vadd.f32 %v806, %v958
        %960 = vdwg.mxu0
        %961 = vmatpush.bf16.msra.mxu0 0
        %962 = vmatpush.bf16.msra.mxu0 0
        %963 = vmatpush.bf16.msra.mxu0 %v922
        %964 = vmatpush.bf16.msra.mxu0 %v919
        %965 = vmatpush.bf16.msra.mxu0 %v916
        %966 = vmatpush.bf16.msra.mxu0 %v913
        %967 = vmatpush.bf16.msra.mxu0 %v910
        %968 = vmatpush.bf16.msra.mxu0 %v907
        %969 = vmatmul.bf16.gmra.mxu0 %v606
        %v970 = vpop.f32.mrf.mxu0
        %v971 = vadd.f32 %v818, %v970
        %v972 = vpop.f32.mrf.mxu0
        %v973 = vadd.f32 %v820, %v972
        %974 = vmatmul.bf16.gmra.mxu0 %v609
        %v975 = vpop.f32.mrf.mxu0
        %v976 = vadd.f32 %v823, %v975
        %v977 = vpop.f32.mrf.mxu0
        %v978 = vadd.f32 %v825, %v977
        %979 = vdwg.mxu0
        %980 = vmatpush.bf16.msra.mxu0 0
        %981 = vmatpush.bf16.msra.mxu0 0
        %982 = vmatpush.bf16.msra.mxu0 %v923
        %983 = vmatpush.bf16.msra.mxu0 %v920
        %984 = vmatpush.bf16.msra.mxu0 %v917
        %985 = vmatpush.bf16.msra.mxu0 %v914
        %986 = vmatpush.bf16.msra.mxu0 %v911
        %987 = vmatpush.bf16.msra.mxu0 %v908
        %988 = vmatmul.bf16.gmra.mxu0 %v606
        %v989 = vpop.f32.mrf.mxu0
        %v990 = vadd.f32 %v837, %v989
        %v991 = vpop.f32.mrf.mxu0
        %v992 = vadd.f32 %v839, %v991
        %993 = vmatmul.bf16.gmra.mxu0 %v609
        %v994 = vpop.f32.mrf.mxu0
        %v995 = vadd.f32 %v842, %v994
        %v996 = vpop.f32.mrf.mxu0
        %v997 = vadd.f32 %v844, %v996
        %998 = vdwg.mxu0
        %v999 = vld [vmem:[%s236] sm:$0xe]
        %s1000 = scalar_lea.vmem %s1, 288
        %v1001 = vld [vmem:[%s1000] sm:$0xff]
        %v1002 = vld [vmem:[%s1000 + $0x8] sm:$0xf]
        %v1003 = vld [vmem:[%s1000 + $0xc] sm:$0xff]
        %v1004 = vld [vmem:[%s1000 + $0x14] sm:$0xf]
        %v1005 = vld [vmem:[%s1000 + $0x18] sm:$0xff]
        %v1006 = vld [vmem:[%s1000 + $0x20] sm:$0xf]
        %v1007 = vld [vmem:[%s1000 + $0x24] sm:$0xff]
        %v1008 = vld [vmem:[%s1000 + $0x2c] sm:$0xf]
        %v1009 = vld [vmem:[%s1000 + $0x30] sm:$0xff]
        %v1010 = vld [vmem:[%s1000 + $0x38] sm:$0xf]
        %v1011 = vld [vmem:[%s1000 + $0x3c] sm:$0xff]
        %v1012 = vld [vmem:[%s1000 + $0x44] sm:$0xf]
        %v1013 = vld [vmem:[%s1000 + $0x48] sm:$0xff]
        %v1014 = vld [vmem:[%s1000 + $0x50] sm:$0xf]
        %v1015 = vld [vmem:[%s1000 + $0x54] sm:$0xff]
        %v1016 = vld [vmem:[%s1000 + $0x5c] sm:$0xf]
        %v1017 = vld [vmem:[%s1000 + $0x60] sm:$0xff]
        %v1018 = vld [vmem:[%s1000 + $0x68] sm:$0xf]
        %v1019 = vld [vmem:[%s1000 + $0x6c] sm:$0xff]
        %v1020 = vld [vmem:[%s1000 + $0x74] sm:$0xf]
        %v1021 = vld [vmem:[%s1000 + $0x78] sm:$0xff]
        %v1022 = vld [vmem:[%s1000 + $0x80] sm:$0xf]
        %v1023 = vld [vmem:[%s1000 + $0x84] sm:$0xff]
        %v1024 = vld [vmem:[%s1000 + $0x8c] sm:$0xf]
        %v1026 = vunpack.c.l.b16 %v999
        %v1027 = vpack.c.b16 %v326, %v1026
        %vm1028 = vcmask 1046528
        %v1029 = vrot.slane %v1027, 1
        %v1030 = vrot.slane %v330, 1
        %v1031 = vsel %vm1028, %v1029, %v1030
        %v1056 = vunpack.c.l.b16 %v1001
        %v1057 = vunpack.c.h.b16 %v1001
        %v1058 = vunpack.c.l.b16 %v1002
        %v1059 = vunpack.c.l.b16 %v1003
        %v1060 = vunpack.c.h.b16 %v1003
        %v1061 = vunpack.c.l.b16 %v1004
        %v1062 = vunpack.c.l.b16 %v1005
        %v1063 = vunpack.c.h.b16 %v1005
        %v1064 = vunpack.c.l.b16 %v1006
        %v1065 = vunpack.c.l.b16 %v1007
        %v1066 = vunpack.c.h.b16 %v1007
        %v1067 = vunpack.c.l.b16 %v1008
        %v1068 = vunpack.c.l.b16 %v1009
        %v1069 = vunpack.c.h.b16 %v1009
        %v1070 = vunpack.c.l.b16 %v1010
        %v1071 = vunpack.c.l.b16 %v1011
        %v1072 = vunpack.c.h.b16 %v1011
        %v1073 = vunpack.c.l.b16 %v1012
        %v1074 = vunpack.c.l.b16 %v1013
        %v1075 = vunpack.c.h.b16 %v1013
        %v1076 = vunpack.c.l.b16 %v1014
        %v1077 = vunpack.c.l.b16 %v1015
        %v1078 = vunpack.c.h.b16 %v1015
        %v1079 = vunpack.c.l.b16 %v1016
        %v1080 = vunpack.c.l.b16 %v1017
        %v1081 = vunpack.c.h.b16 %v1017
        %v1082 = vunpack.c.l.b16 %v1018
        %v1083 = vunpack.c.l.b16 %v1019
        %v1084 = vunpack.c.h.b16 %v1019
        %v1085 = vunpack.c.l.b16 %v1020
        %v1086 = vunpack.c.l.b16 %v1021
        %v1087 = vunpack.c.h.b16 %v1021
        %v1088 = vunpack.c.l.b16 %v1022
        %v1089 = vunpack.c.l.b16 %v1023
        %v1090 = vunpack.c.h.b16 %v1023
        %v1091 = vunpack.c.l.b16 %v1024
        %v1092 = vpack.c.b16 %v1059, %v1056
        %v1093 = vpack.c.b16 %v1060, %v1057
        %v1094 = vpack.c.b16 %v1061, %v1058
        %v1095 = vpack.c.b16 %v1065, %v1062
        %v1096 = vpack.c.b16 %v1066, %v1063
        %v1097 = vpack.c.b16 %v1067, %v1064
        %v1098 = vpack.c.b16 %v1071, %v1068
        %v1099 = vpack.c.b16 %v1072, %v1069
        %v1100 = vpack.c.b16 %v1073, %v1070
        %v1101 = vpack.c.b16 %v1077, %v1074
        %v1102 = vpack.c.b16 %v1078, %v1075
        %v1103 = vpack.c.b16 %v1079, %v1076
        %v1104 = vpack.c.b16 %v1083, %v1080
        %v1105 = vpack.c.b16 %v1084, %v1081
        %v1106 = vpack.c.b16 %v1085, %v1082
        %v1107 = vpack.c.b16 %v1089, %v1086
        %v1108 = vpack.c.b16 %v1090, %v1087
        %v1109 = vpack.c.b16 %v1091, %v1088
        %v1129 = vsel %vm443, %v1031, 0
        %v1132 = vsel %vm443, %v1030, 0
        %1134 = vmatpush.bf16.msra.mxu0 0
        %1135 = vmatpush.bf16.msra.mxu0 0
        %1136 = vmatpush.bf16.msra.mxu0 %v1107
        %1137 = vmatpush.bf16.msra.mxu0 %v1104
        %1138 = vmatpush.bf16.msra.mxu0 %v1101
        %1139 = vmatpush.bf16.msra.mxu0 %v1098
        %1140 = vmatpush.bf16.msra.mxu0 %v1095
        %1141 = vmatpush.bf16.msra.mxu0 %v1092
        %1142 = vmatmul.bf16.gmra.mxu0 %v1129
        %v1143 = vpop.f32.mrf.mxu0
        %v1144 = vadd.f32 0.0, %v1143
        %v1145 = vpop.f32.mrf.mxu0
        %v1146 = vadd.f32 0.0, %v1145
        %1147 = vmatmul.bf16.gmra.mxu0 %v1132
        %v1148 = vpop.f32.mrf.mxu0
        %v1149 = vadd.f32 0.0, %v1148
        %v1150 = vpop.f32.mrf.mxu0
        %v1151 = vadd.f32 0.0, %v1150
        %1152 = vdwg.mxu0
        %1153 = vmatpush.bf16.msra.mxu0 0
        %1154 = vmatpush.bf16.msra.mxu0 0
        %1155 = vmatpush.bf16.msra.mxu0 %v1108
        %1156 = vmatpush.bf16.msra.mxu0 %v1105
        %1157 = vmatpush.bf16.msra.mxu0 %v1102
        %1158 = vmatpush.bf16.msra.mxu0 %v1099
        %1159 = vmatpush.bf16.msra.mxu0 %v1096
        %1160 = vmatpush.bf16.msra.mxu0 %v1093
        %1161 = vmatmul.bf16.gmra.mxu0 %v1129
        %v1162 = vpop.f32.mrf.mxu0
        %v1163 = vadd.f32 0.0, %v1162
        %v1164 = vpop.f32.mrf.mxu0
        %v1165 = vadd.f32 0.0, %v1164
        %1166 = vmatmul.bf16.gmra.mxu0 %v1132
        %v1167 = vpop.f32.mrf.mxu0
        %v1168 = vadd.f32 0.0, %v1167
        %v1169 = vpop.f32.mrf.mxu0
        %v1170 = vadd.f32 0.0, %v1169
        %1171 = vdwg.mxu0
        %1172 = vmatpush.bf16.msra.mxu0 0
        %1173 = vmatpush.bf16.msra.mxu0 0
        %1174 = vmatpush.bf16.msra.mxu0 %v1109
        %1175 = vmatpush.bf16.msra.mxu0 %v1106
        %1176 = vmatpush.bf16.msra.mxu0 %v1103
        %1177 = vmatpush.bf16.msra.mxu0 %v1100
        %1178 = vmatpush.bf16.msra.mxu0 %v1097
        %1179 = vmatpush.bf16.msra.mxu0 %v1094
        %1180 = vmatmul.bf16.gmra.mxu0 %v1129
        %v1181 = vpop.f32.mrf.mxu0
        %v1182 = vadd.f32 0.0, %v1181
        %v1183 = vpop.f32.mrf.mxu0
        %v1184 = vadd.f32 0.0, %v1183
        %1185 = vmatmul.bf16.gmra.mxu0 %v1132
        %v1186 = vpop.f32.mrf.mxu0
        %v1187 = vadd.f32 0.0, %v1186
        %v1188 = vpop.f32.mrf.mxu0
        %v1189 = vadd.f32 0.0, %v1188
        %1190 = vdwg.mxu0
        %v1191 = vadd.f32 %v621, %v1144
        %v1192 = vadd.f32 %v640, %v1163
        %v1193 = vadd.f32 %v659, %v1182
        %v1194 = vadd.f32 %v623, %v1146
        %v1195 = vadd.f32 %v642, %v1165
        %v1196 = vadd.f32 %v661, %v1184
        %v1197 = vadd.f32 %v626, %v1149
        %v1198 = vadd.f32 %v645, %v1168
        %v1199 = vadd.f32 %v664, %v1187
        %v1200 = vadd.f32 %v628, %v1151
        %v1201 = vadd.f32 %v647, %v1170
        %v1202 = vadd.f32 %v666, %v1189
        %s1203 = scalar_lea.vmem [#allocation3], 288
        %v1204 = vld [vmem:[%s1203] sm:$0xff]
        %v1205 = vld [vmem:[%s1203 + $0x8] sm:$0xf]
        %v1206 = vld [vmem:[%s1203 + $0xc] sm:$0xff]
        %v1207 = vld [vmem:[%s1203 + $0x14] sm:$0xf]
        %v1208 = vld [vmem:[%s1203 + $0x18] sm:$0xff]
        %v1209 = vld [vmem:[%s1203 + $0x20] sm:$0xf]
        %v1210 = vld [vmem:[%s1203 + $0x24] sm:$0xff]
        %v1211 = vld [vmem:[%s1203 + $0x2c] sm:$0xf]
        %v1212 = vld [vmem:[%s1203 + $0x30] sm:$0xff]
        %v1213 = vld [vmem:[%s1203 + $0x38] sm:$0xf]
        %v1214 = vld [vmem:[%s1203 + $0x3c] sm:$0xff]
        %v1215 = vld [vmem:[%s1203 + $0x44] sm:$0xf]
        %v1216 = vld [vmem:[%s1203 + $0x48] sm:$0xff]
        %v1217 = vld [vmem:[%s1203 + $0x50] sm:$0xf]
        %v1218 = vld [vmem:[%s1203 + $0x54] sm:$0xff]
        %v1219 = vld [vmem:[%s1203 + $0x5c] sm:$0xf]
        %v1220 = vld [vmem:[%s1203 + $0x60] sm:$0xff]
        %v1221 = vld [vmem:[%s1203 + $0x68] sm:$0xf]
        %v1222 = vld [vmem:[%s1203 + $0x6c] sm:$0xff]
        %v1223 = vld [vmem:[%s1203 + $0x74] sm:$0xf]
        %v1224 = vld [vmem:[%s1203 + $0x78] sm:$0xff]
        %v1225 = vld [vmem:[%s1203 + $0x80] sm:$0xf]
        %v1226 = vld [vmem:[%s1203 + $0x84] sm:$0xff]
        %v1227 = vld [vmem:[%s1203 + $0x8c] sm:$0xf]
        %v1252 = vunpack.c.l.b16 %v1204
        %v1253 = vunpack.c.h.b16 %v1204
        %v1254 = vunpack.c.l.b16 %v1205
        %v1255 = vunpack.c.l.b16 %v1206
        %v1256 = vunpack.c.h.b16 %v1206
        %v1257 = vunpack.c.l.b16 %v1207
        %v1258 = vunpack.c.l.b16 %v1208
        %v1259 = vunpack.c.h.b16 %v1208
        %v1260 = vunpack.c.l.b16 %v1209
        %v1261 = vunpack.c.l.b16 %v1210
        %v1262 = vunpack.c.h.b16 %v1210
        %v1263 = vunpack.c.l.b16 %v1211
        %v1264 = vunpack.c.l.b16 %v1212
        %v1265 = vunpack.c.h.b16 %v1212
        %v1266 = vunpack.c.l.b16 %v1213
        %v1267 = vunpack.c.l.b16 %v1214
        %v1268 = vunpack.c.h.b16 %v1214
        %v1269 = vunpack.c.l.b16 %v1215
        %v1270 = vunpack.c.l.b16 %v1216
        %v1271 = vunpack.c.h.b16 %v1216
        %v1272 = vunpack.c.l.b16 %v1217
        %v1273 = vunpack.c.l.b16 %v1218
        %v1274 = vunpack.c.h.b16 %v1218
        %v1275 = vunpack.c.l.b16 %v1219
        %v1276 = vunpack.c.l.b16 %v1220
        %v1277 = vunpack.c.h.b16 %v1220
        %v1278 = vunpack.c.l.b16 %v1221
        %v1279 = vunpack.c.l.b16 %v1222
        %v1280 = vunpack.c.h.b16 %v1222
        %v1281 = vunpack.c.l.b16 %v1223
        %v1282 = vunpack.c.l.b16 %v1224
        %v1283 = vunpack.c.h.b16 %v1224
        %v1284 = vunpack.c.l.b16 %v1225
        %v1285 = vunpack.c.l.b16 %v1226
        %v1286 = vunpack.c.h.b16 %v1226
        %v1287 = vunpack.c.l.b16 %v1227
        %v1288 = vpack.c.b16 %v1255, %v1252
        %v1289 = vpack.c.b16 %v1256, %v1253
        %v1290 = vpack.c.b16 %v1257, %v1254
        %v1291 = vpack.c.b16 %v1261, %v1258
        %v1292 = vpack.c.b16 %v1262, %v1259
        %v1293 = vpack.c.b16 %v1263, %v1260
        %v1294 = vpack.c.b16 %v1267, %v1264
        %v1295 = vpack.c.b16 %v1268, %v1265
        %v1296 = vpack.c.b16 %v1269, %v1266
        %v1297 = vpack.c.b16 %v1273, %v1270
        %v1298 = vpack.c.b16 %v1274, %v1271
        %v1299 = vpack.c.b16 %v1275, %v1272
        %v1300 = vpack.c.b16 %v1279, %v1276
        %v1301 = vpack.c.b16 %v1280, %v1277
        %v1302 = vpack.c.b16 %v1281, %v1278
        %v1303 = vpack.c.b16 %v1285, %v1282
        %v1304 = vpack.c.b16 %v1286, %v1283
        %v1305 = vpack.c.b16 %v1287, %v1284
        %1324 = vmatpush.bf16.msra.mxu0 0
        %1325 = vmatpush.bf16.msra.mxu0 0
        %1326 = vmatpush.bf16.msra.mxu0 %v1303
        %1327 = vmatpush.bf16.msra.mxu0 %v1300
        %1328 = vmatpush.bf16.msra.mxu0 %v1297
        %1329 = vmatpush.bf16.msra.mxu0 %v1294
        %1330 = vmatpush.bf16.msra.mxu0 %v1291
        %1331 = vmatpush.bf16.msra.mxu0 %v1288
        %1332 = vmatmul.bf16.gmra.mxu0 %v1129
        %v1333 = vpop.f32.mrf.mxu0
        %v1334 = vadd.f32 0.0, %v1333
        %v1335 = vpop.f32.mrf.mxu0
        %v1336 = vadd.f32 0.0, %v1335
        %1337 = vmatmul.bf16.gmra.mxu0 %v1132
        %v1338 = vpop.f32.mrf.mxu0
        %v1339 = vadd.f32 0.0, %v1338
        %v1340 = vpop.f32.mrf.mxu0
        %v1341 = vadd.f32 0.0, %v1340
        %1342 = vdwg.mxu0
        %1343 = vmatpush.bf16.msra.mxu0 0
        %1344 = vmatpush.bf16.msra.mxu0 0
        %1345 = vmatpush.bf16.msra.mxu0 %v1304
        %1346 = vmatpush.bf16.msra.mxu0 %v1301
        %1347 = vmatpush.bf16.msra.mxu0 %v1298
        %1348 = vmatpush.bf16.msra.mxu0 %v1295
        %1349 = vmatpush.bf16.msra.mxu0 %v1292
        %1350 = vmatpush.bf16.msra.mxu0 %v1289
        %1351 = vmatmul.bf16.gmra.mxu0 %v1129
        %v1352 = vpop.f32.mrf.mxu0
        %v1353 = vadd.f32 0.0, %v1352
        %v1354 = vpop.f32.mrf.mxu0
        %v1355 = vadd.f32 0.0, %v1354
        %1356 = vmatmul.bf16.gmra.mxu0 %v1132
        %v1357 = vpop.f32.mrf.mxu0
        %v1358 = vadd.f32 0.0, %v1357
        %v1359 = vpop.f32.mrf.mxu0
        %v1360 = vadd.f32 0.0, %v1359
        %1361 = vdwg.mxu0
        %1362 = vmatpush.bf16.msra.mxu0 0
        %1363 = vmatpush.bf16.msra.mxu0 0
        %1364 = vmatpush.bf16.msra.mxu0 %v1305
        %1365 = vmatpush.bf16.msra.mxu0 %v1302
        %1366 = vmatpush.bf16.msra.mxu0 %v1299
        %1367 = vmatpush.bf16.msra.mxu0 %v1296
        %1368 = vmatpush.bf16.msra.mxu0 %v1293
        %1369 = vmatpush.bf16.msra.mxu0 %v1290
        %1370 = vmatmul.bf16.gmra.mxu0 %v1129
        %v1371 = vpop.f32.mrf.mxu0
        %v1372 = vadd.f32 0.0, %v1371
        %v1373 = vpop.f32.mrf.mxu0
        %v1374 = vadd.f32 0.0, %v1373
        %1375 = vmatmul.bf16.gmra.mxu0 %v1132
        %v1376 = vpop.f32.mrf.mxu0
        %v1377 = vadd.f32 0.0, %v1376
        %v1378 = vpop.f32.mrf.mxu0
        %v1379 = vadd.f32 0.0, %v1378
        %1380 = vdwg.mxu0
        %v1381 = vadd.f32 %v952, %v1334
        %v1382 = vadd.f32 %v971, %v1353
        %v1383 = vadd.f32 %v990, %v1372
        %v1384 = vadd.f32 %v954, %v1336
        %v1385 = vadd.f32 %v973, %v1355
        %v1386 = vadd.f32 %v992, %v1374
        %v1387 = vadd.f32 %v957, %v1339
        %v1388 = vadd.f32 %v976, %v1358
        %v1389 = vadd.f32 %v995, %v1377
        %v1390 = vadd.f32 %v959, %v1341
        %v1391 = vadd.f32 %v978, %v1360
        %v1392 = vadd.f32 %v997, %v1379
        %v1393 = vld [vmem:[%s3] sm:$0x7]
        %v1394 = vld [vmem:[%s4] sm:$0x7]
        %v1396 = vperm.slane %v1393, 0
        %v1397 = vperm.slane %v1393, 1
        %v1398 = vperm.slane %v1393, 2
        %v1402 = vmul.f32 %v1191, %v1396
        %v1403 = vmul.f32 %v1192, %v1397
        %v1404 = vmul.f32 %v1193, %v1398
        %v1405 = vmul.f32 %v1194, %v1396
        %v1406 = vmul.f32 %v1195, %v1397
        %v1407 = vmul.f32 %v1196, %v1398
        %v1408 = vmul.f32 %v1197, %v1396
        %v1409 = vmul.f32 %v1198, %v1397
        %v1410 = vmul.f32 %v1199, %v1398
        %v1411 = vmul.f32 %v1200, %v1396
        %v1412 = vmul.f32 %v1201, %v1397
        %v1413 = vmul.f32 %v1202, %v1398
        %v1415 = vperm.slane %v1394, 0
        %v1416 = vperm.slane %v1394, 1
        %v1417 = vperm.slane %v1394, 2
        %v1421 = vadd.f32 %v1402, %v1415
        %v1422 = vadd.f32 %v1403, %v1416
        %v1423 = vadd.f32 %v1404, %v1417
        %v1424 = vadd.f32 %v1405, %v1415
        %v1425 = vadd.f32 %v1406, %v1416
        %v1426 = vadd.f32 %v1407, %v1417
        %v1427 = vadd.f32 %v1408, %v1415
        %v1428 = vadd.f32 %v1409, %v1416
        %v1429 = vadd.f32 %v1410, %v1417
        %v1430 = vadd.f32 %v1411, %v1415
        %v1431 = vadd.f32 %v1412, %v1416
        %v1432 = vadd.f32 %v1413, %v1417
        %v1433 = vmul.f32 %v1381, %v1396
        %v1434 = vmul.f32 %v1382, %v1397
        %v1435 = vmul.f32 %v1383, %v1398
        %v1436 = vmul.f32 %v1384, %v1396
        %v1437 = vmul.f32 %v1385, %v1397
        %v1438 = vmul.f32 %v1386, %v1398
        %v1439 = vmul.f32 %v1387, %v1396
        %v1440 = vmul.f32 %v1388, %v1397
        %v1441 = vmul.f32 %v1389, %v1398
        %v1442 = vmul.f32 %v1390, %v1396
        %v1443 = vmul.f32 %v1391, %v1397
        %v1444 = vmul.f32 %v1392, %v1398
        %v1445 = vadd.f32 %v1433, %v1415
        %v1446 = vadd.f32 %v1434, %v1416
        %v1447 = vadd.f32 %v1435, %v1417
        %v1448 = vadd.f32 %v1436, %v1415
        %v1449 = vadd.f32 %v1437, %v1416
        %v1450 = vadd.f32 %v1438, %v1417
        %v1451 = vadd.f32 %v1439, %v1415
        %v1452 = vadd.f32 %v1440, %v1416
        %v1453 = vadd.f32 %v1441, %v1417
        %v1454 = vadd.f32 %v1442, %v1415
        %v1455 = vadd.f32 %v1443, %v1416
        %v1456 = vadd.f32 %v1444, %v1417
        %v1457 = vmax.f32 %v1421, %v1445
        %v1458 = vmax.f32 %v1422, %v1446
        %v1459 = vmax.f32 %v1423, %v1447
        %v1460 = vmax.f32 %v1424, %v1448
        %v1461 = vmax.f32 %v1425, %v1449
        %v1462 = vmax.f32 %v1426, %v1450
        %v1463 = vmax.f32 %v1427, %v1451
        %v1464 = vmax.f32 %v1428, %v1452
        %v1465 = vmax.f32 %v1429, %v1453
        %v1466 = vmax.f32 %v1430, %v1454
        %v1467 = vmax.f32 %v1431, %v1455
        %v1468 = vmax.f32 %v1432, %v1456
        %1469 = vst [vmem:[#allocation2] sm:$0xff] %v1457
        %1470 = vst [vmem:[#allocation2 + $0x8] sm:$0xff] %v1458
        %vm1471 = vcmask 359424
        %1472 = vst.msk [vmem:[#allocation2 + $0x10] sm:$0xff] %vm1471, %v1459
        %1473 = vst [vmem:[#allocation2 + $0x18] sm:$0xff] %v1460
        %1474 = vst [vmem:[#allocation2 + $0x20] sm:$0xff] %v1461
        %1475 = vst.msk [vmem:[#allocation2 + $0x28] sm:$0xff] %vm1471, %v1462
        %1476 = vst [vmem:[#allocation2 + $0x30] sm:$0xff] %v1463
        %1477 = vst [vmem:[#allocation2 + $0x38] sm:$0xff] %v1464
        %1478 = vst.msk [vmem:[#allocation2 + $0x40] sm:$0xff] %vm1471, %v1465
        %1479 = vst [vmem:[#allocation2 + $0x48] sm:$0x3f] %v1466
        %1480 = vst [vmem:[#allocation2 + $0x50] sm:$0x3f] %v1467
        %vm1481 = vcmask 357376
        %1482 = vst.msk [vmem:[#allocation2 + $0x58] sm:$0x3f] %vm1481, %v1468
        %v1483 = vld [vmem:[#allocation2] sm:$0x3]
        %v1484 = vld [vmem:[#allocation2 + $0x8] sm:$0x3]
        %v1485 = vld [vmem:[#allocation2 + $0x10] sm:$0x3]
        %vm1486 = vcmask 1041408
        %v1487 = vsel %vm1486, %v1483, -inf
        %v1488 = vrot.slane %v1487, 4
        %v1489 = vmax.f32 %v1487, %v1488
        %v1490 = vrot.slane %v1489, 2
        %v1491 = vmax.f32 %v1489, %v1490
        %v1492 = vrot.slane %v1491, 1
        %v1493 = vmax.f32 %v1491, %v1492
        %v1494 = vsel %vm1486, %v1484, -inf
        %v1495 = vrot.slane %v1494, 4
        %v1496 = vmax.f32 %v1494, %v1495
        %v1497 = vrot.slane %v1496, 2
        %v1498 = vmax.f32 %v1496, %v1497
        %v1499 = vrot.slane %v1498, 1
        %v1500 = vmax.f32 %v1498, %v1499
        %vm1501 = vcmask 353280
        %v1502 = vsel %vm1501, %v1485, -inf
        %v1503 = vrot.slane %v1502, 4
        %v1504 = vmax.f32 %v1502, %v1503
        %v1505 = vrot.slane %v1504, 2
        %v1506 = vmax.f32 %v1504, %v1505
        %v1507 = vrot.slane %v1506, 1
        %v1508 = vmax.f32 %v1506, %v1507
        %v1509 = vmax.f32 %v1493, 0.0
        %v1510 = vmax.f32 %v1500, 0.0
        %v1511 = vmax.f32 %v1508, 0.0
        %v1512 = vpack.c.bf16 %v1510, %v1509
        %v1513 = vpack.c.bf16 %v1511, %v1511
        %vm1514 = vcmask 1040384
        %vm1515 = vsmask.f32 256
        %vm1516 = vmand %vm1514, %vm1515
        %vm1517 = vcmask 1044484
        %vm1518 = vsmask.f32 4352
        %vm1519 = vmand %vm1517, %vm1518
        %vm1520 = vmor %vm1519, %vm1516
        %v1521 = vld [vmem:[%s241] sm:$0x11]
        %v1522 = vsel %vm1520, %v1512, %v1521
        %1523 = vst [vmem:[%s241] sm:$0x11] %v1522
        %vm1524 = vcmask 352256
        %vm1525 = vmand %vm1524, %vm1515
        %v1526 = vld [vmem:[%s241 + $0x8] sm:$0x1]
        %v1527 = vsel %vm1525, %v1513, %v1526
        %1528 = vst [vmem:[%s241 + $0x8] sm:$0x1] %v1527
        %v1529 = vld [vmem:[#allocation2] sm:$0xc]
        %v1530 = vld [vmem:[#allocation2 + $0x8] sm:$0xc]
        %v1531 = vld [vmem:[#allocation2 + $0x10] sm:$0xc]
        %vm1532 = vcmask 1043458
        %v1533 = vsel %vm1532, %v1529, -inf
        %v1534 = vrot.slane %v1533, 4
        %v1535 = vmax.f32 %v1533, %v1534
        %v1536 = vrot.slane %v1535, 2
        %v1537 = vmax.f32 %v1535, %v1536
        %v1538 = vrot.slane %v1537, 1
        %v1539 = vmax.f32 %v1537, %v1538
        %v1540 = vsel %vm1532, %v1530, -inf
        %v1541 = vrot.slane %v1540, 4
        %v1542 = vmax.f32 %v1540, %v1541
        %v1543 = vrot.slane %v1542, 2
        %v1544 = vmax.f32 %v1542, %v1543
        %v1545 = vrot.slane %v1544, 1
        %v1546 = vmax.f32 %v1544, %v1545
        %vm1547 = vcmask 355330
        %v1548 = vsel %vm1547, %v1531, -inf
        %v1549 = vrot.slane %v1548, 4
        %v1550 = vmax.f32 %v1548, %v1549
        %v1551 = vrot.slane %v1550, 2
        %v1552 = vmax.f32 %v1550, %v1551
        %v1553 = vrot.slane %v1552, 1
        %v1554 = vmax.f32 %v1552, %v1553
        %v1555 = vmax.f32 %v1539, 0.0
        %v1556 = vmax.f32 %v1546, 0.0
        %v1557 = vmax.f32 %v1554, 0.0
        %v1558 = vpack.c.bf16 %v1556, %v1555
        %v1559 = vpack.c.bf16 %v1557, %v1557
        %vm1560 = vsmask.f32 7938
        %vm1561 = vmand %vm1514, %vm1560
        %vm1562 = vsmask.f32 7954
        %vm1563 = vmand %vm1517, %vm1562
        %vm1564 = vmor %vm1563, %vm1561
        %v1565 = vld [vmem:[%s241] sm:$0x11]
        %v1566 = vsel %vm1564, %v1558, %v1565
        %1567 = vst [vmem:[%s241] sm:$0x11] %v1566
        %vm1568 = vmand %vm1524, %vm1560
        %v1569 = vld [vmem:[%s241 + $0x8] sm:$0x1]
        %v1570 = vsel %vm1568, %v1559, %v1569
        %1571 = vst [vmem:[%s241 + $0x8] sm:$0x1] %v1570
        %v1572 = vld [vmem:[#allocation2] sm:$0x30]
        %v1573 = vld [vmem:[#allocation2 + $0x8] sm:$0x30]
        %v1574 = vld [vmem:[#allocation2 + $0x10] sm:$0x30]
        %vm1575 = vcmask 1045508
        %v1576 = vsel %vm1575, %v1572, -inf
        %v1577 = vrot.slane %v1576, 4
        %v1578 = vmax.f32 %v1576, %v1577
        %v1579 = vrot.slane %v1578, 2
        %v1580 = vmax.f32 %v1578, %v1579
        %v1581 = vrot.slane %v1580, 1
        %v1582 = vmax.f32 %v1580, %v1581
        %v1583 = vsel %vm1575, %v1573, -inf
        %v1584 = vrot.slane %v1583, 4
        %v1585 = vmax.f32 %v1583, %v1584
        %v1586 = vrot.slane %v1585, 2
        %v1587 = vmax.f32 %v1585, %v1586
        %v1588 = vrot.slane %v1587, 1
        %v1589 = vmax.f32 %v1587, %v1588
        %vm1590 = vcmask 357380
        %v1591 = vsel %vm1590, %v1574, -inf
        %v1592 = vrot.slane %v1591, 4
        %v1593 = vmax.f32 %v1591, %v1592
        %v1594 = vrot.slane %v1593, 2
        %v1595 = vmax.f32 %v1593, %v1594
        %v1596 = vrot.slane %v1595, 1
        %v1597 = vmax.f32 %v1595, %v1596
        %v1598 = vmax.f32 %v1582, 0.0
        %v1599 = vmax.f32 %v1589, 0.0
        %v1600 = vmax.f32 %v1597, 0.0
        %v1601 = vpack.c.bf16 %v1599, %v1598
        %v1602 = vpack.c.bf16 %v1600, %v1600
        %vm1603 = vcmask 1041409
        %vm1604 = vsmask.f32 1280
        %vm1605 = vmand %vm1603, %vm1604
        %vm1606 = vcmask 1045509
        %vm1607 = vsmask.f32 5376
        %vm1608 = vmand %vm1606, %vm1607
        %vm1609 = vmor %vm1608, %vm1605
        %v1610 = vld [vmem:[%s241] sm:$0x22]
        %v1611 = vsel %vm1609, %v1601, %v1610
        %1612 = vst [vmem:[%s241] sm:$0x22] %v1611
        %vm1613 = vcmask 353281
        %vm1614 = vmand %vm1613, %vm1604
        %v1615 = vld [vmem:[%s241 + $0x8] sm:$0x2]
        %v1616 = vsel %vm1614, %v1602, %v1615
        %1617 = vst [vmem:[%s241 + $0x8] sm:$0x2] %v1616
        %v1618 = vld [vmem:[#allocation2] sm:$0xc0]
        %v1619 = vld [vmem:[#allocation2 + $0x8] sm:$0xc0]
        %v1620 = vld [vmem:[#allocation2 + $0x10] sm:$0xc0]
        %vm1621 = vcmask 1047558
        %v1622 = vsel %vm1621, %v1618, -inf
        %v1623 = vrot.slane %v1622, 4
        %v1624 = vmax.f32 %v1622, %v1623
        %v1625 = vrot.slane %v1624, 2
        %v1626 = vmax.f32 %v1624, %v1625
        %v1627 = vrot.slane %v1626, 1
        %v1628 = vmax.f32 %v1626, %v1627
        %v1629 = vsel %vm1621, %v1619, -inf
        %v1630 = vrot.slane %v1629, 4
        %v1631 = vmax.f32 %v1629, %v1630
        %v1632 = vrot.slane %v1631, 2
        %v1633 = vmax.f32 %v1631, %v1632
        %v1634 = vrot.slane %v1633, 1
        %v1635 = vmax.f32 %v1633, %v1634
        %vm1636 = vcmask 359430
        %v1637 = vsel %vm1636, %v1620, -inf
        %v1638 = vrot.slane %v1637, 4
        %v1639 = vmax.f32 %v1637, %v1638
        %v1640 = vrot.slane %v1639, 2
        %v1641 = vmax.f32 %v1639, %v1640
        %v1642 = vrot.slane %v1641, 1
        %v1643 = vmax.f32 %v1641, %v1642
        %v1644 = vmax.f32 %v1628, 0.0
        %v1645 = vmax.f32 %v1635, 0.0
        %v1646 = vmax.f32 %v1643, 0.0
        %v1647 = vpack.c.bf16 %v1645, %v1644
        %v1648 = vpack.c.bf16 %v1646, %v1646
        %vm1649 = vsmask.f32 7942
        %vm1650 = vmand %vm1603, %vm1649
        %vm1651 = vsmask.f32 7958
        %vm1652 = vmand %vm1606, %vm1651
        %vm1653 = vmor %vm1652, %vm1650
        %v1654 = vld [vmem:[%s241] sm:$0x22]
        %v1655 = vsel %vm1653, %v1647, %v1654
        %1656 = vst [vmem:[%s241] sm:$0x22] %v1655
        %vm1657 = vmand %vm1613, %vm1649
        %v1658 = vld [vmem:[%s241 + $0x8] sm:$0x2]
        %v1659 = vsel %vm1657, %v1648, %v1658
        %1660 = vst [vmem:[%s241 + $0x8] sm:$0x2] %v1659
        %v1661 = vld [vmem:[#allocation2 + $0x18] sm:$0x3]
        %v1662 = vld [vmem:[#allocation2 + $0x20] sm:$0x3]
        %v1663 = vld [vmem:[#allocation2 + $0x28] sm:$0x3]
        %v1664 = vsel %vm1486, %v1661, -inf
        %v1665 = vrot.slane %v1664, 4
        %v1666 = vmax.f32 %v1664, %v1665
        %v1667 = vrot.slane %v1666, 2
        %v1668 = vmax.f32 %v1666, %v1667
        %v1669 = vrot.slane %v1668, 1
        %v1670 = vmax.f32 %v1668, %v1669
        %v1671 = vsel %vm1486, %v1662, -inf
        %v1672 = vrot.slane %v1671, 4
        %v1673 = vmax.f32 %v1671, %v1672
        %v1674 = vrot.slane %v1673, 2
        %v1675 = vmax.f32 %v1673, %v1674
        %v1676 = vrot.slane %v1675, 1
        %v1677 = vmax.f32 %v1675, %v1676
        %v1678 = vsel %vm1501, %v1663, -inf
        %v1679 = vrot.slane %v1678, 4
        %v1680 = vmax.f32 %v1678, %v1679
        %v1681 = vrot.slane %v1680, 2
        %v1682 = vmax.f32 %v1680, %v1681
        %v1683 = vrot.slane %v1682, 1
        %v1684 = vmax.f32 %v1682, %v1683
        %v1685 = vmax.f32 %v1670, 0.0
        %v1686 = vmax.f32 %v1677, 0.0
        %v1687 = vmax.f32 %v1684, 0.0
        %v1688 = vpack.c.bf16 %v1686, %v1685
        %v1689 = vpack.c.bf16 %v1687, %v1687
        %vm1690 = vcmask 1042434
        %vm1691 = vsmask.f32 2304
        %vm1692 = vmand %vm1690, %vm1691
        %vm1693 = vcmask 1046534
        %vm1694 = vsmask.f32 6400
        %vm1695 = vmand %vm1693, %vm1694
        %vm1696 = vmor %vm1695, %vm1692
        %v1697 = vld [vmem:[%s241] sm:$0x44]
        %v1698 = vsel %vm1696, %v1688, %v1697
        %1699 = vst [vmem:[%s241] sm:$0x44] %v1698
        %vm1700 = vcmask 354306
        %vm1701 = vmand %vm1700, %vm1691
        %v1702 = vld [vmem:[%s241 + $0x8] sm:$0x4]
        %v1703 = vsel %vm1701, %v1689, %v1702
        %1704 = vst [vmem:[%s241 + $0x8] sm:$0x4] %v1703
        %v1705 = vld [vmem:[#allocation2 + $0x18] sm:$0xc]
        %v1706 = vld [vmem:[#allocation2 + $0x20] sm:$0xc]
        %v1707 = vld [vmem:[#allocation2 + $0x28] sm:$0xc]
        %v1708 = vsel %vm1532, %v1705, -inf
        %v1709 = vrot.slane %v1708, 4
        %v1710 = vmax.f32 %v1708, %v1709
        %v1711 = vrot.slane %v1710, 2
        %v1712 = vmax.f32 %v1710, %v1711
        %v1713 = vrot.slane %v1712, 1
        %v1714 = vmax.f32 %v1712, %v1713
        %v1715 = vsel %vm1532, %v1706, -inf
        %v1716 = vrot.slane %v1715, 4
        %v1717 = vmax.f32 %v1715, %v1716
        %v1718 = vrot.slane %v1717, 2
        %v1719 = vmax.f32 %v1717, %v1718
        %v1720 = vrot.slane %v1719, 1
        %v1721 = vmax.f32 %v1719, %v1720
        %v1722 = vsel %vm1547, %v1707, -inf
        %v1723 = vrot.slane %v1722, 4
        %v1724 = vmax.f32 %v1722, %v1723
        %v1725 = vrot.slane %v1724, 2
        %v1726 = vmax.f32 %v1724, %v1725
        %v1727 = vrot.slane %v1726, 1
        %v1728 = vmax.f32 %v1726, %v1727
        %v1729 = vmax.f32 %v1714, 0.0
        %v1730 = vmax.f32 %v1721, 0.0
        %v1731 = vmax.f32 %v1728, 0.0
        %v1732 = vpack.c.bf16 %v1730, %v1729
        %v1733 = vpack.c.bf16 %v1731, %v1731
        %vm1734 = vsmask.f32 7946
        %vm1735 = vmand %vm1690, %vm1734
        %vm1736 = vsmask.f32 7962
        %vm1737 = vmand %vm1693, %vm1736
        %vm1738 = vmor %vm1737, %vm1735
        %v1739 = vld [vmem:[%s241] sm:$0x44]
        %v1740 = vsel %vm1738, %v1732, %v1739
        %1741 = vst [vmem:[%s241] sm:$0x44] %v1740
        %vm1742 = vmand %vm1700, %vm1734
        %v1743 = vld [vmem:[%s241 + $0x8] sm:$0x4]
        %v1744 = vsel %vm1742, %v1733, %v1743
        %1745 = vst [vmem:[%s241 + $0x8] sm:$0x4] %v1744
        %v1746 = vld [vmem:[#allocation2 + $0x18] sm:$0x30]
        %v1747 = vld [vmem:[#allocation2 + $0x20] sm:$0x30]
        %v1748 = vld [vmem:[#allocation2 + $0x28] sm:$0x30]
        %v1749 = vsel %vm1575, %v1746, -inf
        %v1750 = vrot.slane %v1749, 4
        %v1751 = vmax.f32 %v1749, %v1750
        %v1752 = vrot.slane %v1751, 2
        %v1753 = vmax.f32 %v1751, %v1752
        %v1754 = vrot.slane %v1753, 1
        %v1755 = vmax.f32 %v1753, %v1754
        %v1756 = vsel %vm1575, %v1747, -inf
        %v1757 = vrot.slane %v1756, 4
        %v1758 = vmax.f32 %v1756, %v1757
        %v1759 = vrot.slane %v1758, 2
        %v1760 = vmax.f32 %v1758, %v1759
        %v1761 = vrot.slane %v1760, 1
        %v1762 = vmax.f32 %v1760, %v1761
        %v1763 = vsel %vm1590, %v1748, -inf
        %v1764 = vrot.slane %v1763, 4
        %v1765 = vmax.f32 %v1763, %v1764
        %v1766 = vrot.slane %v1765, 2
        %v1767 = vmax.f32 %v1765, %v1766
        %v1768 = vrot.slane %v1767, 1
        %v1769 = vmax.f32 %v1767, %v1768
        %v1770 = vmax.f32 %v1755, 0.0
        %v1771 = vmax.f32 %v1762, 0.0
        %v1772 = vmax.f32 %v1769, 0.0
        %v1773 = vpack.c.bf16 %v1771, %v1770
        %v1774 = vpack.c.bf16 %v1772, %v1772
        %vm1775 = vcmask 1043459
        %vm1776 = vsmask.f32 3328
        %vm1777 = vmand %vm1775, %vm1776
        %vm1778 = vcmask 1047559
        %vm1779 = vmand %vm1778, %vm331
        %vm1780 = vmor %vm1779, %vm1777
        %v1781 = vld [vmem:[%s241] sm:$0x88]
        %v1782 = vsel %vm1780, %v1773, %v1781
        %1783 = vst [vmem:[%s241] sm:$0x88] %v1782
        %vm1784 = vcmask 355331
        %vm1785 = vmand %vm1784, %vm1776
        %v1786 = vld [vmem:[%s241 + $0x8] sm:$0x8]
        %v1787 = vsel %vm1785, %v1774, %v1786
        %1788 = vst [vmem:[%s241 + $0x8] sm:$0x8] %v1787
        %v1789 = vld [vmem:[#allocation2 + $0x18] sm:$0xc0]
        %v1790 = vld [vmem:[#allocation2 + $0x20] sm:$0xc0]
        %v1791 = vld [vmem:[#allocation2 + $0x28] sm:$0xc0]
        %v1792 = vsel %vm1621, %v1789, -inf
        %v1793 = vrot.slane %v1792, 4
        %v1794 = vmax.f32 %v1792, %v1793
        %v1795 = vrot.slane %v1794, 2
        %v1796 = vmax.f32 %v1794, %v1795
        %v1797 = vrot.slane %v1796, 1
        %v1798 = vmax.f32 %v1796, %v1797
        %v1799 = vsel %vm1621, %v1790, -inf
        %v1800 = vrot.slane %v1799, 4
        %v1801 = vmax.f32 %v1799, %v1800
        %v1802 = vrot.slane %v1801, 2
        %v1803 = vmax.f32 %v1801, %v1802
        %v1804 = vrot.slane %v1803, 1
        %v1805 = vmax.f32 %v1803, %v1804
        %v1806 = vsel %vm1636, %v1791, -inf
        %v1807 = vrot.slane %v1806, 4
        %v1808 = vmax.f32 %v1806, %v1807
        %v1809 = vrot.slane %v1808, 2
        %v1810 = vmax.f32 %v1808, %v1809
        %v1811 = vrot.slane %v1810, 1
        %v1812 = vmax.f32 %v1810, %v1811
        %v1813 = vmax.f32 %v1798, 0.0
        %v1814 = vmax.f32 %v1805, 0.0
        %v1815 = vmax.f32 %v1812, 0.0
        %v1816 = vpack.c.bf16 %v1814, %v1813
        %v1817 = vpack.c.bf16 %v1815, %v1815
        %vm1818 = vsmask.f32 7950
        %vm1819 = vmand %vm1775, %vm1818
        %vm1820 = vsmask.f32 7966
        %vm1821 = vmand %vm1778, %vm1820
        %vm1822 = vmor %vm1821, %vm1819
        %v1823 = vld [vmem:[%s241] sm:$0x88]
        %v1824 = vsel %vm1822, %v1816, %v1823
        %1825 = vst [vmem:[%s241] sm:$0x88] %v1824
        %vm1826 = vmand %vm1784, %vm1818
        %v1827 = vld [vmem:[%s241 + $0x8] sm:$0x8]
        %v1828 = vsel %vm1826, %v1817, %v1827
        %1829 = vst [vmem:[%s241 + $0x8] sm:$0x8] %v1828
        %v1830 = vld [vmem:[#allocation2 + $0x30] sm:$0x3]
        %v1831 = vld [vmem:[#allocation2 + $0x38] sm:$0x3]
        %v1832 = vld [vmem:[#allocation2 + $0x40] sm:$0x3]
        %v1833 = vsel %vm1486, %v1830, -inf
        %v1834 = vrot.slane %v1833, 4
        %v1835 = vmax.f32 %v1833, %v1834
        %v1836 = vrot.slane %v1835, 2
        %v1837 = vmax.f32 %v1835, %v1836
        %v1838 = vrot.slane %v1837, 1
        %v1839 = vmax.f32 %v1837, %v1838
        %v1840 = vsel %vm1486, %v1831, -inf
        %v1841 = vrot.slane %v1840, 4
        %v1842 = vmax.f32 %v1840, %v1841
        %v1843 = vrot.slane %v1842, 2
        %v1844 = vmax.f32 %v1842, %v1843
        %v1845 = vrot.slane %v1844, 1
        %v1846 = vmax.f32 %v1844, %v1845
        %v1847 = vsel %vm1501, %v1832, -inf
        %v1848 = vrot.slane %v1847, 4
        %v1849 = vmax.f32 %v1847, %v1848
        %v1850 = vrot.slane %v1849, 2
        %v1851 = vmax.f32 %v1849, %v1850
        %v1852 = vrot.slane %v1851, 1
        %v1853 = vmax.f32 %v1851, %v1852
        %v1854 = vmax.f32 %v1839, 0.0
        %v1855 = vmax.f32 %v1846, 0.0
        %v1856 = vmax.f32 %v1853, 0.0
        %v1857 = vpack.c.bf16 %v1855, %v1854
        %v1858 = vpack.c.bf16 %v1856, %v1856
        %v1859 = vld [vmem:[%s241 + $0xc] sm:$0x11]
        %v1860 = vsel %vm1520, %v1857, %v1859
        %1861 = vst [vmem:[%s241 + $0xc] sm:$0x11] %v1860
        %v1862 = vld [vmem:[%s241 + $0x14] sm:$0x1]
        %v1863 = vsel %vm1525, %v1858, %v1862
        %1864 = vst [vmem:[%s241 + $0x14] sm:$0x1] %v1863
        %v1865 = vld [vmem:[#allocation2 + $0x30] sm:$0xc]
        %v1866 = vld [vmem:[#allocation2 + $0x38] sm:$0xc]
        %v1867 = vld [vmem:[#allocation2 + $0x40] sm:$0xc]
        %v1868 = vsel %vm1532, %v1865, -inf
        %v1869 = vrot.slane %v1868, 4
        %v1870 = vmax.f32 %v1868, %v1869
        %v1871 = vrot.slane %v1870, 2
        %v1872 = vmax.f32 %v1870, %v1871
        %v1873 = vrot.slane %v1872, 1
        %v1874 = vmax.f32 %v1872, %v1873
        %v1875 = vsel %vm1532, %v1866, -inf
        %v1876 = vrot.slane %v1875, 4
        %v1877 = vmax.f32 %v1875, %v1876
        %v1878 = vrot.slane %v1877, 2
        %v1879 = vmax.f32 %v1877, %v1878
        %v1880 = vrot.slane %v1879, 1
        %v1881 = vmax.f32 %v1879, %v1880
        %v1882 = vsel %vm1547, %v1867, -inf
        %v1883 = vrot.slane %v1882, 4
        %v1884 = vmax.f32 %v1882, %v1883
        %v1885 = vrot.slane %v1884, 2
        %v1886 = vmax.f32 %v1884, %v1885
        %v1887 = vrot.slane %v1886, 1
        %v1888 = vmax.f32 %v1886, %v1887
        %v1889 = vmax.f32 %v1874, 0.0
        %v1890 = vmax.f32 %v1881, 0.0
        %v1891 = vmax.f32 %v1888, 0.0
        %v1892 = vpack.c.bf16 %v1890, %v1889
        %v1893 = vpack.c.bf16 %v1891, %v1891
        %v1894 = vld [vmem:[%s241 + $0xc] sm:$0x11]
        %v1895 = vsel %vm1564, %v1892, %v1894
        %1896 = vst [vmem:[%s241 + $0xc] sm:$0x11] %v1895
        %v1897 = vld [vmem:[%s241 + $0x14] sm:$0x1]
        %v1898 = vsel %vm1568, %v1893, %v1897
        %1899 = vst [vmem:[%s241 + $0x14] sm:$0x1] %v1898
        %v1900 = vld [vmem:[#allocation2 + $0x30] sm:$0x30]
        %v1901 = vld [vmem:[#allocation2 + $0x38] sm:$0x30]
        %v1902 = vld [vmem:[#allocation2 + $0x40] sm:$0x30]
        %v1903 = vsel %vm1575, %v1900, -inf
        %v1904 = vrot.slane %v1903, 4
        %v1905 = vmax.f32 %v1903, %v1904
        %v1906 = vrot.slane %v1905, 2
        %v1907 = vmax.f32 %v1905, %v1906
        %v1908 = vrot.slane %v1907, 1
        %v1909 = vmax.f32 %v1907, %v1908
        %v1910 = vsel %vm1575, %v1901, -inf
        %v1911 = vrot.slane %v1910, 4
        %v1912 = vmax.f32 %v1910, %v1911
        %v1913 = vrot.slane %v1912, 2
        %v1914 = vmax.f32 %v1912, %v1913
        %v1915 = vrot.slane %v1914, 1
        %v1916 = vmax.f32 %v1914, %v1915
        %v1917 = vsel %vm1590, %v1902, -inf
        %v1918 = vrot.slane %v1917, 4
        %v1919 = vmax.f32 %v1917, %v1918
        %v1920 = vrot.slane %v1919, 2
        %v1921 = vmax.f32 %v1919, %v1920
        %v1922 = vrot.slane %v1921, 1
        %v1923 = vmax.f32 %v1921, %v1922
        %v1924 = vmax.f32 %v1909, 0.0
        %v1925 = vmax.f32 %v1916, 0.0
        %v1926 = vmax.f32 %v1923, 0.0
        %v1927 = vpack.c.bf16 %v1925, %v1924
        %v1928 = vpack.c.bf16 %v1926, %v1926
        %v1929 = vld [vmem:[%s241 + $0xc] sm:$0x22]
        %v1930 = vsel %vm1609, %v1927, %v1929
        %1931 = vst [vmem:[%s241 + $0xc] sm:$0x22] %v1930
        %v1932 = vld [vmem:[%s241 + $0x14] sm:$0x2]
        %v1933 = vsel %vm1614, %v1928, %v1932
        %1934 = vst [vmem:[%s241 + $0x14] sm:$0x2] %v1933
        %v1935 = vld [vmem:[#allocation2 + $0x30] sm:$0xc0]
        %v1936 = vld [vmem:[#allocation2 + $0x38] sm:$0xc0]
        %v1937 = vld [vmem:[#allocation2 + $0x40] sm:$0xc0]
        %v1938 = vsel %vm1621, %v1935, -inf
        %v1939 = vrot.slane %v1938, 4
        %v1940 = vmax.f32 %v1938, %v1939
        %v1941 = vrot.slane %v1940, 2
        %v1942 = vmax.f32 %v1940, %v1941
        %v1943 = vrot.slane %v1942, 1
        %v1944 = vmax.f32 %v1942, %v1943
        %v1945 = vsel %vm1621, %v1936, -inf
        %v1946 = vrot.slane %v1945, 4
        %v1947 = vmax.f32 %v1945, %v1946
        %v1948 = vrot.slane %v1947, 2
        %v1949 = vmax.f32 %v1947, %v1948
        %v1950 = vrot.slane %v1949, 1
        %v1951 = vmax.f32 %v1949, %v1950
        %v1952 = vsel %vm1636, %v1937, -inf
        %v1953 = vrot.slane %v1952, 4
        %v1954 = vmax.f32 %v1952, %v1953
        %v1955 = vrot.slane %v1954, 2
        %v1956 = vmax.f32 %v1954, %v1955
        %v1957 = vrot.slane %v1956, 1
        %v1958 = vmax.f32 %v1956, %v1957
        %v1959 = vmax.f32 %v1944, 0.0
        %v1960 = vmax.f32 %v1951, 0.0
        %v1961 = vmax.f32 %v1958, 0.0
        %v1962 = vpack.c.bf16 %v1960, %v1959
        %v1963 = vpack.c.bf16 %v1961, %v1961
        %v1964 = vld [vmem:[%s241 + $0xc] sm:$0x22]
        %v1965 = vsel %vm1653, %v1962, %v1964
        %1966 = vst [vmem:[%s241 + $0xc] sm:$0x22] %v1965
        %v1967 = vld [vmem:[%s241 + $0x14] sm:$0x2]
        %v1968 = vsel %vm1657, %v1963, %v1967
        %1969 = vst [vmem:[%s241 + $0x14] sm:$0x2] %v1968
        %v1970 = vld [vmem:[#allocation2 + $0x48] sm:$0x3]
        %v1971 = vld [vmem:[#allocation2 + $0x50] sm:$0x3]
        %v1972 = vld [vmem:[#allocation2 + $0x58] sm:$0x3]
        %v1973 = vsel %vm1486, %v1970, -inf
        %v1974 = vrot.slane %v1973, 4
        %v1975 = vmax.f32 %v1973, %v1974
        %v1976 = vrot.slane %v1975, 2
        %v1977 = vmax.f32 %v1975, %v1976
        %v1978 = vrot.slane %v1977, 1
        %v1979 = vmax.f32 %v1977, %v1978
        %v1980 = vsel %vm1486, %v1971, -inf
        %v1981 = vrot.slane %v1980, 4
        %v1982 = vmax.f32 %v1980, %v1981
        %v1983 = vrot.slane %v1982, 2
        %v1984 = vmax.f32 %v1982, %v1983
        %v1985 = vrot.slane %v1984, 1
        %v1986 = vmax.f32 %v1984, %v1985
        %v1987 = vsel %vm1501, %v1972, -inf
        %v1988 = vrot.slane %v1987, 4
        %v1989 = vmax.f32 %v1987, %v1988
        %v1990 = vrot.slane %v1989, 2
        %v1991 = vmax.f32 %v1989, %v1990
        %v1992 = vrot.slane %v1991, 1
        %v1993 = vmax.f32 %v1991, %v1992
        %v1994 = vmax.f32 %v1979, 0.0
        %v1995 = vmax.f32 %v1986, 0.0
        %v1996 = vmax.f32 %v1993, 0.0
        %v1997 = vpack.c.bf16 %v1995, %v1994
        %v1998 = vpack.c.bf16 %v1996, %v1996
        %v1999 = vld [vmem:[%s241 + $0xc] sm:$0x44]
        %v2000 = vsel %vm1696, %v1997, %v1999
        %2001 = vst [vmem:[%s241 + $0xc] sm:$0x44] %v2000
        %v2002 = vld [vmem:[%s241 + $0x14] sm:$0x4]
        %v2003 = vsel %vm1701, %v1998, %v2002
        %2004 = vst [vmem:[%s241 + $0x14] sm:$0x4] %v2003
        %v2005 = vld [vmem:[#allocation2 + $0x48] sm:$0xc]
        %v2006 = vld [vmem:[#allocation2 + $0x50] sm:$0xc]
        %v2007 = vld [vmem:[#allocation2 + $0x58] sm:$0xc]
        %v2008 = vsel %vm1532, %v2005, -inf
        %v2009 = vrot.slane %v2008, 4
        %v2010 = vmax.f32 %v2008, %v2009
        %v2011 = vrot.slane %v2010, 2
        %v2012 = vmax.f32 %v2010, %v2011
        %v2013 = vrot.slane %v2012, 1
        %v2014 = vmax.f32 %v2012, %v2013
        %v2015 = vsel %vm1532, %v2006, -inf
        %v2016 = vrot.slane %v2015, 4
        %v2017 = vmax.f32 %v2015, %v2016
        %v2018 = vrot.slane %v2017, 2
        %v2019 = vmax.f32 %v2017, %v2018
        %v2020 = vrot.slane %v2019, 1
        %v2021 = vmax.f32 %v2019, %v2020
        %v2022 = vsel %vm1547, %v2007, -inf
        %v2023 = vrot.slane %v2022, 4
        %v2024 = vmax.f32 %v2022, %v2023
        %v2025 = vrot.slane %v2024, 2
        %v2026 = vmax.f32 %v2024, %v2025
        %v2027 = vrot.slane %v2026, 1
        %v2028 = vmax.f32 %v2026, %v2027
        %v2029 = vmax.f32 %v2014, 0.0
        %v2030 = vmax.f32 %v2021, 0.0
        %v2031 = vmax.f32 %v2028, 0.0
        %v2032 = vpack.c.bf16 %v2030, %v2029
        %v2033 = vpack.c.bf16 %v2031, %v2031
        %v2034 = vld [vmem:[%s241 + $0xc] sm:$0x44]
        %v2035 = vsel %vm1738, %v2032, %v2034
        %2036 = vst [vmem:[%s241 + $0xc] sm:$0x44] %v2035
        %v2037 = vld [vmem:[%s241 + $0x14] sm:$0x4]
        %v2038 = vsel %vm1742, %v2033, %v2037
        %2039 = vst [vmem:[%s241 + $0x14] sm:$0x4] %v2038
        %v2040 = vld [vmem:[#allocation2 + $0x48] sm:$0x30]
        %v2041 = vld [vmem:[#allocation2 + $0x50] sm:$0x30]
        %v2042 = vld [vmem:[#allocation2 + $0x58] sm:$0x30]
        %v2043 = vsel %vm1575, %v2040, -inf
        %v2044 = vrot.slane %v2043, 4
        %v2045 = vmax.f32 %v2043, %v2044
        %v2046 = vrot.slane %v2045, 2
        %v2047 = vmax.f32 %v2045, %v2046
        %v2048 = vrot.slane %v2047, 1
        %v2049 = vmax.f32 %v2047, %v2048
        %v2050 = vsel %vm1575, %v2041, -inf
        %v2051 = vrot.slane %v2050, 4
        %v2052 = vmax.f32 %v2050, %v2051
        %v2053 = vrot.slane %v2052, 2
        %v2054 = vmax.f32 %v2052, %v2053
        %v2055 = vrot.slane %v2054, 1
        %v2056 = vmax.f32 %v2054, %v2055
        %v2057 = vsel %vm1590, %v2042, -inf
        %v2058 = vrot.slane %v2057, 4
        %v2059 = vmax.f32 %v2057, %v2058
        %v2060 = vrot.slane %v2059, 2
        %v2061 = vmax.f32 %v2059, %v2060
        %v2062 = vrot.slane %v2061, 1
        %v2063 = vmax.f32 %v2061, %v2062
        %v2064 = vmax.f32 %v2049, 0.0
        %v2065 = vmax.f32 %v2056, 0.0
        %v2066 = vmax.f32 %v2063, 0.0
        %v2067 = vpack.c.bf16 %v2065, %v2064
        %v2068 = vpack.c.bf16 %v2066, %v2066
        %v2069 = vld [vmem:[%s241 + $0xc] sm:$0x88]
        %v2070 = vsel %vm1780, %v2067, %v2069
        %2071 = vst [vmem:[%s241 + $0xc] sm:$0x88] %v2070
        %v2072 = vld [vmem:[%s241 + $0x14] sm:$0x8]
        %v2073 = vsel %vm1785, %v2068, %v2072
        %2074 = vst [vmem:[%s241 + $0x14] sm:$0x8] %v2073
        %p2075 = scmp.lt.s32.totalorder %s17, 1
        %s2076 = scalar_select %p2075, %s17, 1
        %s2077 = smul.addr %s2076, 6
        %s2078 = smul.addr %s2077, 4
        %s2079 = scalar_lea.vmem %s5, %s2078
        // Predicated region
        $region45: #{forward.3} parent=39 // pred_check
          %p2080 = pneg %p145
        $region46: #{forward.3} parent=39 // pred_check_branch
          %2082 = sbr.rel (%p2080) target = $region48
        $region47: #{forward.3} parent=39 // pred_region
          _
        $region48: #{forward.3} parent=39 // pred_fallthru
          _
      $region40: #{forward.3} parent=5 // pred_fallthru
        _
      %p2083 = scmp.le.s32.totalorder 2, %s12
      // Predicated region
      $region49: #{forward.3} parent=5 // pred_check
        %p2084 = pneg %p2083
      $region50: #{forward.3} parent=5 // pred_check_branch
        %2086 = sbr.rel (%p2084) target = $region52
      $region51: #{forward.3} parent=5 // pred_region
        %s2087 = ssub.s32 %s12, 2
        // Predicated region
        $region53: #{forward.3} parent=51 // pred_check
          %p2088 = pneg %p151
        $region54: #{forward.3} parent=51 // pred_check_branch
          %2090 = sbr.rel (%p2088) target = $region56
        $region55: #{forward.3} parent=51 // pred_region
          %p2091 = scmp.lt.s32.totalorder %s18, 1
          %s2092 = scalar_select %p2091, %s18, 1
          %s2093 = smul.addr %s2092, 6
          %s2094 = smul.addr %s2093, 4
          %s2095 = scalar_lea.vmem %s5, %s2094
        $region56: #{forward.3} parent=51 // pred_fallthru
          _
      $region52: #{forward.3} parent=5 // pred_fallthru
        _
    $region6: #{forward.3} parent=1 // loop_footer
      %s16 = sadd.s32 1, %s12
    $region7: #{forward.3} parent=1 // loop_footer_branch
      %11 = sbr.rel target = $region3
    $region8: #{forward.3} parent=1 // loop_exit
      _
    %2096 = vsyncpa [#allocation4], 1
    %s2097 = scalar_lea.sflag [#allocation4], 1
    %2098 = vsyncpa %s2097, 1

// kernel: forward.5
$region0: #{forward.5}
  #allocation0 [shape = 'u32[]', space=smem, size = 0x4, offset = 0x4, fixed_abs, tag = 'smem constant byte address 0x4 - core index']
  #allocation1 [shape = 'u32[72,128]{1,0:T(1,128)}', space=vmem, size = 0x9000, scoped, tag = 'internal scratch']
  %s0 = inlined_call_operand.vmem [shape: bf16[2,1440], index: 0, kind: input, shape index: {}]
  %s1 = inlined_call_operand.vmem [shape: bf16[1440,32], index: 1, kind: input, shape index: {}]
  %s2 = inlined_call_operand.vmem [shape: f32[1,32], index: 2, kind: input, shape index: {}]
  %s3 = inlined_call_operand.vmem [shape: f32[1,32], index: 3, kind: input, shape index: {}]
  %s4 = inlined_call_operand.vmem [shape: bf16[32,16], index: 4, kind: input, shape index: {}]
  %s5 = inlined_call_operand.vmem [shape: f32[1,16], index: 5, kind: input, shape index: {}]
  %s6 = inlined_call_operand.vmem [shape: f32[1,16], index: 6, kind: input, shape index: {}]
  %s7 = inlined_call_operand.vmem [shape: bf16[16,10], index: 7, kind: input, shape index: {}]
  %s8 = inlined_call_operand.vmem [shape: f32[1,10], index: 8, kind: input, shape index: {}]
  %s9 = inlined_call_operand.hbm [shape: f32[2,10], index: 9, kind: output, shape index: {}]
  %s10 = sld [smem:[#allocation0]]
  $region46: #{forward.5} parent=0
    _
  %s12 = ssub.s32 1, %s10
  %s13 = scalar_select 0, %s12, %s10
  $region1: #{forward.5} parent=0
    #allocation2 [shape = 'u8[1024]{0}', space=vmem, size = 0x400, scoped, tag = 'output window, operand 0, single buffered']
    #allocation3 [shape = 's32[1]{0}', space=sflag, size = 0x4, scoped, tag = 'scoped memory for forward.5']
    %14 = vsyncpa [#allocation3], 0
    // Predicated region
    $region2: #{forward.5} parent=1 // pred_check
      _
    $region3: #{forward.5} parent=1 // pred_check_branch
      %16 = sbr.rel (0) target = $region5
    $region4: #{forward.5} parent=1 // pred_region
      _
    $region5: #{forward.5} parent=1 // pred_fallthru
      _
    // Predicated region
    $region6: #{forward.5} parent=1 // pred_check
      _
    $region7: #{forward.5} parent=1 // pred_check_branch
      %18 = sbr.rel (0) target = $region9
    $region8: #{forward.5} parent=1 // pred_region
      _
    $region9: #{forward.5} parent=1 // pred_fallthru
      _
    // Predicated region
    $region10: #{forward.5} parent=1 // pred_check
      _
    $region11: #{forward.5} parent=1 // pred_check_branch
      %20 = sbr.rel (0) target = $region13
    $region12: #{forward.5} parent=1 // pred_region
      _
    $region13: #{forward.5} parent=1 // pred_fallthru
      _
    // Predicated region
    $region14: #{forward.5} parent=1 // pred_check
      _
    $region15: #{forward.5} parent=1 // pred_check_branch
      %22 = sbr.rel (0) target = $region17
    $region16: #{forward.5} parent=1 // pred_region
      _
    $region17: #{forward.5} parent=1 // pred_fallthru
      _
    // Predicated region
    $region18: #{forward.5} parent=1 // pred_check
      _
    $region19: #{forward.5} parent=1 // pred_check_branch
      %24 = sbr.rel (0) target = $region21
    $region20: #{forward.5} parent=1 // pred_region
      _
    $region21: #{forward.5} parent=1 // pred_fallthru
      _
    // Predicated region
    $region22: #{forward.5} parent=1 // pred_check
      _
    $region23: #{forward.5} parent=1 // pred_check_branch
      %26 = sbr.rel (0) target = $region25
    $region24: #{forward.5} parent=1 // pred_region
      _
    $region25: #{forward.5} parent=1 // pred_fallthru
      _
    // Predicated region
    $region26: #{forward.5} parent=1 // pred_check
      _
    $region27: #{forward.5} parent=1 // pred_check_branch
      %28 = sbr.rel (0) target = $region29
    $region28: #{forward.5} parent=1 // pred_region
      _
    $region29: #{forward.5} parent=1 // pred_fallthru
      _
    // Predicated region
    $region30: #{forward.5} parent=1 // pred_check
      _
    $region31: #{forward.5} parent=1 // pred_check_branch
      %30 = sbr.rel (0) target = $region33
    $region32: #{forward.5} parent=1 // pred_region
      _
    $region33: #{forward.5} parent=1 // pred_fallthru
      _
    // Predicated region
    $region34: #{forward.5} parent=1 // pred_check
      _
    $region35: #{forward.5} parent=1 // pred_check_branch
      %32 = sbr.rel (0) target = $region37
    $region36: #{forward.5} parent=1 // pred_region
      _
    $region37: #{forward.5} parent=1 // pred_fallthru
      _
    %v34 = vld [vmem:[%s0] sm:$0xff]
    %v35 = vld [vmem:[%s0 + $0x8] sm:$0xf]
    %v36 = vld [vmem:[%s1] sm:$0xf]
    %v37 = vld [vmem:[%s1 + $0x4] sm:$0xf]
    %v38 = vld [vmem:[%s1 + $0x8] sm:$0xf]
    %v39 = vld [vmem:[%s1 + $0xc] sm:$0xf]
    %v40 = vld [vmem:[%s1 + $0x10] sm:$0xf]
    %v41 = vld [vmem:[%s1 + $0x14] sm:$0xf]
    %v42 = vld [vmem:[%s1 + $0x18] sm:$0xf]
    %v43 = vld [vmem:[%s1 + $0x1c] sm:$0xf]
    %v44 = vld [vmem:[%s1 + $0x20] sm:$0xf]
    %v45 = vld [vmem:[%s1 + $0x24] sm:$0xf]
    %v46 = vld [vmem:[%s1 + $0x28] sm:$0xf]
    %v47 = vld [vmem:[%s1 + $0x2c] sm:$0xf]
    %v48 = vld [vmem:[%s1 + $0x30] sm:$0xf]
    %v49 = vld [vmem:[%s1 + $0x34] sm:$0xf]
    %v50 = vld [vmem:[%s1 + $0x38] sm:$0xf]
    %v51 = vld [vmem:[%s1 + $0x3c] sm:$0xf]
    %v52 = vld [vmem:[%s1 + $0x40] sm:$0xf]
    %v53 = vld [vmem:[%s1 + $0x44] sm:$0xf]
    %v54 = vld [vmem:[%s1 + $0x48] sm:$0xf]
    %v55 = vld [vmem:[%s1 + $0x4c] sm:$0xf]
    %v56 = vld [vmem:[%s1 + $0x50] sm:$0xf]
    %v57 = vld [vmem:[%s1 + $0x54] sm:$0xf]
    %v58 = vld [vmem:[%s1 + $0x58] sm:$0xf]
    %v59 = vld [vmem:[%s1 + $0x5c] sm:$0xf]
    %v60 = vld [vmem:[%s1 + $0x60] sm:$0xf]
    %v61 = vld [vmem:[%s1 + $0x64] sm:$0xf]
    %v62 = vld [vmem:[%s1 + $0x68] sm:$0xf]
    %v63 = vld [vmem:[%s1 + $0x6c] sm:$0xf]
    %v64 = vld [vmem:[%s1 + $0x70] sm:$0xf]
    %v65 = vld [vmem:[%s1 + $0x74] sm:$0xf]
    %v66 = vld [vmem:[%s1 + $0x78] sm:$0xf]
    %v67 = vld [vmem:[%s1 + $0x7c] sm:$0xf]
    %v68 = vld [vmem:[%s1 + $0x80] sm:$0xf]
    %v69 = vld [vmem:[%s1 + $0x84] sm:$0xf]
    %v70 = vld [vmem:[%s1 + $0x88] sm:$0xf]
    %v71 = vld [vmem:[%s1 + $0x8c] sm:$0xf]
    %v72 = vld [vmem:[%s1 + $0x90] sm:$0xf]
    %v73 = vld [vmem:[%s1 + $0x94] sm:$0xf]
    %v74 = vld [vmem:[%s1 + $0x98] sm:$0xf]
    %v75 = vld [vmem:[%s1 + $0x9c] sm:$0xf]
    %v76 = vld [vmem:[%s1 + $0xa0] sm:$0xf]
    %v77 = vld [vmem:[%s1 + $0xa4] sm:$0xf]
    %v78 = vld [vmem:[%s1 + $0xa8] sm:$0xf]
    %v79 = vld [vmem:[%s1 + $0xac] sm:$0xf]
    %v80 = vld [vmem:[%s1 + $0xb0] sm:$0xf]
    %v81 = vld [vmem:[%s1 + $0xb4] sm:$0xf]
    %v82 = vld [vmem:[%s1 + $0xb8] sm:$0xf]
    %v83 = vld [vmem:[%s1 + $0xbc] sm:$0xf]
    %v84 = vld [vmem:[%s1 + $0xc0] sm:$0xf]
    %v85 = vld [vmem:[%s1 + $0xc4] sm:$0xf]
    %v86 = vld [vmem:[%s1 + $0xc8] sm:$0xf]
    %v87 = vld [vmem:[%s1 + $0xcc] sm:$0xf]
    %v88 = vld [vmem:[%s1 + $0xd0] sm:$0xf]
    %v89 = vld [vmem:[%s1 + $0xd4] sm:$0xf]
    %v90 = vld [vmem:[%s1 + $0xd8] sm:$0xf]
    %v91 = vld [vmem:[%s1 + $0xdc] sm:$0xf]
    %v92 = vld [vmem:[%s1 + $0xe0] sm:$0xf]
    %v93 = vld [vmem:[%s1 + $0xe4] sm:$0xf]
    %v94 = vld [vmem:[%s1 + $0xe8] sm:$0xf]
    %v95 = vld [vmem:[%s1 + $0xec] sm:$0xf]
    %v96 = vld [vmem:[%s1 + $0xf0] sm:$0xf]
    %v97 = vld [vmem:[%s1 + $0xf4] sm:$0xf]
    %v98 = vld [vmem:[%s1 + $0xf8] sm:$0xf]
    %v99 = vld [vmem:[%s1 + $0xfc] sm:$0xf]
    %v100 = vld [vmem:[%s1 + $0x100] sm:$0xf]
    %v101 = vld [vmem:[%s1 + $0x104] sm:$0xf]
    %v102 = vld [vmem:[%s1 + $0x108] sm:$0xf]
    %v103 = vld [vmem:[%s1 + $0x10c] sm:$0xf]
    %v104 = vld [vmem:[%s1 + $0x110] sm:$0xf]
    %v105 = vld [vmem:[%s1 + $0x114] sm:$0xf]
    %v106 = vld [vmem:[%s1 + $0x118] sm:$0xf]
    %v107 = vld [vmem:[%s1 + $0x11c] sm:$0xf]
    %v108 = vld [vmem:[%s1 + $0x120] sm:$0xf]
    %v109 = vld [vmem:[%s1 + $0x124] sm:$0xf]
    %v110 = vld [vmem:[%s1 + $0x128] sm:$0xf]
    %v111 = vld [vmem:[%s1 + $0x12c] sm:$0xf]
    %v112 = vld [vmem:[%s1 + $0x130] sm:$0xf]
    %v113 = vld [vmem:[%s1 + $0x134] sm:$0xf]
    %v114 = vld [vmem:[%s1 + $0x138] sm:$0xf]
    %v115 = vld [vmem:[%s1 + $0x13c] sm:$0xf]
    %v116 = vld [vmem:[%s1 + $0x140] sm:$0xf]
    %v117 = vld [vmem:[%s1 + $0x144] sm:$0xf]
    %v118 = vld [vmem:[%s1 + $0x148] sm:$0xf]
    %v119 = vld [vmem:[%s1 + $0x14c] sm:$0xf]
    %v120 = vld [vmem:[%s1 + $0x150] sm:$0xf]
    %v121 = vld [vmem:[%s1 + $0x154] sm:$0xf]
    %v122 = vld [vmem:[%s1 + $0x158] sm:$0xf]
    %v123 = vld [vmem:[%s1 + $0x15c] sm:$0xf]
    %v124 = vld [vmem:[%s1 + $0x160] sm:$0xf]
    %v125 = vld [vmem:[%s1 + $0x164] sm:$0xf]
    %v126 = vld [vmem:[%s1 + $0x168] sm:$0xf]
    %v127 = vld [vmem:[%s1 + $0x16c] sm:$0xf]
    %v128 = vld [vmem:[%s1 + $0x170] sm:$0xf]
    %v129 = vld [vmem:[%s1 + $0x174] sm:$0xf]
    %v130 = vld [vmem:[%s1 + $0x178] sm:$0xf]
    %v131 = vld [vmem:[%s1 + $0x17c] sm:$0xf]
    %v132 = vld [vmem:[%s1 + $0x180] sm:$0xf]
    %v133 = vld [vmem:[%s1 + $0x184] sm:$0xf]
    %v134 = vld [vmem:[%s1 + $0x188] sm:$0xf]
    %v135 = vld [vmem:[%s1 + $0x18c] sm:$0xf]
    %v136 = vld [vmem:[%s1 + $0x190] sm:$0xf]
    %v137 = vld [vmem:[%s1 + $0x194] sm:$0xf]
    %v138 = vld [vmem:[%s1 + $0x198] sm:$0xf]
    %v139 = vld [vmem:[%s1 + $0x19c] sm:$0xf]
    %v140 = vld [vmem:[%s1 + $0x1a0] sm:$0xf]
    %v141 = vld [vmem:[%s1 + $0x1a4] sm:$0xf]
    %v142 = vld [vmem:[%s1 + $0x1a8] sm:$0xf]
    %v143 = vld [vmem:[%s1 + $0x1ac] sm:$0xf]
    %v144 = vld [vmem:[%s1 + $0x1b0] sm:$0xf]
    %v145 = vld [vmem:[%s1 + $0x1b4] sm:$0xf]
    %v146 = vld [vmem:[%s1 + $0x1b8] sm:$0xf]
    %v147 = vld [vmem:[%s1 + $0x1bc] sm:$0xf]
    %v148 = vld [vmem:[%s1 + $0x1c0] sm:$0xf]
    %v149 = vld [vmem:[%s1 + $0x1c4] sm:$0xf]
    %v150 = vld [vmem:[%s1 + $0x1c8] sm:$0xf]
    %v151 = vld [vmem:[%s1 + $0x1cc] sm:$0xf]
    %v152 = vld [vmem:[%s1 + $0x1d0] sm:$0xf]
    %v153 = vld [vmem:[%s1 + $0x1d4] sm:$0xf]
    %v154 = vld [vmem:[%s1 + $0x1d8] sm:$0xf]
    %v155 = vld [vmem:[%s1 + $0x1dc] sm:$0xf]
    %v156 = vld [vmem:[%s1 + $0x1e0] sm:$0xf]
    %v157 = vld [vmem:[%s1 + $0x1e4] sm:$0xf]
    %v158 = vld [vmem:[%s1 + $0x1e8] sm:$0xf]
    %v159 = vld [vmem:[%s1 + $0x1ec] sm:$0xf]
    %v160 = vld [vmem:[%s1 + $0x1f0] sm:$0xf]
    %v161 = vld [vmem:[%s1 + $0x1f4] sm:$0xf]
    %v162 = vld [vmem:[%s1 + $0x1f8] sm:$0xf]
    %v163 = vld [vmem:[%s1 + $0x1fc] sm:$0xf]
    %v164 = vld [vmem:[%s1 + $0x200] sm:$0xf]
    %v165 = vld [vmem:[%s1 + $0x204] sm:$0xf]
    %v166 = vld [vmem:[%s1 + $0x208] sm:$0xf]
    %v167 = vld [vmem:[%s1 + $0x20c] sm:$0xf]
    %v168 = vld [vmem:[%s1 + $0x210] sm:$0xf]
    %v169 = vld [vmem:[%s1 + $0x214] sm:$0xf]
    %v170 = vld [vmem:[%s1 + $0x218] sm:$0xf]
    %v171 = vld [vmem:[%s1 + $0x21c] sm:$0xf]
    %v172 = vld [vmem:[%s1 + $0x220] sm:$0xf]
    %v173 = vld [vmem:[%s1 + $0x224] sm:$0xf]
    %v174 = vld [vmem:[%s1 + $0x228] sm:$0xf]
    %v175 = vld [vmem:[%s1 + $0x22c] sm:$0xf]
    %v176 = vld [vmem:[%s1 + $0x230] sm:$0xf]
    %v177 = vld [vmem:[%s1 + $0x234] sm:$0xf]
    %v178 = vld [vmem:[%s1 + $0x238] sm:$0xf]
    %v179 = vld [vmem:[%s1 + $0x23c] sm:$0xf]
    %v180 = vld [vmem:[%s1 + $0x240] sm:$0xf]
    %v181 = vld [vmem:[%s1 + $0x244] sm:$0xf]
    %v182 = vld [vmem:[%s1 + $0x248] sm:$0xf]
    %v183 = vld [vmem:[%s1 + $0x24c] sm:$0xf]
    %v184 = vld [vmem:[%s1 + $0x250] sm:$0xf]
    %v185 = vld [vmem:[%s1 + $0x254] sm:$0xf]
    %v186 = vld [vmem:[%s1 + $0x258] sm:$0xf]
    %v187 = vld [vmem:[%s1 + $0x25c] sm:$0xf]
    %v188 = vld [vmem:[%s1 + $0x260] sm:$0xf]
    %v189 = vld [vmem:[%s1 + $0x264] sm:$0xf]
    %v190 = vld [vmem:[%s1 + $0x268] sm:$0xf]
    %v191 = vld [vmem:[%s1 + $0x26c] sm:$0xf]
    %v192 = vld [vmem:[%s1 + $0x270] sm:$0xf]
    %v193 = vld [vmem:[%s1 + $0x274] sm:$0xf]
    %v194 = vld [vmem:[%s1 + $0x278] sm:$0xf]
    %v195 = vld [vmem:[%s1 + $0x27c] sm:$0xf]
    %v196 = vld [vmem:[%s1 + $0x280] sm:$0xf]
    %v197 = vld [vmem:[%s1 + $0x284] sm:$0xf]
    %v198 = vld [vmem:[%s1 + $0x288] sm:$0xf]
    %v199 = vld [vmem:[%s1 + $0x28c] sm:$0xf]
    %v200 = vld [vmem:[%s1 + $0x290] sm:$0xf]
    %v201 = vld [vmem:[%s1 + $0x294] sm:$0xf]
    %v202 = vld [vmem:[%s1 + $0x298] sm:$0xf]
    %v203 = vld [vmem:[%s1 + $0x29c] sm:$0xf]
    %v204 = vld [vmem:[%s1 + $0x2a0] sm:$0xf]
    %v205 = vld [vmem:[%s1 + $0x2a4] sm:$0xf]
    %v206 = vld [vmem:[%s1 + $0x2a8] sm:$0xf]
    %v207 = vld [vmem:[%s1 + $0x2ac] sm:$0xf]
    %v208 = vld [vmem:[%s1 + $0x2b0] sm:$0xf]
    %v209 = vld [vmem:[%s1 + $0x2b4] sm:$0xf]
    %v210 = vld [vmem:[%s1 + $0x2b8] sm:$0xf]
    %v211 = vld [vmem:[%s1 + $0x2bc] sm:$0xf]
    %v212 = vld [vmem:[%s1 + $0x2c0] sm:$0xf]
    %v213 = vld [vmem:[%s1 + $0x2c4] sm:$0xf]
    %v214 = vld [vmem:[%s1 + $0x2c8] sm:$0xf]
    %v215 = vld [vmem:[%s1 + $0x2cc] sm:$0xf]
    %217 = vst [vmem:[#allocation1] ss:$9 sm:$0xff] %v34
    %v218 = vld [vmem:[#allocation1] sm:$0xff]
    %v219 = vld [vmem:[#allocation1 + $0x9] sm:$0xff]
    %v220 = vld [vmem:[#allocation1 + $0x12] sm:$0xff]
    %v221 = vld [vmem:[#allocation1 + $0x1b] sm:$0xff]
    %v222 = vld [vmem:[#allocation1 + $0x24] sm:$0xff]
    %v223 = vld [vmem:[#allocation1 + $0x2d] sm:$0xff]
    %v224 = vld [vmem:[#allocation1 + $0x36] sm:$0xff]
    %v225 = vld [vmem:[#allocation1 + $0x3f] sm:$0xff]
    %227 = vst [vmem:[#allocation1] ss:$9 sm:$0xff] %v35
    %v228 = vld [vmem:[#allocation1] sm:$0xff]
    %v229 = vld [vmem:[#allocation1 + $0x9] sm:$0xff]
    %v230 = vld [vmem:[#allocation1 + $0x12] sm:$0xff]
    %v231 = vld [vmem:[#allocation1 + $0x1b] sm:$0xff]
    %v423 = vunpack.c.l.b16 %v36
    %v424 = vunpack.c.l.b16 %v37
    %v425 = vunpack.c.l.b16 %v38
    %v426 = vunpack.c.l.b16 %v39
    %v427 = vunpack.c.l.b16 %v40
    %v428 = vunpack.c.l.b16 %v41
    %v429 = vunpack.c.l.b16 %v42
    %v430 = vunpack.c.l.b16 %v43
    %v431 = vunpack.c.l.b16 %v44
    %v432 = vunpack.c.l.b16 %v45
    %v433 = vunpack.c.l.b16 %v46
    %v434 = vunpack.c.l.b16 %v47
    %v435 = vunpack.c.l.b16 %v48
    %v436 = vunpack.c.l.b16 %v49
    %v437 = vunpack.c.l.b16 %v50
    %v438 = vunpack.c.l.b16 %v51
    %v439 = vunpack.c.l.b16 %v52
    %v440 = vunpack.c.l.b16 %v53
    %v441 = vunpack.c.l.b16 %v54
    %v442 = vunpack.c.l.b16 %v55
    %v443 = vunpack.c.l.b16 %v56
    %v444 = vunpack.c.l.b16 %v57
    %v445 = vunpack.c.l.b16 %v58
    %v446 = vunpack.c.l.b16 %v59
    %v447 = vunpack.c.l.b16 %v60
    %v448 = vunpack.c.l.b16 %v61
    %v449 = vunpack.c.l.b16 %v62
    %v450 = vunpack.c.l.b16 %v63
    %v451 = vunpack.c.l.b16 %v64
    %v452 = vunpack.c.l.b16 %v65
    %v453 = vunpack.c.l.b16 %v66
    %v454 = vunpack.c.l.b16 %v67
    %v455 = vunpack.c.l.b16 %v68
    %v456 = vunpack.c.l.b16 %v69
    %v457 = vunpack.c.l.b16 %v70
    %v458 = vunpack.c.l.b16 %v71
    %v459 = vunpack.c.l.b16 %v72
    %v460 = vunpack.c.l.b16 %v73
    %v461 = vunpack.c.l.b16 %v74
    %v462 = vunpack.c.l.b16 %v75
    %v463 = vunpack.c.l.b16 %v76
    %v464 = vunpack.c.l.b16 %v77
    %v465 = vunpack.c.l.b16 %v78
    %v466 = vunpack.c.l.b16 %v79
    %v467 = vunpack.c.l.b16 %v80
    %v468 = vunpack.c.l.b16 %v81
    %v469 = vunpack.c.l.b16 %v82
    %v470 = vunpack.c.l.b16 %v83
    %v471 = vunpack.c.l.b16 %v84
    %v472 = vunpack.c.l.b16 %v85
    %v473 = vunpack.c.l.b16 %v86
    %v474 = vunpack.c.l.b16 %v87
    %v475 = vunpack.c.l.b16 %v88
    %v476 = vunpack.c.l.b16 %v89
    %v477 = vunpack.c.l.b16 %v90
    %v478 = vunpack.c.l.b16 %v91
    %v479 = vunpack.c.l.b16 %v92
    %v480 = vunpack.c.l.b16 %v93
    %v481 = vunpack.c.l.b16 %v94
    %v482 = vunpack.c.l.b16 %v95
    %v483 = vunpack.c.l.b16 %v96
    %v484 = vunpack.c.l.b16 %v97
    %v485 = vunpack.c.l.b16 %v98
    %v486 = vunpack.c.l.b16 %v99
    %v487 = vunpack.c.l.b16 %v100
    %v488 = vunpack.c.l.b16 %v101
    %v489 = vunpack.c.l.b16 %v102
    %v490 = vunpack.c.l.b16 %v103
    %v491 = vunpack.c.l.b16 %v104
    %v492 = vunpack.c.l.b16 %v105
    %v493 = vunpack.c.l.b16 %v106
    %v494 = vunpack.c.l.b16 %v107
    %v495 = vunpack.c.l.b16 %v108
    %v496 = vunpack.c.l.b16 %v109
    %v497 = vunpack.c.l.b16 %v110
    %v498 = vunpack.c.l.b16 %v111
    %v499 = vunpack.c.l.b16 %v112
    %v500 = vunpack.c.l.b16 %v113
    %v501 = vunpack.c.l.b16 %v114
    %v502 = vunpack.c.l.b16 %v115
    %v503 = vunpack.c.l.b16 %v116
    %v504 = vunpack.c.l.b16 %v117
    %v505 = vunpack.c.l.b16 %v118
    %v506 = vunpack.c.l.b16 %v119
    %v507 = vunpack.c.l.b16 %v120
    %v508 = vunpack.c.l.b16 %v121
    %v509 = vunpack.c.l.b16 %v122
    %v510 = vunpack.c.l.b16 %v123
    %v511 = vunpack.c.l.b16 %v124
    %v512 = vunpack.c.l.b16 %v125
    %v513 = vunpack.c.l.b16 %v126
    %v514 = vunpack.c.l.b16 %v127
    %v515 = vunpack.c.l.b16 %v128
    %v516 = vunpack.c.l.b16 %v129
    %v517 = vunpack.c.l.b16 %v130
    %v518 = vunpack.c.l.b16 %v131
    %v519 = vunpack.c.l.b16 %v132
    %v520 = vunpack.c.l.b16 %v133
    %v521 = vunpack.c.l.b16 %v134
    %v522 = vunpack.c.l.b16 %v135
    %v523 = vunpack.c.l.b16 %v136
    %v524 = vunpack.c.l.b16 %v137
    %v525 = vunpack.c.l.b16 %v138
    %v526 = vunpack.c.l.b16 %v139
    %v527 = vunpack.c.l.b16 %v140
    %v528 = vunpack.c.l.b16 %v141
    %v529 = vunpack.c.l.b16 %v142
    %v530 = vunpack.c.l.b16 %v143
    %v531 = vunpack.c.l.b16 %v144
    %v532 = vunpack.c.l.b16 %v145
    %v533 = vunpack.c.l.b16 %v146
    %v534 = vunpack.c.l.b16 %v147
    %v535 = vunpack.c.l.b16 %v148
    %v536 = vunpack.c.l.b16 %v149
    %v537 = vunpack.c.l.b16 %v150
    %v538 = vunpack.c.l.b16 %v151
    %v539 = vunpack.c.l.b16 %v152
    %v540 = vunpack.c.l.b16 %v153
    %v541 = vunpack.c.l.b16 %v154
    %v542 = vunpack.c.l.b16 %v155
    %v543 = vunpack.c.l.b16 %v156
    %v544 = vunpack.c.l.b16 %v157
    %v545 = vunpack.c.l.b16 %v158
    %v546 = vunpack.c.l.b16 %v159
    %v547 = vunpack.c.l.b16 %v160
    %v548 = vunpack.c.l.b16 %v161
    %v549 = vunpack.c.l.b16 %v162
    %v550 = vunpack.c.l.b16 %v163
    %v551 = vunpack.c.l.b16 %v164
    %v552 = vunpack.c.l.b16 %v165
    %v553 = vunpack.c.l.b16 %v166
    %v554 = vunpack.c.l.b16 %v167
    %v555 = vunpack.c.l.b16 %v168
    %v556 = vunpack.c.l.b16 %v169
    %v557 = vunpack.c.l.b16 %v170
    %v558 = vunpack.c.l.b16 %v171
    %v559 = vunpack.c.l.b16 %v172
    %v560 = vunpack.c.l.b16 %v173
    %v561 = vunpack.c.l.b16 %v174
    %v562 = vunpack.c.l.b16 %v175
    %v563 = vunpack.c.l.b16 %v176
    %v564 = vunpack.c.l.b16 %v177
    %v565 = vunpack.c.l.b16 %v178
    %v566 = vunpack.c.l.b16 %v179
    %v567 = vunpack.c.l.b16 %v180
    %v568 = vunpack.c.l.b16 %v181
    %v569 = vunpack.c.l.b16 %v182
    %v570 = vunpack.c.l.b16 %v183
    %v571 = vunpack.c.l.b16 %v184
    %v572 = vunpack.c.l.b16 %v185
    %v573 = vunpack.c.l.b16 %v186
    %v574 = vunpack.c.l.b16 %v187
    %v575 = vunpack.c.l.b16 %v188
    %v576 = vunpack.c.l.b16 %v189
    %v577 = vunpack.c.l.b16 %v190
    %v578 = vunpack.c.l.b16 %v191
    %v579 = vunpack.c.l.b16 %v192
    %v580 = vunpack.c.l.b16 %v193
    %v581 = vunpack.c.l.b16 %v194
    %v582 = vunpack.c.l.b16 %v195
    %v583 = vunpack.c.l.b16 %v196
    %v584 = vunpack.c.l.b16 %v197
    %v585 = vunpack.c.l.b16 %v198
    %v586 = vunpack.c.l.b16 %v199
    %v587 = vunpack.c.l.b16 %v200
    %v588 = vunpack.c.l.b16 %v201
    %v589 = vunpack.c.l.b16 %v202
    %v590 = vunpack.c.l.b16 %v203
    %v591 = vunpack.c.l.b16 %v204
    %v592 = vunpack.c.l.b16 %v205
    %v593 = vunpack.c.l.b16 %v206
    %v594 = vunpack.c.l.b16 %v207
    %v595 = vunpack.c.l.b16 %v208
    %v596 = vunpack.c.l.b16 %v209
    %v597 = vunpack.c.l.b16 %v210
    %v598 = vunpack.c.l.b16 %v211
    %v599 = vunpack.c.l.b16 %v212
    %v600 = vunpack.c.l.b16 %v213
    %v601 = vunpack.c.l.b16 %v214
    %v602 = vunpack.c.l.b16 %v215
    %v603 = vpack.c.b16 %v424, %v423
    %v604 = vpack.c.b16 %v426, %v425
    %v605 = vpack.c.b16 %v428, %v427
    %v606 = vpack.c.b16 %v430, %v429
    %v607 = vpack.c.b16 %v432, %v431
    %v608 = vpack.c.b16 %v434, %v433
    %v609 = vpack.c.b16 %v436, %v435
    %v610 = vpack.c.b16 %v438, %v437
    %v611 = vpack.c.b16 %v440, %v439
    %v612 = vpack.c.b16 %v442, %v441
    %v613 = vpack.c.b16 %v444, %v443
    %v614 = vpack.c.b16 %v446, %v445
    %v615 = vpack.c.b16 %v448, %v447
    %v616 = vpack.c.b16 %v450, %v449
    %v617 = vpack.c.b16 %v452, %v451
    %v618 = vpack.c.b16 %v454, %v453
    %v619 = vpack.c.b16 %v456, %v455
    %v620 = vpack.c.b16 %v458, %v457
    %v621 = vpack.c.b16 %v460, %v459
    %v622 = vpack.c.b16 %v462, %v461
    %v623 = vpack.c.b16 %v464, %v463
    %v624 = vpack.c.b16 %v466, %v465
    %v625 = vpack.c.b16 %v468, %v467
    %v626 = vpack.c.b16 %v470, %v469
    %v627 = vpack.c.b16 %v472, %v471
    %v628 = vpack.c.b16 %v474, %v473
    %v629 = vpack.c.b16 %v476, %v475
    %v630 = vpack.c.b16 %v478, %v477
    %v631 = vpack.c.b16 %v480, %v479
    %v632 = vpack.c.b16 %v482, %v481
    %v633 = vpack.c.b16 %v484, %v483
    %v634 = vpack.c.b16 %v486, %v485
    %v635 = vpack.c.b16 %v488, %v487
    %v636 = vpack.c.b16 %v490, %v489
    %v637 = vpack.c.b16 %v492, %v491
    %v638 = vpack.c.b16 %v494, %v493
    %v639 = vpack.c.b16 %v496, %v495
    %v640 = vpack.c.b16 %v498, %v497
    %v641 = vpack.c.b16 %v500, %v499
    %v642 = vpack.c.b16 %v502, %v501
    %v643 = vpack.c.b16 %v504, %v503
    %v644 = vpack.c.b16 %v506, %v505
    %v645 = vpack.c.b16 %v508, %v507
    %v646 = vpack.c.b16 %v510, %v509
    %v647 = vpack.c.b16 %v512, %v511
    %v648 = vpack.c.b16 %v514, %v513
    %v649 = vpack.c.b16 %v516, %v515
    %v650 = vpack.c.b16 %v518, %v517
    %v651 = vpack.c.b16 %v520, %v519
    %v652 = vpack.c.b16 %v522, %v521
    %v653 = vpack.c.b16 %v524, %v523
    %v654 = vpack.c.b16 %v526, %v525
    %v655 = vpack.c.b16 %v528, %v527
    %v656 = vpack.c.b16 %v530, %v529
    %v657 = vpack.c.b16 %v532, %v531
    %v658 = vpack.c.b16 %v534, %v533
    %v659 = vpack.c.b16 %v536, %v535
    %v660 = vpack.c.b16 %v538, %v537
    %v661 = vpack.c.b16 %v540, %v539
    %v662 = vpack.c.b16 %v542, %v541
    %v663 = vpack.c.b16 %v544, %v543
    %v664 = vpack.c.b16 %v546, %v545
    %v665 = vpack.c.b16 %v548, %v547
    %v666 = vpack.c.b16 %v550, %v549
    %v667 = vpack.c.b16 %v552, %v551
    %v668 = vpack.c.b16 %v554, %v553
    %v669 = vpack.c.b16 %v556, %v555
    %v670 = vpack.c.b16 %v558, %v557
    %v671 = vpack.c.b16 %v560, %v559
    %v672 = vpack.c.b16 %v562, %v561
    %v673 = vpack.c.b16 %v564, %v563
    %v674 = vpack.c.b16 %v566, %v565
    %v675 = vpack.c.b16 %v568, %v567
    %v676 = vpack.c.b16 %v570, %v569
    %v677 = vpack.c.b16 %v572, %v571
    %v678 = vpack.c.b16 %v574, %v573
    %v679 = vpack.c.b16 %v576, %v575
    %v680 = vpack.c.b16 %v578, %v577
    %v681 = vpack.c.b16 %v580, %v579
    %v682 = vpack.c.b16 %v582, %v581
    %v683 = vpack.c.b16 %v584, %v583
    %v684 = vpack.c.b16 %v586, %v585
    %v685 = vpack.c.b16 %v588, %v587
    %v686 = vpack.c.b16 %v590, %v589
    %v687 = vpack.c.b16 %v592, %v591
    %v688 = vpack.c.b16 %v594, %v593
    %v689 = vpack.c.b16 %v596, %v595
    %v690 = vpack.c.b16 %v598, %v597
    %v691 = vpack.c.b16 %v600, %v599
    %v692 = vpack.c.b16 %v602, %v601
    %vm783 = vcmask 261120
    %v784 = vsel %vm783, %v231, 0
    %786 = vmatpush.bf16.msra.mxu0 %v610
    %787 = vmatpush.bf16.msra.mxu0 %v609
    %788 = vmatpush.bf16.msra.mxu0 %v608
    %789 = vmatpush.bf16.msra.mxu0 %v607
    %790 = vmatpush.bf16.msra.mxu0 %v606
    %791 = vmatpush.bf16.msra.mxu0 %v605
    %792 = vmatpush.bf16.msra.mxu0 %v604
    %793 = vmatpush.bf16.msra.mxu0 %v603
    %794 = vmatmul.bf16.gmra.mxu0 %v218
    %v795 = vpop.f32.mrf.mxu0
    %v796 = vadd.f32 0.0, %v795
    %v797 = vpop.f32.mrf.mxu0
    %798 = vdwg.mxu0
    %799 = vmatpush.bf16.msra.mxu0 %v618
    %800 = vmatpush.bf16.msra.mxu0 %v617
    %801 = vmatpush.bf16.msra.mxu0 %v616
    %802 = vmatpush.bf16.msra.mxu0 %v615
    %803 = vmatpush.bf16.msra.mxu0 %v614
    %804 = vmatpush.bf16.msra.mxu0 %v613
    %805 = vmatpush.bf16.msra.mxu0 %v612
    %806 = vmatpush.bf16.msra.mxu0 %v611
    %807 = vmatmul.bf16.gmra.mxu0 %v219
    %v808 = vpop.f32.mrf.mxu0
    %v809 = vadd.f32 %v796, %v808
    %v810 = vpop.f32.mrf.mxu0
    %811 = vdwg.mxu0
    %812 = vmatpush.bf16.msra.mxu0 %v626
    %813 = vmatpush.bf16.msra.mxu0 %v625
    %814 = vmatpush.bf16.msra.mxu0 %v624
    %815 = vmatpush.bf16.msra.mxu0 %v623
    %816 = vmatpush.bf16.msra.mxu0 %v622
    %817 = vmatpush.bf16.msra.mxu0 %v621
    %818 = vmatpush.bf16.msra.mxu0 %v620
    %819 = vmatpush.bf16.msra.mxu0 %v619
    %820 = vmatmul.bf16.gmra.mxu0 %v220
    %v821 = vpop.f32.mrf.mxu0
    %v822 = vadd.f32 %v809, %v821
    %v823 = vpop.f32.mrf.mxu0
    %824 = vdwg.mxu0
    %825 = vmatpush.bf16.msra.mxu0 %v634
    %826 = vmatpush.bf16.msra.mxu0 %v633
    %827 = vmatpush.bf16.msra.mxu0 %v632
    %828 = vmatpush.bf16.msra.mxu0 %v631
    %829 = vmatpush.bf16.msra.mxu0 %v630
    %830 = vmatpush.bf16.msra.mxu0 %v629
    %831 = vmatpush.bf16.msra.mxu0 %v628
    %832 = vmatpush.bf16.msra.mxu0 %v627
    %833 = vmatmul.bf16.gmra.mxu0 %v221
    %v834 = vpop.f32.mrf.mxu0
    %v835 = vadd.f32 %v822, %v834
    %v836 = vpop.f32.mrf.mxu0
    %837 = vdwg.mxu0
    %838 = vmatpush.bf16.msra.mxu0 %v642
    %839 = vmatpush.bf16.msra.mxu0 %v641
    %840 = vmatpush.bf16.msra.mxu0 %v640
    %841 = vmatpush.bf16.msra.mxu0 %v639
    %842 = vmatpush.bf16.msra.mxu0 %v638
    %843 = vmatpush.bf16.msra.mxu0 %v637
    %844 = vmatpush.bf16.msra.mxu0 %v636
    %845 = vmatpush.bf16.msra.mxu0 %v635
    %846 = vmatmul.bf16.gmra.mxu0 %v222
    %v847 = vpop.f32.mrf.mxu0
    %v848 = vadd.f32 %v835, %v847
    %v849 = vpop.f32.mrf.mxu0
    %850 = vdwg.mxu0
    %851 = vmatpush.bf16.msra.mxu0 %v650
    %852 = vmatpush.bf16.msra.mxu0 %v649
    %853 = vmatpush.bf16.msra.mxu0 %v648
    %854 = vmatpush.bf16.msra.mxu0 %v647
    %855 = vmatpush.bf16.msra.mxu0 %v646
    %856 = vmatpush.bf16.msra.mxu0 %v645
    %857 = vmatpush.bf16.msra.mxu0 %v644
    %858 = vmatpush.bf16.msra.mxu0 %v643
    %859 = vmatmul.bf16.gmra.mxu0 %v223
    %v860 = vpop.f32.mrf.mxu0
    %v861 = vadd.f32 %v848, %v860
    %v862 = vpop.f32.mrf.mxu0
    %863 = vdwg.mxu0
    %864 = vmatpush.bf16.msra.mxu0 %v658
    %865 = vmatpush.bf16.msra.mxu0 %v657
    %866 = vmatpush.bf16.msra.mxu0 %v656
    %867 = vmatpush.bf16.msra.mxu0 %v655
    %868 = vmatpush.bf16.msra.mxu0 %v654
    %869 = vmatpush.bf16.msra.mxu0 %v653
    %870 = vmatpush.bf16.msra.mxu0 %v652
    %871 = vmatpush.bf16.msra.mxu0 %v651
    %872 = vmatmul.bf16.gmra.mxu0 %v224
    %v873 = vpop.f32.mrf.mxu0
    %v874 = vadd.f32 %v861, %v873
    %v875 = vpop.f32.mrf.mxu0
    %876 = vdwg.mxu0
    %877 = vmatpush.bf16.msra.mxu0 %v666
    %878 = vmatpush.bf16.msra.mxu0 %v665
    %879 = vmatpush.bf16.msra.mxu0 %v664
    %880 = vmatpush.bf16.msra.mxu0 %v663
    %881 = vmatpush.bf16.msra.mxu0 %v662
    %882 = vmatpush.bf16.msra.mxu0 %v661
    %883 = vmatpush.bf16.msra.mxu0 %v660
    %884 = vmatpush.bf16.msra.mxu0 %v659
    %885 = vmatmul.bf16.gmra.mxu0 %v225
    %v886 = vpop.f32.mrf.mxu0
    %v887 = vadd.f32 %v874, %v886
    %v888 = vpop.f32.mrf.mxu0
    %889 = vdwg.mxu0
    %890 = vmatpush.bf16.msra.mxu0 %v674
    %891 = vmatpush.bf16.msra.mxu0 %v673
    %892 = vmatpush.bf16.msra.mxu0 %v672
    %893 = vmatpush.bf16.msra.mxu0 %v671
    %894 = vmatpush.bf16.msra.mxu0 %v670
    %895 = vmatpush.bf16.msra.mxu0 %v669
    %896 = vmatpush.bf16.msra.mxu0 %v668
    %897 = vmatpush.bf16.msra.mxu0 %v667
    %898 = vmatmul.bf16.gmra.mxu0 %v228
    %v899 = vpop.f32.mrf.mxu0
    %v900 = vadd.f32 %v887, %v899
    %v901 = vpop.f32.mrf.mxu0
    %902 = vdwg.mxu0
    %903 = vmatpush.bf16.msra.mxu0 %v682
    %904 = vmatpush.bf16.msra.mxu0 %v681
    %905 = vmatpush.bf16.msra.mxu0 %v680
    %906 = vmatpush.bf16.msra.mxu0 %v679
    %907 = vmatpush.bf16.msra.mxu0 %v678
    %908 = vmatpush.bf16.msra.mxu0 %v677
    %909 = vmatpush.bf16.msra.mxu0 %v676
    %910 = vmatpush.bf16.msra.mxu0 %v675
    %911 = vmatmul.bf16.gmra.mxu0 %v229
    %v912 = vpop.f32.mrf.mxu0
    %v913 = vadd.f32 %v900, %v912
    %v914 = vpop.f32.mrf.mxu0
    %915 = vdwg.mxu0
    %916 = vmatpush.bf16.msra.mxu0 %v690
    %917 = vmatpush.bf16.msra.mxu0 %v689
    %918 = vmatpush.bf16.msra.mxu0 %v688
    %919 = vmatpush.bf16.msra.mxu0 %v687
    %920 = vmatpush.bf16.msra.mxu0 %v686
    %921 = vmatpush.bf16.msra.mxu0 %v685
    %922 = vmatpush.bf16.msra.mxu0 %v684
    %923 = vmatpush.bf16.msra.mxu0 %v683
    %924 = vmatmul.bf16.gmra.mxu0 %v230
    %v925 = vpop.f32.mrf.mxu0
    %v926 = vadd.f32 %v913, %v925
    %v927 = vpop.f32.mrf.mxu0
    %928 = vdwg.mxu0
    %929 = vmatpush.bf16.msra.mxu0 0
    %930 = vmatpush.bf16.msra.mxu0 0
    %931 = vmatpush.bf16.msra.mxu0 0
    %932 = vmatpush.bf16.msra.mxu0 0
    %933 = vmatpush.bf16.msra.mxu0 0
    %934 = vmatpush.bf16.msra.mxu0 0
    %935 = vmatpush.bf16.msra.mxu0 %v692
    %936 = vmatpush.bf16.msra.mxu0 %v691
    %937 = vmatmul.bf16.gmra.mxu0 %v784
    %v938 = vpop.f32.mrf.mxu0
    %v939 = vadd.f32 %v926, %v938
    %v940 = vpop.f32.mrf.mxu0
    %941 = vdwg.mxu0
    %v942 = vld [vmem:[%s2] sm:$0x1]
    %v944 = vperm.slane %v942, 0
    %v946 = vmul.f32 %v939, %v944
    %v947 = vld [vmem:[%s3] sm:$0x1]
    %v949 = vperm.slane %v947, 0
    %v951 = vadd.f32 %v946, %v949
    %v952 = vmax.f32 %v951, 0.0
    %v953 = vpack.c.bf16 %v952, %v952
    %v954 = vld [vmem:[%s4] sm:$0xf]
    %v955 = vld [vmem:[%s4 + $0x4] sm:$0xf]
    %v956 = vld [vmem:[%s4 + $0x8] sm:$0xf]
    %v957 = vld [vmem:[%s4 + $0xc] sm:$0xf]
    %v962 = vunpack.c.l.b16 %v954
    %v963 = vunpack.c.l.b16 %v955
    %v964 = vunpack.c.l.b16 %v956
    %v965 = vunpack.c.l.b16 %v957
    %v966 = vpack.c.b16 %v963, %v962
    %v967 = vpack.c.b16 %v965, %v964
    %v971 = vsel %vm783, %v953, 0
    %973 = vmatpush.bf16.msra.mxu0 0
    %974 = vmatpush.bf16.msra.mxu0 0
    %975 = vmatpush.bf16.msra.mxu0 0
    %976 = vmatpush.bf16.msra.mxu0 0
    %977 = vmatpush.bf16.msra.mxu0 0
    %978 = vmatpush.bf16.msra.mxu0 0
    %979 = vmatpush.bf16.msra.mxu0 %v967
    %980 = vmatpush.bf16.msra.mxu0 %v966
    %981 = vmatmul.bf16.gmra.mxu0 %v971
    %v982 = vpop.f32.mrf.mxu0
    %v983 = vadd.f32 0.0, %v982
    %v984 = vpop.f32.mrf.mxu0
    %985 = vdwg.mxu0
    %v986 = vld [vmem:[%s5] sm:$0x1]
    %v988 = vperm.slane %v986, 0
    %v990 = vmul.f32 %v983, %v988
    %v991 = vld [vmem:[%s6] sm:$0x1]
    %v993 = vperm.slane %v991, 0
    %v995 = vadd.f32 %v990, %v993
    %v996 = vmax.f32 %v995, 0.0
    %v997 = vpack.c.bf16 %v996, %v996
    %v998 = vld [vmem:[%s7] sm:$0xf]
    %v999 = vld [vmem:[%s7 + $0x4] sm:$0xf]
    %v1000 = vld [vmem:[%s8] sm:$0x1]
    %v1002 = vperm.slane %v1000, 0
    %v1006 = vunpack.c.l.b16 %v998
    %v1007 = vunpack.c.l.b16 %v999
    %v1008 = vpack.c.b16 %v1007, %v1006
    %vm1010 = vcmask 130048
    %v1012 = vsel %vm1010, %v997, 0
    %1014 = vmatpush.bf16.msra.mxu0 0
    %1015 = vmatpush.bf16.msra.mxu0 0
    %1016 = vmatpush.bf16.msra.mxu0 0
    %1017 = vmatpush.bf16.msra.mxu0 0
    %1018 = vmatpush.bf16.msra.mxu0 0
    %1019 = vmatpush.bf16.msra.mxu0 0
    %1020 = vmatpush.bf16.msra.mxu0 0
    %1021 = vmatpush.bf16.msra.mxu0 %v1008
    %1022 = vmatmul.bf16.gmra.mxu0 %v1012
    %v1023 = vpop.f32.mrf.mxu0
    %v1024 = vadd.f32 %v1002, %v1023
    %v1025 = vpop.f32.mrf.mxu0
    %1026 = vdwg.mxu0
    %vm1027 = vcmask 74752
    %1028 = vst.msk [vmem:[#allocation2] sm:$0x3] %vm1027, %v1024
    // Predicated region
    $region38: #{forward.5} parent=1 // pred_check
      _
    $region39: #{forward.5} parent=1 // pred_check_branch
      %1030 = sbr.rel (0) target = $region41
    $region40: #{forward.5} parent=1 // pred_region
      %1032 = vsyncadd [#allocation3], 0
      %s1034 = sshll.u32 [#allocation2], 4
      %s1035 = int_to_ptr.vmem [resolvable:$true] %s1034
      %s1036 = sshll.u32 %s9, 4
      %s1037 = int_to_ptr.hbm [resolvable:$true] %s1036
      %1039 = dma.vmem_to_hbm [thread:$0]  %s1035, 32, %s1037, [#allocation3]
    $region41: #{forward.5} parent=1 // pred_fallthru
      _
    // Predicated region
    $region42: #{forward.5} parent=1 // pred_check
      _
    $region43: #{forward.5} parent=1 // pred_check_branch
      %1041 = sbr.rel (0) target = $region45
    $region44: #{forward.5} parent=1 // pred_region
      %1043 = dma.done [#allocation3], 32
    $region45: #{forward.5} parent=1 // pred_fallthru
      _
    %1044 = vsyncpa [#allocation3], 1

// kernel: forward.4
$region0: #{forward.4}
  #allocation0 [shape = 'u32[]', space=smem, size = 0x4, offset = 0x4, fixed_abs, tag = 'smem constant byte address 0x4 - core index']
  #allocation1 [shape = 'u32[72,128]{1,0:T(1,128)}', space=vmem, size = 0x9000, scoped, tag = 'internal scratch']
  #allocation2 [shape = 'f32[12,240]{1,0:T(8,128)}', space=vmem, size = 0x4000, scoped, tag = 'scratch operand']
  %s0 = inlined_call_operand.vmem [shape: bf16[2,15,300], index: 0, kind: input, shape index: {}]
  %s1 = inlined_call_operand.vmem [shape: bf16[4,300,240], index: 1, kind: input, shape index: {}]
  %s2 = inlined_call_operand.vmem [shape: bf16[4,300,240], index: 2, kind: input, shape index: {}]
  %s3 = inlined_call_operand.vmem [shape: f32[1,240], index: 3, kind: input, shape index: {}]
  %s4 = inlined_call_operand.vmem [shape: f32[1,240], index: 4, kind: input, shape index: {}]
  %s5 = inlined_call_operand.vmem [shape: bf16[2,6,240], index: 5, kind: output, shape index: {}]
  %s6 = sld [smem:[#allocation0]]
  $region53: #{forward.4} parent=0
    _
  %s8 = ssub.s32 1, %s6
  %s9 = scalar_select 0, %s8, %s6
  loop: start=0, step=1, limit=4
  $region2: #{forward.4} parent=0 // loop_pre_header
    _
  $region3: #{forward.4} parent=0 // loop_header
    %s11 = sphi 0, %s15
    %p12 = scmp.ge.s32.totalorder %s11, 4
    %s21 = sphi 0, %s23
    %s24 = sphi 0, %s21
    %s25 = sphi 0, %s24
    %s41 = sphi 0, %s25
    %s45 = sphi 0, %s45
    %s47 = sphi 0, %s45
    %s48 = sphi 0, %s47
    %s62 = sphi 0, %s48
    %s66 = sphi 0, %s66
    %s68 = sphi 0, %s66
    %s69 = sphi 0, %s68
    %s83 = sphi 0, %s69
    %s87 = sphi 0, %s87
    %s89 = sphi 0, %s87
    %s90 = sphi 0, %s89
    %s104 = sphi 0, %s90
    %s108 = sphi 0, %s108
    %s110 = sphi 0, %s108
    %s111 = sphi 0, %s110
    %s125 = sphi 0, %s111
    %s131 = sphi 0, %s133
    %s134 = sphi 0, %s131
    %s135 = sphi 0, %s134
    %s151 = sphi 0, %s135
  $region4: #{forward.4} parent=0 // loop_header_branch
    %14 = sbr.rel (%p12) target = $region8
  $region5: #{forward.4} parent=0 // loop_body
    %s16 = ssub.s32 %s11, 1
    %s17 = ssub.s32 %s11, 2
    %s18 = sadd.s32 %s11, 1
    %s19 = ssub.s32 %s11, %s18
    %p20 = scmp.eq.s32.totalorder %s19, 0
    %s22 = sadd.s32 %s21, 1
    %s23 = scalar_select %p20, %s21, %s22
    %p26 = pneg %p20
    %p27 = scmp.eq.s32.totalorder %s11, 1
    %p28 = por %p26, %p27
    %p29 = scmp.ne.s32.totalorder %s21, %s24
    %p30 = scmp.eq.s32.totalorder %s11, 0
    %p31 = por %p29, %p30
    %p32 = scmp.ne.s32.totalorder %s21, %s24
    %p33 = scmp.eq.s32.totalorder %s16, 1
    %p34 = por %p32, %p33
    %p35 = scmp.ne.s32.totalorder %s24, %s25
    %p36 = scmp.eq.s32.totalorder %s16, 0
    %p37 = por %p35, %p36
    %p38 = scmp.ne.s32.totalorder %s24, %s25
    %p39 = scmp.eq.s32.totalorder %s17, 1
    %p40 = por %p38, %p39
    %p42 = scmp.ne.s32.totalorder %s25, %s41
    %p43 = scmp.eq.s32.totalorder %s17, 0
    %p44 = por %p42, %p43
    %s46 = sadd.s32 %s45, 1
    %p49 = scmp.eq.s32.totalorder %s11, 1
    %p50 = scmp.ne.s32.totalorder %s45, %s47
    %p51 = scmp.eq.s32.totalorder %s11, 0
    %p52 = por %p50, %p51
    %p53 = scmp.ne.s32.totalorder %s45, %s47
    %p54 = scmp.eq.s32.totalorder %s16, 1
    %p55 = por %p53, %p54
    %p56 = scmp.ne.s32.totalorder %s47, %s48
    %p57 = scmp.eq.s32.totalorder %s16, 0
    %p58 = por %p56, %p57
    %p59 = scmp.ne.s32.totalorder %s47, %s48
    %p60 = scmp.eq.s32.totalorder %s17, 1
    %p61 = por %p59, %p60
    %p63 = scmp.ne.s32.totalorder %s48, %s62
    %p64 = scmp.eq.s32.totalorder %s17, 0
    %p65 = por %p63, %p64
    %s67 = sadd.s32 %s66, 1
    %p70 = scmp.eq.s32.totalorder %s11, 1
    %p71 = scmp.ne.s32.totalorder %s66, %s68
    %p72 = scmp.eq.s32.totalorder %s11, 0
    %p73 = por %p71, %p72
    %p74 = scmp.ne.s32.totalorder %s66, %s68
    %p75 = scmp.eq.s32.totalorder %s16, 1
    %p76 = por %p74, %p75
    %p77 = scmp.ne.s32.totalorder %s68, %s69
    %p78 = scmp.eq.s32.totalorder %s16, 0
    %p79 = por %p77, %p78
    %p80 = scmp.ne.s32.totalorder %s68, %s69
    %p81 = scmp.eq.s32.totalorder %s17, 1
    %p82 = por %p80, %p81
    %p84 = scmp.ne.s32.totalorder %s69, %s83
    %p85 = scmp.eq.s32.totalorder %s17, 0
    %p86 = por %p84, %p85
    %s88 = sadd.s32 %s87, 1
    %p91 = scmp.eq.s32.totalorder %s11, 1
    %p92 = scmp.ne.s32.totalorder %s87, %s89
    %p93 = scmp.eq.s32.totalorder %s11, 0
    %p94 = por %p92, %p93
    %p95 = scmp.ne.s32.totalorder %s87, %s89
    %p96 = scmp.eq.s32.totalorder %s16, 1
    %p97 = por %p95, %p96
    %p98 = scmp.ne.s32.totalorder %s89, %s90
    %p99 = scmp.eq.s32.totalorder %s16, 0
    %p100 = por %p98, %p99
    %p101 = scmp.ne.s32.totalorder %s89, %s90
    %p102 = scmp.eq.s32.totalorder %s17, 1
    %p103 = por %p101, %p102
    %p105 = scmp.ne.s32.totalorder %s90, %s104
    %p106 = scmp.eq.s32.totalorder %s17, 0
    %p107 = por %p105, %p106
    %s109 = sadd.s32 %s108, 1
    %p112 = scmp.eq.s32.totalorder %s11, 1
    %p113 = scmp.ne.s32.totalorder %s108, %s110
    %p114 = scmp.eq.s32.totalorder %s11, 0
    %p115 = por %p113, %p114
    %p116 = scmp.ne.s32.totalorder %s108, %s110
    %p117 = scmp.eq.s32.totalorder %s16, 1
    %p118 = por %p116, %p117
    %p119 = scmp.ne.s32.totalorder %s110, %s111
    %p120 = scmp.eq.s32.totalorder %s16, 0
    %p121 = por %p119, %p120
    %p122 = scmp.ne.s32.totalorder %s110, %s111
    %p123 = scmp.eq.s32.totalorder %s17, 1
    %p124 = por %p122, %p123
    %p126 = scmp.ne.s32.totalorder %s111, %s125
    %p127 = scmp.eq.s32.totalorder %s17, 0
    %p128 = por %p126, %p127
    %s129 = ssub.s32 %s11, %s18
    %p130 = scmp.eq.s32.totalorder %s129, 0
    %s132 = sadd.s32 %s131, 1
    %s133 = scalar_select %p130, %s131, %s132
    %p136 = pneg %p130
    %p137 = scmp.eq.s32.totalorder %s11, 1
    %p138 = por %p136, %p137
    %p139 = scmp.ne.s32.totalorder %s131, %s134
    %p140 = scmp.eq.s32.totalorder %s11, 0
    %p141 = por %p139, %p140
    %p142 = scmp.ne.s32.totalorder %s131, %s134
    %p143 = scmp.eq.s32.totalorder %s16, 1
    %p144 = por %p142, %p143
    %p145 = scmp.ne.s32.totalorder %s134, %s135
    %p146 = scmp.eq.s32.totalorder %s16, 0
    %p147 = por %p145, %p146
    %p148 = scmp.ne.s32.totalorder %s134, %s135
    %p149 = scmp.eq.s32.totalorder %s17, 1
    %p150 = por %p148, %p149
    %p152 = scmp.ne.s32.totalorder %s135, %s151
    %p153 = scmp.eq.s32.totalorder %s17, 0
    %p154 = por %p152, %p153
    %p155 = scmp.le.s32.totalorder 1, %s11
    %p156 = scmp.lt.s32.totalorder %s11, 3
    %p157 = pnand %p155, %p156
    %p158 = pneg %p157
    // Predicated region
    $region9: #{forward.4} parent=5 // pred_check
      _
    $region10: #{forward.4} parent=5 // pred_check_branch
      %160 = sbr.rel (%p157) target = $region12
    $region11: #{forward.4} parent=5 // pred_region
      %s161 = ssub.s32 %s11, 1
      // Predicated region
      $region13: #{forward.4} parent=11 // pred_check
        %p162 = pneg %p58
      $region14: #{forward.4} parent=11 // pred_check_branch
        %164 = sbr.rel (%p162) target = $region16
      $region15: #{forward.4} parent=11 // pred_region
        _
      $region16: #{forward.4} parent=11 // pred_fallthru
        _
      // Predicated region
      $region17: #{forward.4} parent=11 // pred_check
        %p165 = pneg %p79
      $region18: #{forward.4} parent=11 // pred_check_branch
        %167 = sbr.rel (%p165) target = $region20
      $region19: #{forward.4} parent=11 // pred_region
        _
      $region20: #{forward.4} parent=11 // pred_fallthru
        _
      // Predicated region
      $region21: #{forward.4} parent=11 // pred_check
        %p168 = pneg %p100
      $region22: #{forward.4} parent=11 // pred_check_branch
        %170 = sbr.rel (%p168) target = $region24
      $region23: #{forward.4} parent=11 // pred_region
        _
      $region24: #{forward.4} parent=11 // pred_fallthru
        _
      // Predicated region
      $region25: #{forward.4} parent=11 // pred_check
        %p171 = pneg %p121
      $region26: #{forward.4} parent=11 // pred_check_branch
        %173 = sbr.rel (%p171) target = $region28
      $region27: #{forward.4} parent=11 // pred_region
        _
      $region28: #{forward.4} parent=11 // pred_fallthru
        _
    $region12: #{forward.4} parent=5 // pred_fallthru
      _
    %p174 = scmp.lt.s32.totalorder %s11, 2
    // Predicated region
    $region29: #{forward.4} parent=5 // pred_check
      %p175 = pneg %p174
    $region30: #{forward.4} parent=5 // pred_check_branch
      %177 = sbr.rel (%p175) target = $region32
    $region31: #{forward.4} parent=5 // pred_region
      // Predicated region
      $region33: #{forward.4} parent=31 // pred_check
        %p178 = pneg %p31
      $region34: #{forward.4} parent=31 // pred_check_branch
        %180 = sbr.rel (%p178) target = $region36
      $region35: #{forward.4} parent=31 // pred_region
        %p181 = scmp.lt.s32.totalorder %s11, 1
        %s182 = scalar_select %p181, %s11, 1
        %s183 = smul.addr %s182, 6
        %s184 = smul.addr %s183, 4
        %s185 = scalar_lea.vmem %s0, %s184
      $region36: #{forward.4} parent=31 // pred_fallthru
        _
    $region32: #{forward.4} parent=5 // pred_fallthru
      _
    %p186 = scmp.le.s32.totalorder 1, %s11
    %p187 = scmp.lt.s32.totalorder %s11, 3
    %p188 = pnand %p186, %p187
    %p189 = pneg %p188
    // Predicated region
    $region37: #{forward.4} parent=5 // pred_check
      _
    $region38: #{forward.4} parent=5 // pred_check_branch
      %191 = sbr.rel (%p188) target = $region40
    $region39: #{forward.4} parent=5 // pred_region
      %s192 = ssub.s32 %s11, 1
      %p193 = scmp.lt.s32.totalorder %s16, 1
      %s194 = scalar_select %p193, %s16, 1
      %s195 = smul.addr %s194, 6
      %s196 = smul.addr %s195, 4
      %s197 = scalar_lea.vmem %s0, %s196
      %p198 = pneg %p37
      %p199 = pneg %p34
      %p200 = pneg %p58
      %p201 = pneg %p55
      %p202 = pneg %p79
      %p203 = pneg %p76
      %p204 = pneg %p100
      %p205 = pneg %p97
      %p206 = pneg %p121
      %p207 = pneg %p118
      %p208 = pneg %p147
      %p209 = pneg %p144
      %p210 = scmp.lt.s32.totalorder %s16, 1
      %s211 = scalar_select %p210, %s16, 1
      %s212 = smul.addr %s211, 2
      %s213 = smul.addr %s212, 4
      %s214 = scalar_lea.vmem %s5, %s213
      %p215 = scmp.lt.s32.totalorder %s16, 1
      %s216 = scalar_select %p215, %s16, 1
      %s217 = smul.addr %s216, 6
      %s218 = smul.addr %s217, 4
      %s219 = scalar_lea.vmem %s0, %s218
      %p220 = scmp.lt.s32.totalorder %s16, 1
      %s221 = scalar_select %p220, %s16, 1
      %s222 = smul.addr %s221, 2
      %s223 = smul.addr %s222, 4
      %s224 = scalar_lea.vmem %s5, %s223
      %v226 = vld [vmem:[%s219] sm:$0xff]
      %v227 = vld [vmem:[%s219 + $0x8] sm:$0xf]
      %v228 = vld [vmem:[%s219 + $0xc] sm:$0x33]
      %v229 = vld [vmem:[%s219 + $0x14] sm:$0x3]
      %v230 = vld [vmem:[%s1] sm:$0xff]
      %v231 = vld [vmem:[%s1 + $0x8] sm:$0xff]
      %v232 = vld [vmem:[%s1 + $0x10] sm:$0xff]
      %v233 = vld [vmem:[%s1 + $0x18] sm:$0xff]
      %v234 = vld [vmem:[%s1 + $0x20] sm:$0xff]
      %v235 = vld [vmem:[%s1 + $0x28] sm:$0xff]
      %v236 = vld [vmem:[%s1 + $0x30] sm:$0xff]
      %v237 = vld [vmem:[%s1 + $0x38] sm:$0xff]
      %v238 = vld [vmem:[%s1 + $0x40] sm:$0xff]
      %v239 = vld [vmem:[%s1 + $0x48] sm:$0xff]
      %v240 = vld [vmem:[%s1 + $0x50] sm:$0xff]
      %v241 = vld [vmem:[%s1 + $0x58] sm:$0xff]
      %v242 = vld [vmem:[%s1 + $0x60] sm:$0xff]
      %v243 = vld [vmem:[%s1 + $0x68] sm:$0xff]
      %v244 = vld [vmem:[%s1 + $0x70] sm:$0xff]
      %v245 = vld [vmem:[%s1 + $0x78] sm:$0xff]
      %v246 = vld [vmem:[%s1 + $0x80] sm:$0xff]
      %v247 = vld [vmem:[%s1 + $0x88] sm:$0xff]
      %v248 = vld [vmem:[%s1 + $0x90] sm:$0xff]
      %v249 = vld [vmem:[%s1 + $0x98] sm:$0xff]
      %v250 = vld [vmem:[%s1 + $0xa0] sm:$0xff]
      %v251 = vld [vmem:[%s1 + $0xa8] sm:$0xff]
      %v252 = vld [vmem:[%s1 + $0xb0] sm:$0xff]
      %v253 = vld [vmem:[%s1 + $0xb8] sm:$0xff]
      %v254 = vld [vmem:[%s1 + $0xc0] sm:$0xff]
      %v255 = vld [vmem:[%s1 + $0xc8] sm:$0xff]
      %v256 = vld [vmem:[%s1 + $0xd0] sm:$0xff]
      %v257 = vld [vmem:[%s1 + $0xd8] sm:$0xff]
      %v258 = vld [vmem:[%s1 + $0xe0] sm:$0xff]
      %v259 = vld [vmem:[%s1 + $0xe8] sm:$0xff]
      %v260 = vld [vmem:[%s1 + $0xf0] sm:$0xff]
      %v261 = vld [vmem:[%s1 + $0xf8] sm:$0xff]
      %v262 = vld [vmem:[%s1 + $0x100] sm:$0xff]
      %v263 = vld [vmem:[%s1 + $0x108] sm:$0xff]
      %v264 = vld [vmem:[%s1 + $0x110] sm:$0xff]
      %v265 = vld [vmem:[%s1 + $0x118] sm:$0xff]
      %v266 = vld [vmem:[%s1 + $0x120] sm:$0xff]
      %v267 = vld [vmem:[%s1 + $0x128] sm:$0x33]
      %v268 = vld [vmem:[%s2] sm:$0xff]
      %v269 = vld [vmem:[%s2 + $0x8] sm:$0xff]
      %v270 = vld [vmem:[%s2 + $0x10] sm:$0xff]
      %v271 = vld [vmem:[%s2 + $0x18] sm:$0xff]
      %v272 = vld [vmem:[%s2 + $0x20] sm:$0xff]
      %v273 = vld [vmem:[%s2 + $0x28] sm:$0xff]
      %v274 = vld [vmem:[%s2 + $0x30] sm:$0xff]
      %v275 = vld [vmem:[%s2 + $0x38] sm:$0xff]
      %v276 = vld [vmem:[%s2 + $0x40] sm:$0xff]
      %v277 = vld [vmem:[%s2 + $0x48] sm:$0xff]
      %v278 = vld [vmem:[%s2 + $0x50] sm:$0xff]
      %v279 = vld [vmem:[%s2 + $0x58] sm:$0xff]
      %v280 = vld [vmem:[%s2 + $0x60] sm:$0xff]
      %v281 = vld [vmem:[%s2 + $0x68] sm:$0xff]
      %v282 = vld [vmem:[%s2 + $0x70] sm:$0xff]
      %v283 = vld [vmem:[%s2 + $0x78] sm:$0xff]
      %v284 = vld [vmem:[%s2 + $0x80] sm:$0xff]
      %v285 = vld [vmem:[%s2 + $0x88] sm:$0xff]
      %v286 = vld [vmem:[%s2 + $0x90] sm:$0xff]
      %v287 = vld [vmem:[%s2 + $0x98] sm:$0xff]
      %v288 = vld [vmem:[%s2 + $0xa0] sm:$0xff]
      %v289 = vld [vmem:[%s2 + $0xa8] sm:$0xff]
      %v290 = vld [vmem:[%s2 + $0xb0] sm:$0xff]
      %v291 = vld [vmem:[%s2 + $0xb8] sm:$0xff]
      %v292 = vld [vmem:[%s2 + $0xc0] sm:$0xff]
      %v293 = vld [vmem:[%s2 + $0xc8] sm:$0xff]
      %v294 = vld [vmem:[%s2 + $0xd0] sm:$0xff]
      %v295 = vld [vmem:[%s2 + $0xd8] sm:$0xff]
      %v296 = vld [vmem:[%s2 + $0xe0] sm:$0xff]
      %v297 = vld [vmem:[%s2 + $0xe8] sm:$0xff]
      %v298 = vld [vmem:[%s2 + $0xf0] sm:$0xff]
      %v299 = vld [vmem:[%s2 + $0xf8] sm:$0xff]
      %v300 = vld [vmem:[%s2 + $0x100] sm:$0xff]
      %v301 = vld [vmem:[%s2 + $0x108] sm:$0xff]
      %v302 = vld [vmem:[%s2 + $0x110] sm:$0xff]
      %v303 = vld [vmem:[%s2 + $0x118] sm:$0xff]
      %v304 = vld [vmem:[%s2 + $0x120] sm:$0xff]
      %v305 = vld [vmem:[%s2 + $0x128] sm:$0x33]
      %v306 = vld [vmem:[%s219 + $0xc] sm:$0x77]
      %v307 = vld [vmem:[%s219 + $0x14] sm:$0x7]
      %s308 = scalar_lea.vmem %s1, 304
      %v309 = vld [vmem:[%s308] sm:$0xff]
      %v310 = vld [vmem:[%s308 + $0x8] sm:$0xff]
      %v311 = vld [vmem:[%s308 + $0x10] sm:$0xff]
      %v312 = vld [vmem:[%s308 + $0x18] sm:$0xff]
      %v313 = vld [vmem:[%s308 + $0x20] sm:$0xff]
      %v314 = vld [vmem:[%s308 + $0x28] sm:$0xff]
      %v315 = vld [vmem:[%s308 + $0x30] sm:$0xff]
      %v316 = vld [vmem:[%s308 + $0x38] sm:$0xff]
      %v317 = vld [vmem:[%s308 + $0x40] sm:$0xff]
      %v318 = vld [vmem:[%s308 + $0x48] sm:$0xff]
      %v319 = vld [vmem:[%s308 + $0x50] sm:$0xff]
      %v320 = vld [vmem:[%s308 + $0x58] sm:$0xff]
      %v321 = vld [vmem:[%s308 + $0x60] sm:$0xff]
      %v322 = vld [vmem:[%s308 + $0x68] sm:$0xff]
      %v323 = vld [vmem:[%s308 + $0x70] sm:$0xff]
      %v324 = vld [vmem:[%s308 + $0x78] sm:$0xff]
      %v325 = vld [vmem:[%s308 + $0x80] sm:$0xff]
      %v326 = vld [vmem:[%s308 + $0x88] sm:$0xff]
      %v327 = vld [vmem:[%s308 + $0x90] sm:$0xff]
      %v328 = vld [vmem:[%s308 + $0x98] sm:$0xff]
      %v329 = vld [vmem:[%s308 + $0xa0] sm:$0xff]
      %v330 = vld [vmem:[%s308 + $0xa8] sm:$0xff]
      %v331 = vld [vmem:[%s308 + $0xb0] sm:$0xff]
      %v332 = vld [vmem:[%s308 + $0xb8] sm:$0xff]
      %v333 = vld [vmem:[%s308 + $0xc0] sm:$0xff]
      %v334 = vld [vmem:[%s308 + $0xc8] sm:$0xff]
      %v335 = vld [vmem:[%s308 + $0xd0] sm:$0xff]
      %v336 = vld [vmem:[%s308 + $0xd8] sm:$0xff]
      %v337 = vld [vmem:[%s308 + $0xe0] sm:$0xff]
      %v338 = vld [vmem:[%s308 + $0xe8] sm:$0xff]
      %v339 = vld [vmem:[%s308 + $0xf0] sm:$0xff]
      %v340 = vld [vmem:[%s308 + $0xf8] sm:$0xff]
      %v341 = vld [vmem:[%s308 + $0x100] sm:$0xff]
      %v342 = vld [vmem:[%s308 + $0x108] sm:$0xff]
      %v343 = vld [vmem:[%s308 + $0x110] sm:$0xff]
      %v344 = vld [vmem:[%s308 + $0x118] sm:$0xff]
      %v345 = vld [vmem:[%s308 + $0x120] sm:$0xff]
      %v346 = vld [vmem:[%s308 + $0x128] sm:$0x33]
      %v351 = vunpack.c.l.b16 %v226
      %v352 = vunpack.c.h.b16 %v226
      %v353 = vunpack.c.l.b16 %v227
      %v354 = vunpack.c.l.b16 %v306
      %v355 = vunpack.c.h.b16 %v306
      %v356 = vunpack.c.l.b16 %v307
      %v357 = vpack.c.b16 %v354, %v351
      %v358 = vpack.c.b16 %v355, %v352
      %v359 = vpack.c.b16 %v356, %v353
      %v361 = vshrl.u32 %v357, 16
      %v363 = vshll.u32 %v357, 16
      %v365 = vrot.slane %v363, 1
      %v366 = vor.u32 %v361, %v365
      %v368 = vshrl.u32 %v358, 16
      %v370 = vshll.u32 %v358, 16
      %v372 = vrot.slane %v370, 1
      %v373 = vor.u32 %v368, %v372
      %v375 = vshrl.u32 %v359, 16
      %v377 = vshll.u32 %v359, 16
      %v379 = vrot.slane %v377, 1
      %v380 = vor.u32 %v375, %v379
      %v421 = vunpack.c.l.b16 %v309
      %v422 = vunpack.c.h.b16 %v309
      %v423 = vunpack.c.l.b16 %v310
      %v424 = vunpack.c.h.b16 %v310
      %v425 = vunpack.c.l.b16 %v311
      %v426 = vunpack.c.h.b16 %v311
      %v427 = vunpack.c.l.b16 %v312
      %v428 = vunpack.c.h.b16 %v312
      %v429 = vunpack.c.l.b16 %v313
      %v430 = vunpack.c.h.b16 %v313
      %v431 = vunpack.c.l.b16 %v314
      %v432 = vunpack.c.h.b16 %v314
      %v433 = vunpack.c.l.b16 %v315
      %v434 = vunpack.c.h.b16 %v315
      %v435 = vunpack.c.l.b16 %v316
      %v436 = vunpack.c.h.b16 %v316
      %v437 = vunpack.c.l.b16 %v317
      %v438 = vunpack.c.h.b16 %v317
      %v439 = vunpack.c.l.b16 %v318
      %v440 = vunpack.c.h.b16 %v318
      %v441 = vunpack.c.l.b16 %v319
      %v442 = vunpack.c.h.b16 %v319
      %v443 = vunpack.c.l.b16 %v320
      %v444 = vunpack.c.h.b16 %v320
      %v445 = vunpack.c.l.b16 %v321
      %v446 = vunpack.c.h.b16 %v321
      %v447 = vunpack.c.l.b16 %v322
      %v448 = vunpack.c.h.b16 %v322
      %v449 = vunpack.c.l.b16 %v323
      %v450 = vunpack.c.h.b16 %v323
      %v451 = vunpack.c.l.b16 %v324
      %v452 = vunpack.c.h.b16 %v324
      %v453 = vunpack.c.l.b16 %v325
      %v454 = vunpack.c.h.b16 %v325
      %v455 = vunpack.c.l.b16 %v326
      %v456 = vunpack.c.h.b16 %v326
      %v457 = vunpack.c.l.b16 %v327
      %v458 = vunpack.c.h.b16 %v327
      %v459 = vunpack.c.l.b16 %v328
      %v460 = vunpack.c.h.b16 %v328
      %v461 = vunpack.c.l.b16 %v329
      %v462 = vunpack.c.h.b16 %v329
      %v463 = vunpack.c.l.b16 %v330
      %v464 = vunpack.c.h.b16 %v330
      %v465 = vunpack.c.l.b16 %v331
      %v466 = vunpack.c.h.b16 %v331
      %v467 = vunpack.c.l.b16 %v332
      %v468 = vunpack.c.h.b16 %v332
      %v469 = vunpack.c.l.b16 %v333
      %v470 = vunpack.c.h.b16 %v333
      %v471 = vunpack.c.l.b16 %v334
      %v472 = vunpack.c.h.b16 %v334
      %v473 = vunpack.c.l.b16 %v335
      %v474 = vunpack.c.h.b16 %v335
      %v475 = vunpack.c.l.b16 %v336
      %v476 = vunpack.c.h.b16 %v336
      %v477 = vunpack.c.l.b16 %v337
      %v478 = vunpack.c.h.b16 %v337
      %v479 = vunpack.c.l.b16 %v338
      %v480 = vunpack.c.h.b16 %v338
      %v481 = vunpack.c.l.b16 %v339
      %v482 = vunpack.c.h.b16 %v339
      %v483 = vunpack.c.l.b16 %v340
      %v484 = vunpack.c.h.b16 %v340
      %v485 = vunpack.c.l.b16 %v341
      %v486 = vunpack.c.h.b16 %v341
      %v487 = vunpack.c.l.b16 %v342
      %v488 = vunpack.c.h.b16 %v342
      %v489 = vunpack.c.l.b16 %v343
      %v490 = vunpack.c.h.b16 %v343
      %v491 = vunpack.c.l.b16 %v344
      %v492 = vunpack.c.h.b16 %v344
      %v493 = vunpack.c.l.b16 %v345
      %v494 = vunpack.c.h.b16 %v345
      %v495 = vunpack.c.l.b16 %v346
      %v496 = vunpack.c.h.b16 %v346
      %v497 = vpack.c.b16 %v423, %v421
      %v498 = vpack.c.b16 %v424, %v422
      %v499 = vpack.c.b16 %v427, %v425
      %v500 = vpack.c.b16 %v428, %v426
      %v501 = vpack.c.b16 %v431, %v429
      %v502 = vpack.c.b16 %v432, %v430
      %v503 = vpack.c.b16 %v435, %v433
      %v504 = vpack.c.b16 %v436, %v434
      %v505 = vpack.c.b16 %v439, %v437
      %v506 = vpack.c.b16 %v440, %v438
      %v507 = vpack.c.b16 %v443, %v441
      %v508 = vpack.c.b16 %v444, %v442
      %v509 = vpack.c.b16 %v447, %v445
      %v510 = vpack.c.b16 %v448, %v446
      %v511 = vpack.c.b16 %v451, %v449
      %v512 = vpack.c.b16 %v452, %v450
      %v513 = vpack.c.b16 %v455, %v453
      %v514 = vpack.c.b16 %v456, %v454
      %v515 = vpack.c.b16 %v459, %v457
      %v516 = vpack.c.b16 %v460, %v458
      %v517 = vpack.c.b16 %v463, %v461
      %v518 = vpack.c.b16 %v464, %v462
      %v519 = vpack.c.b16 %v467, %v465
      %v520 = vpack.c.b16 %v468, %v466
      %v521 = vpack.c.b16 %v471, %v469
      %v522 = vpack.c.b16 %v472, %v470
      %v523 = vpack.c.b16 %v475, %v473
      %v524 = vpack.c.b16 %v476, %v474
      %v525 = vpack.c.b16 %v479, %v477
      %v526 = vpack.c.b16 %v480, %v478
      %v527 = vpack.c.b16 %v483, %v481
      %v528 = vpack.c.b16 %v484, %v482
      %v529 = vpack.c.b16 %v487, %v485
      %v530 = vpack.c.b16 %v488, %v486
      %v531 = vpack.c.b16 %v491, %v489
      %v532 = vpack.c.b16 %v492, %v490
      %v533 = vpack.c.b16 %v495, %v493
      %v534 = vpack.c.b16 %v496, %v494
      %vm571 = vcmask 359424
      %v573 = vsel %vm571, %v380, 0
      %vm575 = vcmask 1045504
      %v577 = vsel %vm575, %v533, 0
      %v580 = vsel %vm575, %v534, 0
      %582 = vmatpush.bf16.msra.mxu0 %v511
      %583 = vmatpush.bf16.msra.mxu0 %v509
      %584 = vmatpush.bf16.msra.mxu0 %v507
      %585 = vmatpush.bf16.msra.mxu0 %v505
      %586 = vmatpush.bf16.msra.mxu0 %v503
      %587 = vmatpush.bf16.msra.mxu0 %v501
      %588 = vmatpush.bf16.msra.mxu0 %v499
      %589 = vmatpush.bf16.msra.mxu0 %v497
      %590 = vmatmul.bf16.gmra.mxu0 %v366
      %v591 = vpop.f32.mrf.mxu0
      %v592 = vadd.f32 0.0, %v591
      %v593 = vpop.f32.mrf.mxu0
      %v594 = vadd.f32 0.0, %v593
      %595 = vdwg.mxu0
      %596 = vmatpush.bf16.msra.mxu0 %v527
      %597 = vmatpush.bf16.msra.mxu0 %v525
      %598 = vmatpush.bf16.msra.mxu0 %v523
      %599 = vmatpush.bf16.msra.mxu0 %v521
      %600 = vmatpush.bf16.msra.mxu0 %v519
      %601 = vmatpush.bf16.msra.mxu0 %v517
      %602 = vmatpush.bf16.msra.mxu0 %v515
      %603 = vmatpush.bf16.msra.mxu0 %v513
      %604 = vmatmul.bf16.gmra.mxu0 %v373
      %v605 = vpop.f32.mrf.mxu0
      %v606 = vadd.f32 %v592, %v605
      %v607 = vpop.f32.mrf.mxu0
      %v608 = vadd.f32 %v594, %v607
      %609 = vdwg.mxu0
      %610 = vmatpush.bf16.msra.mxu0 0
      %611 = vmatpush.bf16.msra.mxu0 0
      %612 = vmatpush.bf16.msra.mxu0 0
      %613 = vmatpush.bf16.msra.mxu0 0
      %614 = vmatpush.bf16.msra.mxu0 0
      %615 = vmatpush.bf16.msra.mxu0 %v577
      %616 = vmatpush.bf16.msra.mxu0 %v531
      %617 = vmatpush.bf16.msra.mxu0 %v529
      %618 = vmatmul.bf16.gmra.mxu0 %v573
      %v619 = vpop.f32.mrf.mxu0
      %v620 = vadd.f32 %v606, %v619
      %v621 = vpop.f32.mrf.mxu0
      %v622 = vadd.f32 %v608, %v621
      %623 = vdwg.mxu0
      %624 = vmatpush.bf16.msra.mxu0 %v512
      %625 = vmatpush.bf16.msra.mxu0 %v510
      %626 = vmatpush.bf16.msra.mxu0 %v508
      %627 = vmatpush.bf16.msra.mxu0 %v506
      %628 = vmatpush.bf16.msra.mxu0 %v504
      %629 = vmatpush.bf16.msra.mxu0 %v502
      %630 = vmatpush.bf16.msra.mxu0 %v500
      %631 = vmatpush.bf16.msra.mxu0 %v498
      %632 = vmatmul.bf16.gmra.mxu0 %v366
      %v633 = vpop.f32.mrf.mxu0
      %v634 = vadd.f32 0.0, %v633
      %v635 = vpop.f32.mrf.mxu0
      %v636 = vadd.f32 0.0, %v635
      %637 = vdwg.mxu0
      %638 = vmatpush.bf16.msra.mxu0 %v528
      %639 = vmatpush.bf16.msra.mxu0 %v526
      %640 = vmatpush.bf16.msra.mxu0 %v524
      %641 = vmatpush.bf16.msra.mxu0 %v522
      %642 = vmatpush.bf16.msra.mxu0 %v520
      %643 = vmatpush.bf16.msra.mxu0 %v518
      %644 = vmatpush.bf16.msra.mxu0 %v516
      %645 = vmatpush.bf16.msra.mxu0 %v514
      %646 = vmatmul.bf16.gmra.mxu0 %v373
      %v647 = vpop.f32.mrf.mxu0
      %v648 = vadd.f32 %v634, %v647
      %v649 = vpop.f32.mrf.mxu0
      %v650 = vadd.f32 %v636, %v649
      %651 = vdwg.mxu0
      %652 = vmatpush.bf16.msra.mxu0 0
      %653 = vmatpush.bf16.msra.mxu0 0
      %654 = vmatpush.bf16.msra.mxu0 0
      %655 = vmatpush.bf16.msra.mxu0 0
      %656 = vmatpush.bf16.msra.mxu0 0
      %657 = vmatpush.bf16.msra.mxu0 %v580
      %658 = vmatpush.bf16.msra.mxu0 %v532
      %659 = vmatpush.bf16.msra.mxu0 %v530
      %660 = vmatmul.bf16.gmra.mxu0 %v573
      %v661 = vpop.f32.mrf.mxu0
      %v662 = vadd.f32 %v648, %v661
      %v663 = vpop.f32.mrf.mxu0
      %v664 = vadd.f32 %v650, %v663
      %665 = vdwg.mxu0
      %v668 = vunpack.c.l.b16 %v228
      %v669 = vunpack.c.h.b16 %v228
      %v670 = vunpack.c.l.b16 %v229
      %v671 = vpack.c.b16 %v668, %v351
      %v672 = vpack.c.b16 %v669, %v352
      %v673 = vpack.c.b16 %v670, %v353
      %v714 = vunpack.c.l.b16 %v230
      %v715 = vunpack.c.h.b16 %v230
      %v716 = vunpack.c.l.b16 %v231
      %v717 = vunpack.c.h.b16 %v231
      %v718 = vunpack.c.l.b16 %v232
      %v719 = vunpack.c.h.b16 %v232
      %v720 = vunpack.c.l.b16 %v233
      %v721 = vunpack.c.h.b16 %v233
      %v722 = vunpack.c.l.b16 %v234
      %v723 = vunpack.c.h.b16 %v234
      %v724 = vunpack.c.l.b16 %v235
      %v725 = vunpack.c.h.b16 %v235
      %v726 = vunpack.c.l.b16 %v236
      %v727 = vunpack.c.h.b16 %v236
      %v728 = vunpack.c.l.b16 %v237
      %v729 = vunpack.c.h.b16 %v237
      %v730 = vunpack.c.l.b16 %v238
      %v731 = vunpack.c.h.b16 %v238
      %v732 = vunpack.c.l.b16 %v239
      %v733 = vunpack.c.h.b16 %v239
      %v734 = vunpack.c.l.b16 %v240
      %v735 = vunpack.c.h.b16 %v240
      %v736 = vunpack.c.l.b16 %v241
      %v737 = vunpack.c.h.b16 %v241
      %v738 = vunpack.c.l.b16 %v242
      %v739 = vunpack.c.h.b16 %v242
      %v740 = vunpack.c.l.b16 %v243
      %v741 = vunpack.c.h.b16 %v243
      %v742 = vunpack.c.l.b16 %v244
      %v743 = vunpack.c.h.b16 %v244
      %v744 = vunpack.c.l.b16 %v245
      %v745 = vunpack.c.h.b16 %v245
      %v746 = vunpack.c.l.b16 %v246
      %v747 = vunpack.c.h.b16 %v246
      %v748 = vunpack.c.l.b16 %v247
      %v749 = vunpack.c.h.b16 %v247
      %v750 = vunpack.c.l.b16 %v248
      %v751 = vunpack.c.h.b16 %v248
      %v752 = vunpack.c.l.b16 %v249
      %v753 = vunpack.c.h.b16 %v249
      %v754 = vunpack.c.l.b16 %v250
      %v755 = vunpack.c.h.b16 %v250
      %v756 = vunpack.c.l.b16 %v251
      %v757 = vunpack.c.h.b16 %v251
      %v758 = vunpack.c.l.b16 %v252
      %v759 = vunpack.c.h.b16 %v252
      %v760 = vunpack.c.l.b16 %v253
      %v761 = vunpack.c.h.b16 %v253
      %v762 = vunpack.c.l.b16 %v254
      %v763 = vunpack.c.h.b16 %v254
      %v764 = vunpack.c.l.b16 %v255
      %v765 = vunpack.c.h.b16 %v255
      %v766 = vunpack.c.l.b16 %v256
      %v767 = vunpack.c.h.b16 %v256
      %v768 = vunpack.c.l.b16 %v257
      %v769 = vunpack.c.h.b16 %v257
      %v770 = vunpack.c.l.b16 %v258
      %v771 = vunpack.c.h.b16 %v258
      %v772 = vunpack.c.l.b16 %v259
      %v773 = vunpack.c.h.b16 %v259
      %v774 = vunpack.c.l.b16 %v260
      %v775 = vunpack.c.h.b16 %v260
      %v776 = vunpack.c.l.b16 %v261
      %v777 = vunpack.c.h.b16 %v261
      %v778 = vunpack.c.l.b16 %v262
      %v779 = vunpack.c.h.b16 %v262
      %v780 = vunpack.c.l.b16 %v263
      %v781 = vunpack.c.h.b16 %v263
      %v782 = vunpack.c.l.b16 %v264
      %v783 = vunpack.c.h.b16 %v264
      %v784 = vunpack.c.l.b16 %v265
      %v785 = vunpack.c.h.b16 %v265
      %v786 = vunpack.c.l.b16 %v266
      %v787 = vunpack.c.h.b16 %v266
      %v788 = vunpack.c.l.b16 %v267
      %v789 = vunpack.c.h.b16 %v267
      %v790 = vpack.c.b16 %v716, %v714
      %v791 = vpack.c.b16 %v717, %v715
      %v792 = vpack.c.b16 %v720, %v718
      %v793 = vpack.c.b16 %v721, %v719
      %v794 = vpack.c.b16 %v724, %v722
      %v795 = vpack.c.b16 %v725, %v723
      %v796 = vpack.c.b16 %v728, %v726
      %v797 = vpack.c.b16 %v729, %v727
      %v798 = vpack.c.b16 %v732, %v730
      %v799 = vpack.c.b16 %v733, %v731
      %v800 = vpack.c.b16 %v736, %v734
      %v801 = vpack.c.b16 %v737, %v735
      %v802 = vpack.c.b16 %v740, %v738
      %v803 = vpack.c.b16 %v741, %v739
      %v804 = vpack.c.b16 %v744, %v742
      %v805 = vpack.c.b16 %v745, %v743
      %v806 = vpack.c.b16 %v748, %v746
      %v807 = vpack.c.b16 %v749, %v747
      %v808 = vpack.c.b16 %v752, %v750
      %v809 = vpack.c.b16 %v753, %v751
      %v810 = vpack.c.b16 %v756, %v754
      %v811 = vpack.c.b16 %v757, %v755
      %v812 = vpack.c.b16 %v760, %v758
      %v813 = vpack.c.b16 %v761, %v759
      %v814 = vpack.c.b16 %v764, %v762
      %v815 = vpack.c.b16 %v765, %v763
      %v816 = vpack.c.b16 %v768, %v766
      %v817 = vpack.c.b16 %v769, %v767
      %v818 = vpack.c.b16 %v772, %v770
      %v819 = vpack.c.b16 %v773, %v771
      %v820 = vpack.c.b16 %v776, %v774
      %v821 = vpack.c.b16 %v777, %v775
      %v822 = vpack.c.b16 %v780, %v778
      %v823 = vpack.c.b16 %v781, %v779
      %v824 = vpack.c.b16 %v784, %v782
      %v825 = vpack.c.b16 %v785, %v783
      %v826 = vpack.c.b16 %v788, %v786
      %v827 = vpack.c.b16 %v789, %v787
      %v865 = vsel %vm571, %v673, 0
      %v868 = vsel %vm575, %v826, 0
      %v871 = vsel %vm575, %v827, 0
      %873 = vmatpush.bf16.msra.mxu0 %v804
      %874 = vmatpush.bf16.msra.mxu0 %v802
      %875 = vmatpush.bf16.msra.mxu0 %v800
      %876 = vmatpush.bf16.msra.mxu0 %v798
      %877 = vmatpush.bf16.msra.mxu0 %v796
      %878 = vmatpush.bf16.msra.mxu0 %v794
      %879 = vmatpush.bf16.msra.mxu0 %v792
      %880 = vmatpush.bf16.msra.mxu0 %v790
      %881 = vmatmul.bf16.gmra.mxu0 %v671
      %v882 = vpop.f32.mrf.mxu0
      %v883 = vadd.f32 %v620, %v882
      %v884 = vpop.f32.mrf.mxu0
      %v885 = vadd.f32 %v622, %v884
      %886 = vdwg.mxu0
      %887 = vmatpush.bf16.msra.mxu0 %v820
      %888 = vmatpush.bf16.msra.mxu0 %v818
      %889 = vmatpush.bf16.msra.mxu0 %v816
      %890 = vmatpush.bf16.msra.mxu0 %v814
      %891 = vmatpush.bf16.msra.mxu0 %v812
      %892 = vmatpush.bf16.msra.mxu0 %v810
      %893 = vmatpush.bf16.msra.mxu0 %v808
      %894 = vmatpush.bf16.msra.mxu0 %v806
      %895 = vmatmul.bf16.gmra.mxu0 %v672
      %v896 = vpop.f32.mrf.mxu0
      %v897 = vadd.f32 %v883, %v896
      %v898 = vpop.f32.mrf.mxu0
      %v899 = vadd.f32 %v885, %v898
      %900 = vdwg.mxu0
      %901 = vmatpush.bf16.msra.mxu0 0
      %902 = vmatpush.bf16.msra.mxu0 0
      %903 = vmatpush.bf16.msra.mxu0 0
      %904 = vmatpush.bf16.msra.mxu0 0
      %905 = vmatpush.bf16.msra.mxu0 0
      %906 = vmatpush.bf16.msra.mxu0 %v868
      %907 = vmatpush.bf16.msra.mxu0 %v824
      %908 = vmatpush.bf16.msra.mxu0 %v822
      %909 = vmatmul.bf16.gmra.mxu0 %v865
      %v910 = vpop.f32.mrf.mxu0
      %v911 = vadd.f32 %v897, %v910
      %v912 = vpop.f32.mrf.mxu0
      %v913 = vadd.f32 %v899, %v912
      %914 = vdwg.mxu0
      %915 = vmatpush.bf16.msra.mxu0 %v805
      %916 = vmatpush.bf16.msra.mxu0 %v803
      %917 = vmatpush.bf16.msra.mxu0 %v801
      %918 = vmatpush.bf16.msra.mxu0 %v799
      %919 = vmatpush.bf16.msra.mxu0 %v797
      %920 = vmatpush.bf16.msra.mxu0 %v795
      %921 = vmatpush.bf16.msra.mxu0 %v793
      %922 = vmatpush.bf16.msra.mxu0 %v791
      %923 = vmatmul.bf16.gmra.mxu0 %v671
      %v924 = vpop.f32.mrf.mxu0
      %v925 = vadd.f32 %v662, %v924
      %v926 = vpop.f32.mrf.mxu0
      %v927 = vadd.f32 %v664, %v926
      %928 = vdwg.mxu0
      %929 = vmatpush.bf16.msra.mxu0 %v821
      %930 = vmatpush.bf16.msra.mxu0 %v819
      %931 = vmatpush.bf16.msra.mxu0 %v817
      %932 = vmatpush.bf16.msra.mxu0 %v815
      %933 = vmatpush.bf16.msra.mxu0 %v813
      %934 = vmatpush.bf16.msra.mxu0 %v811
      %935 = vmatpush.bf16.msra.mxu0 %v809
      %936 = vmatpush.bf16.msra.mxu0 %v807
      %937 = vmatmul.bf16.gmra.mxu0 %v672
      %v938 = vpop.f32.mrf.mxu0
      %v939 = vadd.f32 %v925, %v938
      %v940 = vpop.f32.mrf.mxu0
      %v941 = vadd.f32 %v927, %v940
      %942 = vdwg.mxu0
      %943 = vmatpush.bf16.msra.mxu0 0
      %944 = vmatpush.bf16.msra.mxu0 0
      %945 = vmatpush.bf16.msra.mxu0 0
      %946 = vmatpush.bf16.msra.mxu0 0
      %947 = vmatpush.bf16.msra.mxu0 0
      %948 = vmatpush.bf16.msra.mxu0 %v871
      %949 = vmatpush.bf16.msra.mxu0 %v825
      %950 = vmatpush.bf16.msra.mxu0 %v823
      %951 = vmatmul.bf16.gmra.mxu0 %v865
      %v952 = vpop.f32.mrf.mxu0
      %v953 = vadd.f32 %v939, %v952
      %v954 = vpop.f32.mrf.mxu0
      %v955 = vadd.f32 %v941, %v954
      %956 = vdwg.mxu0
      %s957 = scalar_lea.vmem %s2, 304
      %v958 = vld [vmem:[%s957] sm:$0xff]
      %v959 = vld [vmem:[%s957 + $0x8] sm:$0xff]
      %v960 = vld [vmem:[%s957 + $0x10] sm:$0xff]
      %v961 = vld [vmem:[%s957 + $0x18] sm:$0xff]
      %v962 = vld [vmem:[%s957 + $0x20] sm:$0xff]
      %v963 = vld [vmem:[%s957 + $0x28] sm:$0xff]
      %v964 = vld [vmem:[%s957 + $0x30] sm:$0xff]
      %v965 = vld [vmem:[%s957 + $0x38] sm:$0xff]
      %v966 = vld [vmem:[%s957 + $0x40] sm:$0xff]
      %v967 = vld [vmem:[%s957 + $0x48] sm:$0xff]
      %v968 = vld [vmem:[%s957 + $0x50] sm:$0xff]
      %v969 = vld [vmem:[%s957 + $0x58] sm:$0xff]
      %v970 = vld [vmem:[%s957 + $0x60] sm:$0xff]
      %v971 = vld [vmem:[%s957 + $0x68] sm:$0xff]
      %v972 = vld [vmem:[%s957 + $0x70] sm:$0xff]
      %v973 = vld [vmem:[%s957 + $0x78] sm:$0xff]
      %v974 = vld [vmem:[%s957 + $0x80] sm:$0xff]
      %v975 = vld [vmem:[%s957 + $0x88] sm:$0xff]
      %v976 = vld [vmem:[%s957 + $0x90] sm:$0xff]
      %v977 = vld [vmem:[%s957 + $0x98] sm:$0xff]
      %v978 = vld [vmem:[%s957 + $0xa0] sm:$0xff]
      %v979 = vld [vmem:[%s957 + $0xa8] sm:$0xff]
      %v980 = vld [vmem:[%s957 + $0xb0] sm:$0xff]
      %v981 = vld [vmem:[%s957 + $0xb8] sm:$0xff]
      %v982 = vld [vmem:[%s957 + $0xc0] sm:$0xff]
      %v983 = vld [vmem:[%s957 + $0xc8] sm:$0xff]
      %v984 = vld [vmem:[%s957 + $0xd0] sm:$0xff]
      %v985 = vld [vmem:[%s957 + $0xd8] sm:$0xff]
      %v986 = vld [vmem:[%s957 + $0xe0] sm:$0xff]
      %v987 = vld [vmem:[%s957 + $0xe8] sm:$0xff]
      %v988 = vld [vmem:[%s957 + $0xf0] sm:$0xff]
      %v989 = vld [vmem:[%s957 + $0xf8] sm:$0xff]
      %v990 = vld [vmem:[%s957 + $0x100] sm:$0xff]
      %v991 = vld [vmem:[%s957 + $0x108] sm:$0xff]
      %v992 = vld [vmem:[%s957 + $0x110] sm:$0xff]
      %v993 = vld [vmem:[%s957 + $0x118] sm:$0xff]
      %v994 = vld [vmem:[%s957 + $0x120] sm:$0xff]
      %v995 = vld [vmem:[%s957 + $0x128] sm:$0x33]
      %v1034 = vunpack.c.l.b16 %v958
      %v1035 = vunpack.c.h.b16 %v958
      %v1036 = vunpack.c.l.b16 %v959
      %v1037 = vunpack.c.h.b16 %v959
      %v1038 = vunpack.c.l.b16 %v960
      %v1039 = vunpack.c.h.b16 %v960
      %v1040 = vunpack.c.l.b16 %v961
      %v1041 = vunpack.c.h.b16 %v961
      %v1042 = vunpack.c.l.b16 %v962
      %v1043 = vunpack.c.h.b16 %v962
      %v1044 = vunpack.c.l.b16 %v963
      %v1045 = vunpack.c.h.b16 %v963
      %v1046 = vunpack.c.l.b16 %v964
      %v1047 = vunpack.c.h.b16 %v964
      %v1048 = vunpack.c.l.b16 %v965
      %v1049 = vunpack.c.h.b16 %v965
      %v1050 = vunpack.c.l.b16 %v966
      %v1051 = vunpack.c.h.b16 %v966
      %v1052 = vunpack.c.l.b16 %v967
      %v1053 = vunpack.c.h.b16 %v967
      %v1054 = vunpack.c.l.b16 %v968
      %v1055 = vunpack.c.h.b16 %v968
      %v1056 = vunpack.c.l.b16 %v969
      %v1057 = vunpack.c.h.b16 %v969
      %v1058 = vunpack.c.l.b16 %v970
      %v1059 = vunpack.c.h.b16 %v970
      %v1060 = vunpack.c.l.b16 %v971
      %v1061 = vunpack.c.h.b16 %v971
      %v1062 = vunpack.c.l.b16 %v972
      %v1063 = vunpack.c.h.b16 %v972
      %v1064 = vunpack.c.l.b16 %v973
      %v1065 = vunpack.c.h.b16 %v973
      %v1066 = vunpack.c.l.b16 %v974
      %v1067 = vunpack.c.h.b16 %v974
      %v1068 = vunpack.c.l.b16 %v975
      %v1069 = vunpack.c.h.b16 %v975
      %v1070 = vunpack.c.l.b16 %v976
      %v1071 = vunpack.c.h.b16 %v976
      %v1072 = vunpack.c.l.b16 %v977
      %v1073 = vunpack.c.h.b16 %v977
      %v1074 = vunpack.c.l.b16 %v978
      %v1075 = vunpack.c.h.b16 %v978
      %v1076 = vunpack.c.l.b16 %v979
      %v1077 = vunpack.c.h.b16 %v979
      %v1078 = vunpack.c.l.b16 %v980
      %v1079 = vunpack.c.h.b16 %v980
      %v1080 = vunpack.c.l.b16 %v981
      %v1081 = vunpack.c.h.b16 %v981
      %v1082 = vunpack.c.l.b16 %v982
      %v1083 = vunpack.c.h.b16 %v982
      %v1084 = vunpack.c.l.b16 %v983
      %v1085 = vunpack.c.h.b16 %v983
      %v1086 = vunpack.c.l.b16 %v984
      %v1087 = vunpack.c.h.b16 %v984
      %v1088 = vunpack.c.l.b16 %v985
      %v1089 = vunpack.c.h.b16 %v985
      %v1090 = vunpack.c.l.b16 %v986
      %v1091 = vunpack.c.h.b16 %v986
      %v1092 = vunpack.c.l.b16 %v987
      %v1093 = vunpack.c.h.b16 %v987
      %v1094 = vunpack.c.l.b16 %v988
      %v1095 = vunpack.c.h.b16 %v988
      %v1096 = vunpack.c.l.b16 %v989
      %v1097 = vunpack.c.h.b16 %v989
      %v1098 = vunpack.c.l.b16 %v990
      %v1099 = vunpack.c.h.b16 %v990
      %v1100 = vunpack.c.l.b16 %v991
      %v1101 = vunpack.c.h.b16 %v991
      %v1102 = vunpack.c.l.b16 %v992
      %v1103 = vunpack.c.h.b16 %v992
      %v1104 = vunpack.c.l.b16 %v993
      %v1105 = vunpack.c.h.b16 %v993
      %v1106 = vunpack.c.l.b16 %v994
      %v1107 = vunpack.c.h.b16 %v994
      %v1108 = vunpack.c.l.b16 %v995
      %v1109 = vunpack.c.h.b16 %v995
      %v1110 = vpack.c.b16 %v1036, %v1034
      %v1111 = vpack.c.b16 %v1037, %v1035
      %v1112 = vpack.c.b16 %v1040, %v1038
      %v1113 = vpack.c.b16 %v1041, %v1039
      %v1114 = vpack.c.b16 %v1044, %v1042
      %v1115 = vpack.c.b16 %v1045, %v1043
      %v1116 = vpack.c.b16 %v1048, %v1046
      %v1117 = vpack.c.b16 %v1049, %v1047
      %v1118 = vpack.c.b16 %v1052, %v1050
      %v1119 = vpack.c.b16 %v1053, %v1051
      %v1120 = vpack.c.b16 %v1056, %v1054
      %v1121 = vpack.c.b16 %v1057, %v1055
      %v1122 = vpack.c.b16 %v1060, %v1058
      %v1123 = vpack.c.b16 %v1061, %v1059
      %v1124 = vpack.c.b16 %v1064, %v1062
      %v1125 = vpack.c.b16 %v1065, %v1063
      %v1126 = vpack.c.b16 %v1068, %v1066
      %v1127 = vpack.c.b16 %v1069, %v1067
      %v1128 = vpack.c.b16 %v1072, %v1070
      %v1129 = vpack.c.b16 %v1073, %v1071
      %v1130 = vpack.c.b16 %v1076, %v1074
      %v1131 = vpack.c.b16 %v1077, %v1075
      %v1132 = vpack.c.b16 %v1080, %v1078
      %v1133 = vpack.c.b16 %v1081, %v1079
      %v1134 = vpack.c.b16 %v1084, %v1082
      %v1135 = vpack.c.b16 %v1085, %v1083
      %v1136 = vpack.c.b16 %v1088, %v1086
      %v1137 = vpack.c.b16 %v1089, %v1087
      %v1138 = vpack.c.b16 %v1092, %v1090
      %v1139 = vpack.c.b16 %v1093, %v1091
      %v1140 = vpack.c.b16 %v1096, %v1094
      %v1141 = vpack.c.b16 %v1097, %v1095
      %v1142 = vpack.c.b16 %v1100, %v1098
      %v1143 = vpack.c.b16 %v1101, %v1099
      %v1144 = vpack.c.b16 %v1104, %v1102
      %v1145 = vpack.c.b16 %v1105, %v1103
      %v1146 = vpack.c.b16 %v1108, %v1106
      %v1147 = vpack.c.b16 %v1109, %v1107
      %v1185 = vsel %vm575, %v1146, 0
      %v1188 = vsel %vm575, %v1147, 0
      %1190 = vmatpush.bf16.msra.mxu0 %v1124
      %1191 = vmatpush.bf16.msra.mxu0 %v1122
      %1192 = vmatpush.bf16.msra.mxu0 %v1120
      %1193 = vmatpush.bf16.msra.mxu0 %v1118
      %1194 = vmatpush.bf16.msra.mxu0 %v1116
      %1195 = vmatpush.bf16.msra.mxu0 %v1114
      %1196 = vmatpush.bf16.msra.mxu0 %v1112
      %1197 = vmatpush.bf16.msra.mxu0 %v1110
      %1198 = vmatmul.bf16.gmra.mxu0 %v366
      %v1199 = vpop.f32.mrf.mxu0
      %v1200 = vadd.f32 0.0, %v1199
      %v1201 = vpop.f32.mrf.mxu0
      %v1202 = vadd.f32 0.0, %v1201
      %1203 = vdwg.mxu0
      %1204 = vmatpush.bf16.msra.mxu0 %v1140
      %1205 = vmatpush.bf16.msra.mxu0 %v1138
      %1206 = vmatpush.bf16.msra.mxu0 %v1136
      %1207 = vmatpush.bf16.msra.mxu0 %v1134
      %1208 = vmatpush.bf16.msra.mxu0 %v1132
      %1209 = vmatpush.bf16.msra.mxu0 %v1130
      %1210 = vmatpush.bf16.msra.mxu0 %v1128
      %1211 = vmatpush.bf16.msra.mxu0 %v1126
      %1212 = vmatmul.bf16.gmra.mxu0 %v373
      %v1213 = vpop.f32.mrf.mxu0
      %v1214 = vadd.f32 %v1200, %v1213
      %v1215 = vpop.f32.mrf.mxu0
      %v1216 = vadd.f32 %v1202, %v1215
      %1217 = vdwg.mxu0
      %1218 = vmatpush.bf16.msra.mxu0 0
      %1219 = vmatpush.bf16.msra.mxu0 0
      %1220 = vmatpush.bf16.msra.mxu0 0
      %1221 = vmatpush.bf16.msra.mxu0 0
      %1222 = vmatpush.bf16.msra.mxu0 0
      %1223 = vmatpush.bf16.msra.mxu0 %v1185
      %1224 = vmatpush.bf16.msra.mxu0 %v1144
      %1225 = vmatpush.bf16.msra.mxu0 %v1142
      %1226 = vmatmul.bf16.gmra.mxu0 %v573
      %v1227 = vpop.f32.mrf.mxu0
      %v1228 = vadd.f32 %v1214, %v1227
      %v1229 = vpop.f32.mrf.mxu0
      %v1230 = vadd.f32 %v1216, %v1229
      %1231 = vdwg.mxu0
      %1232 = vmatpush.bf16.msra.mxu0 %v1125
      %1233 = vmatpush.bf16.msra.mxu0 %v1123
      %1234 = vmatpush.bf16.msra.mxu0 %v1121
      %1235 = vmatpush.bf16.msra.mxu0 %v1119
      %1236 = vmatpush.bf16.msra.mxu0 %v1117
      %1237 = vmatpush.bf16.msra.mxu0 %v1115
      %1238 = vmatpush.bf16.msra.mxu0 %v1113
      %1239 = vmatpush.bf16.msra.mxu0 %v1111
      %1240 = vmatmul.bf16.gmra.mxu0 %v366
      %v1241 = vpop.f32.mrf.mxu0
      %v1242 = vadd.f32 0.0, %v1241
      %v1243 = vpop.f32.mrf.mxu0
      %v1244 = vadd.f32 0.0, %v1243
      %1245 = vdwg.mxu0
      %1246 = vmatpush.bf16.msra.mxu0 %v1141
      %1247 = vmatpush.bf16.msra.mxu0 %v1139
      %1248 = vmatpush.bf16.msra.mxu0 %v1137
      %1249 = vmatpush.bf16.msra.mxu0 %v1135
      %1250 = vmatpush.bf16.msra.mxu0 %v1133
      %1251 = vmatpush.bf16.msra.mxu0 %v1131
      %1252 = vmatpush.bf16.msra.mxu0 %v1129
      %1253 = vmatpush.bf16.msra.mxu0 %v1127
      %1254 = vmatmul.bf16.gmra.mxu0 %v373
      %v1255 = vpop.f32.mrf.mxu0
      %v1256 = vadd.f32 %v1242, %v1255
      %v1257 = vpop.f32.mrf.mxu0
      %v1258 = vadd.f32 %v1244, %v1257
      %1259 = vdwg.mxu0
      %1260 = vmatpush.bf16.msra.mxu0 0
      %1261 = vmatpush.bf16.msra.mxu0 0
      %1262 = vmatpush.bf16.msra.mxu0 0
      %1263 = vmatpush.bf16.msra.mxu0 0
      %1264 = vmatpush.bf16.msra.mxu0 0
      %1265 = vmatpush.bf16.msra.mxu0 %v1188
      %1266 = vmatpush.bf16.msra.mxu0 %v1145
      %1267 = vmatpush.bf16.msra.mxu0 %v1143
      %1268 = vmatmul.bf16.gmra.mxu0 %v573
      %v1269 = vpop.f32.mrf.mxu0
      %v1270 = vadd.f32 %v1256, %v1269
      %v1271 = vpop.f32.mrf.mxu0
      %v1272 = vadd.f32 %v1258, %v1271
      %1273 = vdwg.mxu0
      %v1312 = vunpack.c.l.b16 %v268
      %v1313 = vunpack.c.h.b16 %v268
      %v1314 = vunpack.c.l.b16 %v269
      %v1315 = vunpack.c.h.b16 %v269
      %v1316 = vunpack.c.l.b16 %v270
      %v1317 = vunpack.c.h.b16 %v270
      %v1318 = vunpack.c.l.b16 %v271
      %v1319 = vunpack.c.h.b16 %v271
      %v1320 = vunpack.c.l.b16 %v272
      %v1321 = vunpack.c.h.b16 %v272
      %v1322 = vunpack.c.l.b16 %v273
      %v1323 = vunpack.c.h.b16 %v273
      %v1324 = vunpack.c.l.b16 %v274
      %v1325 = vunpack.c.h.b16 %v274
      %v1326 = vunpack.c.l.b16 %v275
      %v1327 = vunpack.c.h.b16 %v275
      %v1328 = vunpack.c.l.b16 %v276
      %v1329 = vunpack.c.h.b16 %v276
      %v1330 = vunpack.c.l.b16 %v277
      %v1331 = vunpack.c.h.b16 %v277
      %v1332 = vunpack.c.l.b16 %v278
      %v1333 = vunpack.c.h.b16 %v278
      %v1334 = vunpack.c.l.b16 %v279
      %v1335 = vunpack.c.h.b16 %v279
      %v1336 = vunpack.c.l.b16 %v280
      %v1337 = vunpack.c.h.b16 %v280
      %v1338 = vunpack.c.l.b16 %v281
      %v1339 = vunpack.c.h.b16 %v281
      %v1340 = vunpack.c.l.b16 %v282
      %v1341 = vunpack.c.h.b16 %v282
      %v1342 = vunpack.c.l.b16 %v283
      %v1343 = vunpack.c.h.b16 %v283
      %v1344 = vunpack.c.l.b16 %v284
      %v1345 = vunpack.c.h.b16 %v284
      %v1346 = vunpack.c.l.b16 %v285
      %v1347 = vunpack.c.h.b16 %v285
      %v1348 = vunpack.c.l.b16 %v286
      %v1349 = vunpack.c.h.b16 %v286
      %v1350 = vunpack.c.l.b16 %v287
      %v1351 = vunpack.c.h.b16 %v287
      %v1352 = vunpack.c.l.b16 %v288
      %v1353 = vunpack.c.h.b16 %v288
      %v1354 = vunpack.c.l.b16 %v289
      %v1355 = vunpack.c.h.b16 %v289
      %v1356 = vunpack.c.l.b16 %v290
      %v1357 = vunpack.c.h.b16 %v290
      %v1358 = vunpack.c.l.b16 %v291
      %v1359 = vunpack.c.h.b16 %v291
      %v1360 = vunpack.c.l.b16 %v292
      %v1361 = vunpack.c.h.b16 %v292
      %v1362 = vunpack.c.l.b16 %v293
      %v1363 = vunpack.c.h.b16 %v293
      %v1364 = vunpack.c.l.b16 %v294
      %v1365 = vunpack.c.h.b16 %v294
      %v1366 = vunpack.c.l.b16 %v295
      %v1367 = vunpack.c.h.b16 %v295
      %v1368 = vunpack.c.l.b16 %v296
      %v1369 = vunpack.c.h.b16 %v296
      %v1370 = vunpack.c.l.b16 %v297
      %v1371 = vunpack.c.h.b16 %v297
      %v1372 = vunpack.c.l.b16 %v298
      %v1373 = vunpack.c.h.b16 %v298
      %v1374 = vunpack.c.l.b16 %v299
      %v1375 = vunpack.c.h.b16 %v299
      %v1376 = vunpack.c.l.b16 %v300
      %v1377 = vunpack.c.h.b16 %v300
      %v1378 = vunpack.c.l.b16 %v301
      %v1379 = vunpack.c.h.b16 %v301
      %v1380 = vunpack.c.l.b16 %v302
      %v1381 = vunpack.c.h.b16 %v302
      %v1382 = vunpack.c.l.b16 %v303
      %v1383 = vunpack.c.h.b16 %v303
      %v1384 = vunpack.c.l.b16 %v304
      %v1385 = vunpack.c.h.b16 %v304
      %v1386 = vunpack.c.l.b16 %v305
      %v1387 = vunpack.c.h.b16 %v305
      %v1388 = vpack.c.b16 %v1314, %v1312
      %v1389 = vpack.c.b16 %v1315, %v1313
      %v1390 = vpack.c.b16 %v1318, %v1316
      %v1391 = vpack.c.b16 %v1319, %v1317
      %v1392 = vpack.c.b16 %v1322, %v1320
      %v1393 = vpack.c.b16 %v1323, %v1321
      %v1394 = vpack.c.b16 %v1326, %v1324
      %v1395 = vpack.c.b16 %v1327, %v1325
      %v1396 = vpack.c.b16 %v1330, %v1328
      %v1397 = vpack.c.b16 %v1331, %v1329
      %v1398 = vpack.c.b16 %v1334, %v1332
      %v1399 = vpack.c.b16 %v1335, %v1333
      %v1400 = vpack.c.b16 %v1338, %v1336
      %v1401 = vpack.c.b16 %v1339, %v1337
      %v1402 = vpack.c.b16 %v1342, %v1340
      %v1403 = vpack.c.b16 %v1343, %v1341
      %v1404 = vpack.c.b16 %v1346, %v1344
      %v1405 = vpack.c.b16 %v1347, %v1345
      %v1406 = vpack.c.b16 %v1350, %v1348
      %v1407 = vpack.c.b16 %v1351, %v1349
      %v1408 = vpack.c.b16 %v1354, %v1352
      %v1409 = vpack.c.b16 %v1355, %v1353
      %v1410 = vpack.c.b16 %v1358, %v1356
      %v1411 = vpack.c.b16 %v1359, %v1357
      %v1412 = vpack.c.b16 %v1362, %v1360
      %v1413 = vpack.c.b16 %v1363, %v1361
      %v1414 = vpack.c.b16 %v1366, %v1364
      %v1415 = vpack.c.b16 %v1367, %v1365
      %v1416 = vpack.c.b16 %v1370, %v1368
      %v1417 = vpack.c.b16 %v1371, %v1369
      %v1418 = vpack.c.b16 %v1374, %v1372
      %v1419 = vpack.c.b16 %v1375, %v1373
      %v1420 = vpack.c.b16 %v1378, %v1376
      %v1421 = vpack.c.b16 %v1379, %v1377
      %v1422 = vpack.c.b16 %v1382, %v1380
      %v1423 = vpack.c.b16 %v1383, %v1381
      %v1424 = vpack.c.b16 %v1386, %v1384
      %v1425 = vpack.c.b16 %v1387, %v1385
      %v1463 = vsel %vm575, %v1424, 0
      %v1466 = vsel %vm575, %v1425, 0
      %1468 = vmatpush.bf16.msra.mxu0 %v1402
      %1469 = vmatpush.bf16.msra.mxu0 %v1400
      %1470 = vmatpush.bf16.msra.mxu0 %v1398
      %1471 = vmatpush.bf16.msra.mxu0 %v1396
      %1472 = vmatpush.bf16.msra.mxu0 %v1394
      %1473 = vmatpush.bf16.msra.mxu0 %v1392
      %1474 = vmatpush.bf16.msra.mxu0 %v1390
      %1475 = vmatpush.bf16.msra.mxu0 %v1388
      %1476 = vmatmul.bf16.gmra.mxu0 %v671
      %v1477 = vpop.f32.mrf.mxu0
      %v1478 = vadd.f32 %v1228, %v1477
      %v1479 = vpop.f32.mrf.mxu0
      %v1480 = vadd.f32 %v1230, %v1479
      %1481 = vdwg.mxu0
      %1482 = vmatpush.bf16.msra.mxu0 %v1418
      %1483 = vmatpush.bf16.msra.mxu0 %v1416
      %1484 = vmatpush.bf16.msra.mxu0 %v1414
      %1485 = vmatpush.bf16.msra.mxu0 %v1412
      %1486 = vmatpush.bf16.msra.mxu0 %v1410
      %1487 = vmatpush.bf16.msra.mxu0 %v1408
      %1488 = vmatpush.bf16.msra.mxu0 %v1406
      %1489 = vmatpush.bf16.msra.mxu0 %v1404
      %1490 = vmatmul.bf16.gmra.mxu0 %v672
      %v1491 = vpop.f32.mrf.mxu0
      %v1492 = vadd.f32 %v1478, %v1491
      %v1493 = vpop.f32.mrf.mxu0
      %v1494 = vadd.f32 %v1480, %v1493
      %1495 = vdwg.mxu0
      %1496 = vmatpush.bf16.msra.mxu0 0
      %1497 = vmatpush.bf16.msra.mxu0 0
      %1498 = vmatpush.bf16.msra.mxu0 0
      %1499 = vmatpush.bf16.msra.mxu0 0
      %1500 = vmatpush.bf16.msra.mxu0 0
      %1501 = vmatpush.bf16.msra.mxu0 %v1463
      %1502 = vmatpush.bf16.msra.mxu0 %v1422
      %1503 = vmatpush.bf16.msra.mxu0 %v1420
      %1504 = vmatmul.bf16.gmra.mxu0 %v865
      %v1505 = vpop.f32.mrf.mxu0
      %v1506 = vadd.f32 %v1492, %v1505
      %v1507 = vpop.f32.mrf.mxu0
      %v1508 = vadd.f32 %v1494, %v1507
      %1509 = vdwg.mxu0
      %1510 = vmatpush.bf16.msra.mxu0 %v1403
      %1511 = vmatpush.bf16.msra.mxu0 %v1401
      %1512 = vmatpush.bf16.msra.mxu0 %v1399
      %1513 = vmatpush.bf16.msra.mxu0 %v1397
      %1514 = vmatpush.bf16.msra.mxu0 %v1395
      %1515 = vmatpush.bf16.msra.mxu0 %v1393
      %1516 = vmatpush.bf16.msra.mxu0 %v1391
      %1517 = vmatpush.bf16.msra.mxu0 %v1389
      %1518 = vmatmul.bf16.gmra.mxu0 %v671
      %v1519 = vpop.f32.mrf.mxu0
      %v1520 = vadd.f32 %v1270, %v1519
      %v1521 = vpop.f32.mrf.mxu0
      %v1522 = vadd.f32 %v1272, %v1521
      %1523 = vdwg.mxu0
      %1524 = vmatpush.bf16.msra.mxu0 %v1419
      %1525 = vmatpush.bf16.msra.mxu0 %v1417
      %1526 = vmatpush.bf16.msra.mxu0 %v1415
      %1527 = vmatpush.bf16.msra.mxu0 %v1413
      %1528 = vmatpush.bf16.msra.mxu0 %v1411
      %1529 = vmatpush.bf16.msra.mxu0 %v1409
      %1530 = vmatpush.bf16.msra.mxu0 %v1407
      %1531 = vmatpush.bf16.msra.mxu0 %v1405
      %1532 = vmatmul.bf16.gmra.mxu0 %v672
      %v1533 = vpop.f32.mrf.mxu0
      %v1534 = vadd.f32 %v1520, %v1533
      %v1535 = vpop.f32.mrf.mxu0
      %v1536 = vadd.f32 %v1522, %v1535
      %1537 = vdwg.mxu0
      %1538 = vmatpush.bf16.msra.mxu0 0
      %1539 = vmatpush.bf16.msra.mxu0 0
      %1540 = vmatpush.bf16.msra.mxu0 0
      %1541 = vmatpush.bf16.msra.mxu0 0
      %1542 = vmatpush.bf16.msra.mxu0 0
      %1543 = vmatpush.bf16.msra.mxu0 %v1466
      %1544 = vmatpush.bf16.msra.mxu0 %v1423
      %1545 = vmatpush.bf16.msra.mxu0 %v1421
      %1546 = vmatmul.bf16.gmra.mxu0 %v865
      %v1547 = vpop.f32.mrf.mxu0
      %v1548 = vadd.f32 %v1534, %v1547
      %v1549 = vpop.f32.mrf.mxu0
      %v1550 = vadd.f32 %v1536, %v1549
      %1551 = vdwg.mxu0
      %v1552 = vld [vmem:[%s219] sm:$0xee]
      %v1553 = vld [vmem:[%s219 + $0x8] sm:$0xe]
      %s1554 = scalar_lea.vmem %s1, 608
      %v1555 = vld [vmem:[%s1554] sm:$0xff]
      %v1556 = vld [vmem:[%s1554 + $0x8] sm:$0xff]
      %v1557 = vld [vmem:[%s1554 + $0x10] sm:$0xff]
      %v1558 = vld [vmem:[%s1554 + $0x18] sm:$0xff]
      %v1559 = vld [vmem:[%s1554 + $0x20] sm:$0xff]
      %v1560 = vld [vmem:[%s1554 + $0x28] sm:$0xff]
      %v1561 = vld [vmem:[%s1554 + $0x30] sm:$0xff]
      %v1562 = vld [vmem:[%s1554 + $0x38] sm:$0xff]
      %v1563 = vld [vmem:[%s1554 + $0x40] sm:$0xff]
      %v1564 = vld [vmem:[%s1554 + $0x48] sm:$0xff]
      %v1565 = vld [vmem:[%s1554 + $0x50] sm:$0xff]
      %v1566 = vld [vmem:[%s1554 + $0x58] sm:$0xff]
      %v1567 = vld [vmem:[%s1554 + $0x60] sm:$0xff]
      %v1568 = vld [vmem:[%s1554 + $0x68] sm:$0xff]
      %v1569 = vld [vmem:[%s1554 + $0x70] sm:$0xff]
      %v1570 = vld [vmem:[%s1554 + $0x78] sm:$0xff]
      %v1571 = vld [vmem:[%s1554 + $0x80] sm:$0xff]
      %v1572 = vld [vmem:[%s1554 + $0x88] sm:$0xff]
      %v1573 = vld [vmem:[%s1554 + $0x90] sm:$0xff]
      %v1574 = vld [vmem:[%s1554 + $0x98] sm:$0xff]
      %v1575 = vld [vmem:[%s1554 + $0xa0] sm:$0xff]
      %v1576 = vld [vmem:[%s1554 + $0xa8] sm:$0xff]
      %v1577 = vld [vmem:[%s1554 + $0xb0] sm:$0xff]
      %v1578 = vld [vmem:[%s1554 + $0xb8] sm:$0xff]
      %v1579 = vld [vmem:[%s1554 + $0xc0] sm:$0xff]
      %v1580 = vld [vmem:[%s1554 + $0xc8] sm:$0xff]
      %v1581 = vld [vmem:[%s1554 + $0xd0] sm:$0xff]
      %v1582 = vld [vmem:[%s1554 + $0xd8] sm:$0xff]
      %v1583 = vld [vmem:[%s1554 + $0xe0] sm:$0xff]
      %v1584 = vld [vmem:[%s1554 + $0xe8] sm:$0xff]
      %v1585 = vld [vmem:[%s1554 + $0xf0] sm:$0xff]
      %v1586 = vld [vmem:[%s1554 + $0xf8] sm:$0xff]
      %v1587 = vld [vmem:[%s1554 + $0x100] sm:$0xff]
      %v1588 = vld [vmem:[%s1554 + $0x108] sm:$0xff]
      %v1589 = vld [vmem:[%s1554 + $0x110] sm:$0xff]
      %v1590 = vld [vmem:[%s1554 + $0x118] sm:$0xff]
      %v1591 = vld [vmem:[%s1554 + $0x120] sm:$0xff]
      %v1592 = vld [vmem:[%s1554 + $0x128] sm:$0x33]
      %v1595 = vunpack.c.l.b16 %v1552
      %v1596 = vunpack.c.h.b16 %v1552
      %v1597 = vunpack.c.l.b16 %v1553
      %v1598 = vpack.c.b16 %v354, %v1595
      %v1599 = vpack.c.b16 %v355, %v1596
      %v1600 = vpack.c.b16 %v356, %v1597
      %v1601 = vrot.slane %v1598, 1
      %v1602 = vrot.slane %v1599, 1
      %v1603 = vrot.slane %v1600, 1
      %v1644 = vunpack.c.l.b16 %v1555
      %v1645 = vunpack.c.h.b16 %v1555
      %v1646 = vunpack.c.l.b16 %v1556
      %v1647 = vunpack.c.h.b16 %v1556
      %v1648 = vunpack.c.l.b16 %v1557
      %v1649 = vunpack.c.h.b16 %v1557
      %v1650 = vunpack.c.l.b16 %v1558
      %v1651 = vunpack.c.h.b16 %v1558
      %v1652 = vunpack.c.l.b16 %v1559
      %v1653 = vunpack.c.h.b16 %v1559
      %v1654 = vunpack.c.l.b16 %v1560
      %v1655 = vunpack.c.h.b16 %v1560
      %v1656 = vunpack.c.l.b16 %v1561
      %v1657 = vunpack.c.h.b16 %v1561
      %v1658 = vunpack.c.l.b16 %v1562
      %v1659 = vunpack.c.h.b16 %v1562
      %v1660 = vunpack.c.l.b16 %v1563
      %v1661 = vunpack.c.h.b16 %v1563
      %v1662 = vunpack.c.l.b16 %v1564
      %v1663 = vunpack.c.h.b16 %v1564
      %v1664 = vunpack.c.l.b16 %v1565
      %v1665 = vunpack.c.h.b16 %v1565
      %v1666 = vunpack.c.l.b16 %v1566
      %v1667 = vunpack.c.h.b16 %v1566
      %v1668 = vunpack.c.l.b16 %v1567
      %v1669 = vunpack.c.h.b16 %v1567
      %v1670 = vunpack.c.l.b16 %v1568
      %v1671 = vunpack.c.h.b16 %v1568
      %v1672 = vunpack.c.l.b16 %v1569
      %v1673 = vunpack.c.h.b16 %v1569
      %v1674 = vunpack.c.l.b16 %v1570
      %v1675 = vunpack.c.h.b16 %v1570
      %v1676 = vunpack.c.l.b16 %v1571
      %v1677 = vunpack.c.h.b16 %v1571
      %v1678 = vunpack.c.l.b16 %v1572
      %v1679 = vunpack.c.h.b16 %v1572
      %v1680 = vunpack.c.l.b16 %v1573
      %v1681 = vunpack.c.h.b16 %v1573
      %v1682 = vunpack.c.l.b16 %v1574
      %v1683 = vunpack.c.h.b16 %v1574
      %v1684 = vunpack.c.l.b16 %v1575
      %v1685 = vunpack.c.h.b16 %v1575
      %v1686 = vunpack.c.l.b16 %v1576
      %v1687 = vunpack.c.h.b16 %v1576
      %v1688 = vunpack.c.l.b16 %v1577
      %v1689 = vunpack.c.h.b16 %v1577
      %v1690 = vunpack.c.l.b16 %v1578
      %v1691 = vunpack.c.h.b16 %v1578
      %v1692 = vunpack.c.l.b16 %v1579
      %v1693 = vunpack.c.h.b16 %v1579
      %v1694 = vunpack.c.l.b16 %v1580
      %v1695 = vunpack.c.h.b16 %v1580
      %v1696 = vunpack.c.l.b16 %v1581
      %v1697 = vunpack.c.h.b16 %v1581
      %v1698 = vunpack.c.l.b16 %v1582
      %v1699 = vunpack.c.h.b16 %v1582
      %v1700 = vunpack.c.l.b16 %v1583
      %v1701 = vunpack.c.h.b16 %v1583
      %v1702 = vunpack.c.l.b16 %v1584
      %v1703 = vunpack.c.h.b16 %v1584
      %v1704 = vunpack.c.l.b16 %v1585
      %v1705 = vunpack.c.h.b16 %v1585
      %v1706 = vunpack.c.l.b16 %v1586
      %v1707 = vunpack.c.h.b16 %v1586
      %v1708 = vunpack.c.l.b16 %v1587
      %v1709 = vunpack.c.h.b16 %v1587
      %v1710 = vunpack.c.l.b16 %v1588
      %v1711 = vunpack.c.h.b16 %v1588
      %v1712 = vunpack.c.l.b16 %v1589
      %v1713 = vunpack.c.h.b16 %v1589
      %v1714 = vunpack.c.l.b16 %v1590
      %v1715 = vunpack.c.h.b16 %v1590
      %v1716 = vunpack.c.l.b16 %v1591
      %v1717 = vunpack.c.h.b16 %v1591
      %v1718 = vunpack.c.l.b16 %v1592
      %v1719 = vunpack.c.h.b16 %v1592
      %v1720 = vpack.c.b16 %v1646, %v1644
      %v1721 = vpack.c.b16 %v1647, %v1645
      %v1722 = vpack.c.b16 %v1650, %v1648
      %v1723 = vpack.c.b16 %v1651, %v1649
      %v1724 = vpack.c.b16 %v1654, %v1652
      %v1725 = vpack.c.b16 %v1655, %v1653
      %v1726 = vpack.c.b16 %v1658, %v1656
      %v1727 = vpack.c.b16 %v1659, %v1657
      %v1728 = vpack.c.b16 %v1662, %v1660
      %v1729 = vpack.c.b16 %v1663, %v1661
      %v1730 = vpack.c.b16 %v1666, %v1664
      %v1731 = vpack.c.b16 %v1667, %v1665
      %v1732 = vpack.c.b16 %v1670, %v1668
      %v1733 = vpack.c.b16 %v1671, %v1669
      %v1734 = vpack.c.b16 %v1674, %v1672
      %v1735 = vpack.c.b16 %v1675, %v1673
      %v1736 = vpack.c.b16 %v1678, %v1676
      %v1737 = vpack.c.b16 %v1679, %v1677
      %v1738 = vpack.c.b16 %v1682, %v1680
      %v1739 = vpack.c.b16 %v1683, %v1681
      %v1740 = vpack.c.b16 %v1686, %v1684
      %v1741 = vpack.c.b16 %v1687, %v1685
      %v1742 = vpack.c.b16 %v1690, %v1688
      %v1743 = vpack.c.b16 %v1691, %v1689
      %v1744 = vpack.c.b16 %v1694, %v1692
      %v1745 = vpack.c.b16 %v1695, %v1693
      %v1746 = vpack.c.b16 %v1698, %v1696
      %v1747 = vpack.c.b16 %v1699, %v1697
      %v1748 = vpack.c.b16 %v1702, %v1700
      %v1749 = vpack.c.b16 %v1703, %v1701
      %v1750 = vpack.c.b16 %v1706, %v1704
      %v1751 = vpack.c.b16 %v1707, %v1705
      %v1752 = vpack.c.b16 %v1710, %v1708
      %v1753 = vpack.c.b16 %v1711, %v1709
      %v1754 = vpack.c.b16 %v1714, %v1712
      %v1755 = vpack.c.b16 %v1715, %v1713
      %v1756 = vpack.c.b16 %v1718, %v1716
      %v1757 = vpack.c.b16 %v1719, %v1717
      %v1795 = vsel %vm571, %v1603, 0
      %v1798 = vsel %vm575, %v1756, 0
      %v1801 = vsel %vm575, %v1757, 0
      %1803 = vmatpush.bf16.msra.mxu0 %v1734
      %1804 = vmatpush.bf16.msra.mxu0 %v1732
      %1805 = vmatpush.bf16.msra.mxu0 %v1730
      %1806 = vmatpush.bf16.msra.mxu0 %v1728
      %1807 = vmatpush.bf16.msra.mxu0 %v1726
      %1808 = vmatpush.bf16.msra.mxu0 %v1724
      %1809 = vmatpush.bf16.msra.mxu0 %v1722
      %1810 = vmatpush.bf16.msra.mxu0 %v1720
      %1811 = vmatmul.bf16.gmra.mxu0 %v1601
      %v1812 = vpop.f32.mrf.mxu0
      %v1813 = vadd.f32 0.0, %v1812
      %v1814 = vpop.f32.mrf.mxu0
      %v1815 = vadd.f32 0.0, %v1814
      %1816 = vdwg.mxu0
      %1817 = vmatpush.bf16.msra.mxu0 %v1750
      %1818 = vmatpush.bf16.msra.mxu0 %v1748
      %1819 = vmatpush.bf16.msra.mxu0 %v1746
      %1820 = vmatpush.bf16.msra.mxu0 %v1744
      %1821 = vmatpush.bf16.msra.mxu0 %v1742
      %1822 = vmatpush.bf16.msra.mxu0 %v1740
      %1823 = vmatpush.bf16.msra.mxu0 %v1738
      %1824 = vmatpush.bf16.msra.mxu0 %v1736
      %1825 = vmatmul.bf16.gmra.mxu0 %v1602
      %v1826 = vpop.f32.mrf.mxu0
      %v1827 = vadd.f32 %v1813, %v1826
      %v1828 = vpop.f32.mrf.mxu0
      %v1829 = vadd.f32 %v1815, %v1828
      %1830 = vdwg.mxu0
      %1831 = vmatpush.bf16.msra.mxu0 0
      %1832 = vmatpush.bf16.msra.mxu0 0
      %1833 = vmatpush.bf16.msra.mxu0 0
      %1834 = vmatpush.bf16.msra.mxu0 0
      %1835 = vmatpush.bf16.msra.mxu0 0
      %1836 = vmatpush.bf16.msra.mxu0 %v1798
      %1837 = vmatpush.bf16.msra.mxu0 %v1754
      %1838 = vmatpush.bf16.msra.mxu0 %v1752
      %1839 = vmatmul.bf16.gmra.mxu0 %v1795
      %v1840 = vpop.f32.mrf.mxu0
      %v1841 = vadd.f32 %v1827, %v1840
      %v1842 = vpop.f32.mrf.mxu0
      %v1843 = vadd.f32 %v1829, %v1842
      %1844 = vdwg.mxu0
      %1845 = vmatpush.bf16.msra.mxu0 %v1735
      %1846 = vmatpush.bf16.msra.mxu0 %v1733
      %1847 = vmatpush.bf16.msra.mxu0 %v1731
      %1848 = vmatpush.bf16.msra.mxu0 %v1729
      %1849 = vmatpush.bf16.msra.mxu0 %v1727
      %1850 = vmatpush.bf16.msra.mxu0 %v1725
      %1851 = vmatpush.bf16.msra.mxu0 %v1723
      %1852 = vmatpush.bf16.msra.mxu0 %v1721
      %1853 = vmatmul.bf16.gmra.mxu0 %v1601
      %v1854 = vpop.f32.mrf.mxu0
      %v1855 = vadd.f32 0.0, %v1854
      %v1856 = vpop.f32.mrf.mxu0
      %v1857 = vadd.f32 0.0, %v1856
      %1858 = vdwg.mxu0
      %1859 = vmatpush.bf16.msra.mxu0 %v1751
      %1860 = vmatpush.bf16.msra.mxu0 %v1749
      %1861 = vmatpush.bf16.msra.mxu0 %v1747
      %1862 = vmatpush.bf16.msra.mxu0 %v1745
      %1863 = vmatpush.bf16.msra.mxu0 %v1743
      %1864 = vmatpush.bf16.msra.mxu0 %v1741
      %1865 = vmatpush.bf16.msra.mxu0 %v1739
      %1866 = vmatpush.bf16.msra.mxu0 %v1737
      %1867 = vmatmul.bf16.gmra.mxu0 %v1602
      %v1868 = vpop.f32.mrf.mxu0
      %v1869 = vadd.f32 %v1855, %v1868
      %v1870 = vpop.f32.mrf.mxu0
      %v1871 = vadd.f32 %v1857, %v1870
      %1872 = vdwg.mxu0
      %1873 = vmatpush.bf16.msra.mxu0 0
      %1874 = vmatpush.bf16.msra.mxu0 0
      %1875 = vmatpush.bf16.msra.mxu0 0
      %1876 = vmatpush.bf16.msra.mxu0 0
      %1877 = vmatpush.bf16.msra.mxu0 0
      %1878 = vmatpush.bf16.msra.mxu0 %v1801
      %1879 = vmatpush.bf16.msra.mxu0 %v1755
      %1880 = vmatpush.bf16.msra.mxu0 %v1753
      %1881 = vmatmul.bf16.gmra.mxu0 %v1795
      %v1882 = vpop.f32.mrf.mxu0
      %v1883 = vadd.f32 %v1869, %v1882
      %v1884 = vpop.f32.mrf.mxu0
      %v1885 = vadd.f32 %v1871, %v1884
      %1886 = vdwg.mxu0
      %v1887 = vadd.f32 %v911, %v1841
      %v1888 = vadd.f32 %v953, %v1883
      %v1889 = vadd.f32 %v913, %v1843
      %v1890 = vadd.f32 %v955, %v1885
      %s1891 = scalar_lea.vmem %s2, 608
      %v1892 = vld [vmem:[%s1891] sm:$0xff]
      %v1893 = vld [vmem:[%s1891 + $0x8] sm:$0xff]
      %v1894 = vld [vmem:[%s1891 + $0x10] sm:$0xff]
      %v1895 = vld [vmem:[%s1891 + $0x18] sm:$0xff]
      %v1896 = vld [vmem:[%s1891 + $0x20] sm:$0xff]
      %v1897 = vld [vmem:[%s1891 + $0x28] sm:$0xff]
      %v1898 = vld [vmem:[%s1891 + $0x30] sm:$0xff]
      %v1899 = vld [vmem:[%s1891 + $0x38] sm:$0xff]
      %v1900 = vld [vmem:[%s1891 + $0x40] sm:$0xff]
      %v1901 = vld [vmem:[%s1891 + $0x48] sm:$0xff]
      %v1902 = vld [vmem:[%s1891 + $0x50] sm:$0xff]
      %v1903 = vld [vmem:[%s1891 + $0x58] sm:$0xff]
      %v1904 = vld [vmem:[%s1891 + $0x60] sm:$0xff]
      %v1905 = vld [vmem:[%s1891 + $0x68] sm:$0xff]
      %v1906 = vld [vmem:[%s1891 + $0x70] sm:$0xff]
      %v1907 = vld [vmem:[%s1891 + $0x78] sm:$0xff]
      %v1908 = vld [vmem:[%s1891 + $0x80] sm:$0xff]
      %v1909 = vld [vmem:[%s1891 + $0x88] sm:$0xff]
      %v1910 = vld [vmem:[%s1891 + $0x90] sm:$0xff]
      %v1911 = vld [vmem:[%s1891 + $0x98] sm:$0xff]
      %v1912 = vld [vmem:[%s1891 + $0xa0] sm:$0xff]
      %v1913 = vld [vmem:[%s1891 + $0xa8] sm:$0xff]
      %v1914 = vld [vmem:[%s1891 + $0xb0] sm:$0xff]
      %v1915 = vld [vmem:[%s1891 + $0xb8] sm:$0xff]
      %v1916 = vld [vmem:[%s1891 + $0xc0] sm:$0xff]
      %v1917 = vld [vmem:[%s1891 + $0xc8] sm:$0xff]
      %v1918 = vld [vmem:[%s1891 + $0xd0] sm:$0xff]
      %v1919 = vld [vmem:[%s1891 + $0xd8] sm:$0xff]
      %v1920 = vld [vmem:[%s1891 + $0xe0] sm:$0xff]
      %v1921 = vld [vmem:[%s1891 + $0xe8] sm:$0xff]
      %v1922 = vld [vmem:[%s1891 + $0xf0] sm:$0xff]
      %v1923 = vld [vmem:[%s1891 + $0xf8] sm:$0xff]
      %v1924 = vld [vmem:[%s1891 + $0x100] sm:$0xff]
      %v1925 = vld [vmem:[%s1891 + $0x108] sm:$0xff]
      %v1926 = vld [vmem:[%s1891 + $0x110] sm:$0xff]
      %v1927 = vld [vmem:[%s1891 + $0x118] sm:$0xff]
      %v1928 = vld [vmem:[%s1891 + $0x120] sm:$0xff]
      %v1929 = vld [vmem:[%s1891 + $0x128] sm:$0x33]
      %v1968 = vunpack.c.l.b16 %v1892
      %v1969 = vunpack.c.h.b16 %v1892
      %v1970 = vunpack.c.l.b16 %v1893
      %v1971 = vunpack.c.h.b16 %v1893
      %v1972 = vunpack.c.l.b16 %v1894
      %v1973 = vunpack.c.h.b16 %v1894
      %v1974 = vunpack.c.l.b16 %v1895
      %v1975 = vunpack.c.h.b16 %v1895
      %v1976 = vunpack.c.l.b16 %v1896
      %v1977 = vunpack.c.h.b16 %v1896
      %v1978 = vunpack.c.l.b16 %v1897
      %v1979 = vunpack.c.h.b16 %v1897
      %v1980 = vunpack.c.l.b16 %v1898
      %v1981 = vunpack.c.h.b16 %v1898
      %v1982 = vunpack.c.l.b16 %v1899
      %v1983 = vunpack.c.h.b16 %v1899
      %v1984 = vunpack.c.l.b16 %v1900
      %v1985 = vunpack.c.h.b16 %v1900
      %v1986 = vunpack.c.l.b16 %v1901
      %v1987 = vunpack.c.h.b16 %v1901
      %v1988 = vunpack.c.l.b16 %v1902
      %v1989 = vunpack.c.h.b16 %v1902
      %v1990 = vunpack.c.l.b16 %v1903
      %v1991 = vunpack.c.h.b16 %v1903
      %v1992 = vunpack.c.l.b16 %v1904
      %v1993 = vunpack.c.h.b16 %v1904
      %v1994 = vunpack.c.l.b16 %v1905
      %v1995 = vunpack.c.h.b16 %v1905
      %v1996 = vunpack.c.l.b16 %v1906
      %v1997 = vunpack.c.h.b16 %v1906
      %v1998 = vunpack.c.l.b16 %v1907
      %v1999 = vunpack.c.h.b16 %v1907
      %v2000 = vunpack.c.l.b16 %v1908
      %v2001 = vunpack.c.h.b16 %v1908
      %v2002 = vunpack.c.l.b16 %v1909
      %v2003 = vunpack.c.h.b16 %v1909
      %v2004 = vunpack.c.l.b16 %v1910
      %v2005 = vunpack.c.h.b16 %v1910
      %v2006 = vunpack.c.l.b16 %v1911
      %v2007 = vunpack.c.h.b16 %v1911
      %v2008 = vunpack.c.l.b16 %v1912
      %v2009 = vunpack.c.h.b16 %v1912
      %v2010 = vunpack.c.l.b16 %v1913
      %v2011 = vunpack.c.h.b16 %v1913
      %v2012 = vunpack.c.l.b16 %v1914
      %v2013 = vunpack.c.h.b16 %v1914
      %v2014 = vunpack.c.l.b16 %v1915
      %v2015 = vunpack.c.h.b16 %v1915
      %v2016 = vunpack.c.l.b16 %v1916
      %v2017 = vunpack.c.h.b16 %v1916
      %v2018 = vunpack.c.l.b16 %v1917
      %v2019 = vunpack.c.h.b16 %v1917
      %v2020 = vunpack.c.l.b16 %v1918
      %v2021 = vunpack.c.h.b16 %v1918
      %v2022 = vunpack.c.l.b16 %v1919
      %v2023 = vunpack.c.h.b16 %v1919
      %v2024 = vunpack.c.l.b16 %v1920
      %v2025 = vunpack.c.h.b16 %v1920
      %v2026 = vunpack.c.l.b16 %v1921
      %v2027 = vunpack.c.h.b16 %v1921
      %v2028 = vunpack.c.l.b16 %v1922
      %v2029 = vunpack.c.h.b16 %v1922
      %v2030 = vunpack.c.l.b16 %v1923
      %v2031 = vunpack.c.h.b16 %v1923
      %v2032 = vunpack.c.l.b16 %v1924
      %v2033 = vunpack.c.h.b16 %v1924
      %v2034 = vunpack.c.l.b16 %v1925
      %v2035 = vunpack.c.h.b16 %v1925
      %v2036 = vunpack.c.l.b16 %v1926
      %v2037 = vunpack.c.h.b16 %v1926
      %v2038 = vunpack.c.l.b16 %v1927
      %v2039 = vunpack.c.h.b16 %v1927
      %v2040 = vunpack.c.l.b16 %v1928
      %v2041 = vunpack.c.h.b16 %v1928
      %v2042 = vunpack.c.l.b16 %v1929
      %v2043 = vunpack.c.h.b16 %v1929
      %v2044 = vpack.c.b16 %v1970, %v1968
      %v2045 = vpack.c.b16 %v1971, %v1969
      %v2046 = vpack.c.b16 %v1974, %v1972
      %v2047 = vpack.c.b16 %v1975, %v1973
      %v2048 = vpack.c.b16 %v1978, %v1976
      %v2049 = vpack.c.b16 %v1979, %v1977
      %v2050 = vpack.c.b16 %v1982, %v1980
      %v2051 = vpack.c.b16 %v1983, %v1981
      %v2052 = vpack.c.b16 %v1986, %v1984
      %v2053 = vpack.c.b16 %v1987, %v1985
      %v2054 = vpack.c.b16 %v1990, %v1988
      %v2055 = vpack.c.b16 %v1991, %v1989
      %v2056 = vpack.c.b16 %v1994, %v1992
      %v2057 = vpack.c.b16 %v1995, %v1993
      %v2058 = vpack.c.b16 %v1998, %v1996
      %v2059 = vpack.c.b16 %v1999, %v1997
      %v2060 = vpack.c.b16 %v2002, %v2000
      %v2061 = vpack.c.b16 %v2003, %v2001
      %v2062 = vpack.c.b16 %v2006, %v2004
      %v2063 = vpack.c.b16 %v2007, %v2005
      %v2064 = vpack.c.b16 %v2010, %v2008
      %v2065 = vpack.c.b16 %v2011, %v2009
      %v2066 = vpack.c.b16 %v2014, %v2012
      %v2067 = vpack.c.b16 %v2015, %v2013
      %v2068 = vpack.c.b16 %v2018, %v2016
      %v2069 = vpack.c.b16 %v2019, %v2017
      %v2070 = vpack.c.b16 %v2022, %v2020
      %v2071 = vpack.c.b16 %v2023, %v2021
      %v2072 = vpack.c.b16 %v2026, %v2024
      %v2073 = vpack.c.b16 %v2027, %v2025
      %v2074 = vpack.c.b16 %v2030, %v2028
      %v2075 = vpack.c.b16 %v2031, %v2029
      %v2076 = vpack.c.b16 %v2034, %v2032
      %v2077 = vpack.c.b16 %v2035, %v2033
      %v2078 = vpack.c.b16 %v2038, %v2036
      %v2079 = vpack.c.b16 %v2039, %v2037
      %v2080 = vpack.c.b16 %v2042, %v2040
      %v2081 = vpack.c.b16 %v2043, %v2041
      %v2119 = vsel %vm575, %v2080, 0
      %v2122 = vsel %vm575, %v2081, 0
      %2124 = vmatpush.bf16.msra.mxu0 %v2058
      %2125 = vmatpush.bf16.msra.mxu0 %v2056
      %2126 = vmatpush.bf16.msra.mxu0 %v2054
      %2127 = vmatpush.bf16.msra.mxu0 %v2052
      %2128 = vmatpush.bf16.msra.mxu0 %v2050
      %2129 = vmatpush.bf16.msra.mxu0 %v2048
      %2130 = vmatpush.bf16.msra.mxu0 %v2046
      %2131 = vmatpush.bf16.msra.mxu0 %v2044
      %2132 = vmatmul.bf16.gmra.mxu0 %v1601
      %v2133 = vpop.f32.mrf.mxu0
      %v2134 = vadd.f32 0.0, %v2133
      %v2135 = vpop.f32.mrf.mxu0
      %v2136 = vadd.f32 0.0, %v2135
      %2137 = vdwg.mxu0
      %2138 = vmatpush.bf16.msra.mxu0 %v2074
      %2139 = vmatpush.bf16.msra.mxu0 %v2072
      %2140 = vmatpush.bf16.msra.mxu0 %v2070
      %2141 = vmatpush.bf16.msra.mxu0 %v2068
      %2142 = vmatpush.bf16.msra.mxu0 %v2066
      %2143 = vmatpush.bf16.msra.mxu0 %v2064
      %2144 = vmatpush.bf16.msra.mxu0 %v2062
      %2145 = vmatpush.bf16.msra.mxu0 %v2060
      %2146 = vmatmul.bf16.gmra.mxu0 %v1602
      %v2147 = vpop.f32.mrf.mxu0
      %v2148 = vadd.f32 %v2134, %v2147
      %v2149 = vpop.f32.mrf.mxu0
      %v2150 = vadd.f32 %v2136, %v2149
      %2151 = vdwg.mxu0
      %2152 = vmatpush.bf16.msra.mxu0 0
      %2153 = vmatpush.bf16.msra.mxu0 0
      %2154 = vmatpush.bf16.msra.mxu0 0
      %2155 = vmatpush.bf16.msra.mxu0 0
      %2156 = vmatpush.bf16.msra.mxu0 0
      %2157 = vmatpush.bf16.msra.mxu0 %v2119
      %2158 = vmatpush.bf16.msra.mxu0 %v2078
      %2159 = vmatpush.bf16.msra.mxu0 %v2076
      %2160 = vmatmul.bf16.gmra.mxu0 %v1795
      %v2161 = vpop.f32.mrf.mxu0
      %v2162 = vadd.f32 %v2148, %v2161
      %v2163 = vpop.f32.mrf.mxu0
      %v2164 = vadd.f32 %v2150, %v2163
      %2165 = vdwg.mxu0
      %2166 = vmatpush.bf16.msra.mxu0 %v2059
      %2167 = vmatpush.bf16.msra.mxu0 %v2057
      %2168 = vmatpush.bf16.msra.mxu0 %v2055
      %2169 = vmatpush.bf16.msra.mxu0 %v2053
      %2170 = vmatpush.bf16.msra.mxu0 %v2051
      %2171 = vmatpush.bf16.msra.mxu0 %v2049
      %2172 = vmatpush.bf16.msra.mxu0 %v2047
      %2173 = vmatpush.bf16.msra.mxu0 %v2045
      %2174 = vmatmul.bf16.gmra.mxu0 %v1601
      %v2175 = vpop.f32.mrf.mxu0
      %v2176 = vadd.f32 0.0, %v2175
      %v2177 = vpop.f32.mrf.mxu0
      %v2178 = vadd.f32 0.0, %v2177
      %2179 = vdwg.mxu0
      %2180 = vmatpush.bf16.msra.mxu0 %v2075
      %2181 = vmatpush.bf16.msra.mxu0 %v2073
      %2182 = vmatpush.bf16.msra.mxu0 %v2071
      %2183 = vmatpush.bf16.msra.mxu0 %v2069
      %2184 = vmatpush.bf16.msra.mxu0 %v2067
      %2185 = vmatpush.bf16.msra.mxu0 %v2065
      %2186 = vmatpush.bf16.msra.mxu0 %v2063
      %2187 = vmatpush.bf16.msra.mxu0 %v2061
      %2188 = vmatmul.bf16.gmra.mxu0 %v1602
      %v2189 = vpop.f32.mrf.mxu0
      %v2190 = vadd.f32 %v2176, %v2189
      %v2191 = vpop.f32.mrf.mxu0
      %v2192 = vadd.f32 %v2178, %v2191
      %2193 = vdwg.mxu0
      %2194 = vmatpush.bf16.msra.mxu0 0
      %2195 = vmatpush.bf16.msra.mxu0 0
      %2196 = vmatpush.bf16.msra.mxu0 0
      %2197 = vmatpush.bf16.msra.mxu0 0
      %2198 = vmatpush.bf16.msra.mxu0 0
      %2199 = vmatpush.bf16.msra.mxu0 %v2122
      %2200 = vmatpush.bf16.msra.mxu0 %v2079
      %2201 = vmatpush.bf16.msra.mxu0 %v2077
      %2202 = vmatmul.bf16.gmra.mxu0 %v1795
      %v2203 = vpop.f32.mrf.mxu0
      %v2204 = vadd.f32 %v2190, %v2203
      %v2205 = vpop.f32.mrf.mxu0
      %v2206 = vadd.f32 %v2192, %v2205
      %2207 = vdwg.mxu0
      %v2208 = vadd.f32 %v1506, %v2162
      %v2209 = vadd.f32 %v1548, %v2204
      %v2210 = vadd.f32 %v1508, %v2164
      %v2211 = vadd.f32 %v1550, %v2206
      %v2212 = vld [vmem:[%s219 + $0xc] sm:$0xff]
      %v2213 = vld [vmem:[%s219 + $0x14] sm:$0xf]
      %s2214 = scalar_lea.vmem %s1, 912
      %v2215 = vld [vmem:[%s2214] sm:$0xff]
      %v2216 = vld [vmem:[%s2214 + $0x8] sm:$0xff]
      %v2217 = vld [vmem:[%s2214 + $0x10] sm:$0xff]
      %v2218 = vld [vmem:[%s2214 + $0x18] sm:$0xff]
      %v2219 = vld [vmem:[%s2214 + $0x20] sm:$0xff]
      %v2220 = vld [vmem:[%s2214 + $0x28] sm:$0xff]
      %v2221 = vld [vmem:[%s2214 + $0x30] sm:$0xff]
      %v2222 = vld [vmem:[%s2214 + $0x38] sm:$0xff]
      %v2223 = vld [vmem:[%s2214 + $0x40] sm:$0xff]
      %v2224 = vld [vmem:[%s2214 + $0x48] sm:$0xff]
      %v2225 = vld [vmem:[%s2214 + $0x50] sm:$0xff]
      %v2226 = vld [vmem:[%s2214 + $0x58] sm:$0xff]
      %v2227 = vld [vmem:[%s2214 + $0x60] sm:$0xff]
      %v2228 = vld [vmem:[%s2214 + $0x68] sm:$0xff]
      %v2229 = vld [vmem:[%s2214 + $0x70] sm:$0xff]
      %v2230 = vld [vmem:[%s2214 + $0x78] sm:$0xff]
      %v2231 = vld [vmem:[%s2214 + $0x80] sm:$0xff]
      %v2232 = vld [vmem:[%s2214 + $0x88] sm:$0xff]
      %v2233 = vld [vmem:[%s2214 + $0x90] sm:$0xff]
      %v2234 = vld [vmem:[%s2214 + $0x98] sm:$0xff]
      %v2235 = vld [vmem:[%s2214 + $0xa0] sm:$0xff]
      %v2236 = vld [vmem:[%s2214 + $0xa8] sm:$0xff]
      %v2237 = vld [vmem:[%s2214 + $0xb0] sm:$0xff]
      %v2238 = vld [vmem:[%s2214 + $0xb8] sm:$0xff]
      %v2239 = vld [vmem:[%s2214 + $0xc0] sm:$0xff]
      %v2240 = vld [vmem:[%s2214 + $0xc8] sm:$0xff]
      %v2241 = vld [vmem:[%s2214 + $0xd0] sm:$0xff]
      %v2242 = vld [vmem:[%s2214 + $0xd8] sm:$0xff]
      %v2243 = vld [vmem:[%s2214 + $0xe0] sm:$0xff]
      %v2244 = vld [vmem:[%s2214 + $0xe8] sm:$0xff]
      %v2245 = vld [vmem:[%s2214 + $0xf0] sm:$0xff]
      %v2246 = vld [vmem:[%s2214 + $0xf8] sm:$0xff]
      %v2247 = vld [vmem:[%s2214 + $0x100] sm:$0xff]
      %v2248 = vld [vmem:[%s2214 + $0x108] sm:$0xff]
      %v2249 = vld [vmem:[%s2214 + $0x110] sm:$0xff]
      %v2250 = vld [vmem:[%s2214 + $0x118] sm:$0xff]
      %v2251 = vld [vmem:[%s2214 + $0x120] sm:$0xff]
      %v2252 = vld [vmem:[%s2214 + $0x128] sm:$0x33]
      %v2255 = vunpack.c.l.b16 %v2212
      %v2256 = vunpack.c.h.b16 %v2212
      %v2257 = vunpack.c.l.b16 %v2213
      %v2258 = vpack.c.b16 %v2255, %v1595
      %v2259 = vpack.c.b16 %v2256, %v1596
      %v2260 = vpack.c.b16 %v2257, %v1597
      %v2262 = vshrl.u32 %v2258, 16
      %v2264 = vrot.slane %v2262, 1
      %v2265 = vshll.u32 %v2258, 16
      %v2267 = vrot.slane %v2265, 2
      %v2268 = vor.u32 %v2264, %v2267
      %v2270 = vshrl.u32 %v2259, 16
      %v2272 = vrot.slane %v2270, 1
      %v2273 = vshll.u32 %v2259, 16
      %v2275 = vrot.slane %v2273, 2
      %v2276 = vor.u32 %v2272, %v2275
      %v2278 = vshrl.u32 %v2260, 16
      %v2280 = vrot.slane %v2278, 1
      %v2281 = vshll.u32 %v2260, 16
      %v2283 = vrot.slane %v2281, 2
      %v2284 = vor.u32 %v2280, %v2283
      %v2325 = vunpack.c.l.b16 %v2215
      %v2326 = vunpack.c.h.b16 %v2215
      %v2327 = vunpack.c.l.b16 %v2216
      %v2328 = vunpack.c.h.b16 %v2216
      %v2329 = vunpack.c.l.b16 %v2217
      %v2330 = vunpack.c.h.b16 %v2217
      %v2331 = vunpack.c.l.b16 %v2218
      %v2332 = vunpack.c.h.b16 %v2218
      %v2333 = vunpack.c.l.b16 %v2219
      %v2334 = vunpack.c.h.b16 %v2219
      %v2335 = vunpack.c.l.b16 %v2220
      %v2336 = vunpack.c.h.b16 %v2220
      %v2337 = vunpack.c.l.b16 %v2221
      %v2338 = vunpack.c.h.b16 %v2221
      %v2339 = vunpack.c.l.b16 %v2222
      %v2340 = vunpack.c.h.b16 %v2222
      %v2341 = vunpack.c.l.b16 %v2223
      %v2342 = vunpack.c.h.b16 %v2223
      %v2343 = vunpack.c.l.b16 %v2224
      %v2344 = vunpack.c.h.b16 %v2224
      %v2345 = vunpack.c.l.b16 %v2225
      %v2346 = vunpack.c.h.b16 %v2225
      %v2347 = vunpack.c.l.b16 %v2226
      %v2348 = vunpack.c.h.b16 %v2226
      %v2349 = vunpack.c.l.b16 %v2227
      %v2350 = vunpack.c.h.b16 %v2227
      %v2351 = vunpack.c.l.b16 %v2228
      %v2352 = vunpack.c.h.b16 %v2228
      %v2353 = vunpack.c.l.b16 %v2229
      %v2354 = vunpack.c.h.b16 %v2229
      %v2355 = vunpack.c.l.b16 %v2230
      %v2356 = vunpack.c.h.b16 %v2230
      %v2357 = vunpack.c.l.b16 %v2231
      %v2358 = vunpack.c.h.b16 %v2231
      %v2359 = vunpack.c.l.b16 %v2232
      %v2360 = vunpack.c.h.b16 %v2232
      %v2361 = vunpack.c.l.b16 %v2233
      %v2362 = vunpack.c.h.b16 %v2233
      %v2363 = vunpack.c.l.b16 %v2234
      %v2364 = vunpack.c.h.b16 %v2234
      %v2365 = vunpack.c.l.b16 %v2235
      %v2366 = vunpack.c.h.b16 %v2235
      %v2367 = vunpack.c.l.b16 %v2236
      %v2368 = vunpack.c.h.b16 %v2236
      %v2369 = vunpack.c.l.b16 %v2237
      %v2370 = vunpack.c.h.b16 %v2237
      %v2371 = vunpack.c.l.b16 %v2238
      %v2372 = vunpack.c.h.b16 %v2238
      %v2373 = vunpack.c.l.b16 %v2239
      %v2374 = vunpack.c.h.b16 %v2239
      %v2375 = vunpack.c.l.b16 %v2240
      %v2376 = vunpack.c.h.b16 %v2240
      %v2377 = vunpack.c.l.b16 %v2241
      %v2378 = vunpack.c.h.b16 %v2241
      %v2379 = vunpack.c.l.b16 %v2242
      %v2380 = vunpack.c.h.b16 %v2242
      %v2381 = vunpack.c.l.b16 %v2243
      %v2382 = vunpack.c.h.b16 %v2243
      %v2383 = vunpack.c.l.b16 %v2244
      %v2384 = vunpack.c.h.b16 %v2244
      %v2385 = vunpack.c.l.b16 %v2245
      %v2386 = vunpack.c.h.b16 %v2245
      %v2387 = vunpack.c.l.b16 %v2246
      %v2388 = vunpack.c.h.b16 %v2246
      %v2389 = vunpack.c.l.b16 %v2247
      %v2390 = vunpack.c.h.b16 %v2247
      %v2391 = vunpack.c.l.b16 %v2248
      %v2392 = vunpack.c.h.b16 %v2248
      %v2393 = vunpack.c.l.b16 %v2249
      %v2394 = vunpack.c.h.b16 %v2249
      %v2395 = vunpack.c.l.b16 %v2250
      %v2396 = vunpack.c.h.b16 %v2250
      %v2397 = vunpack.c.l.b16 %v2251
      %v2398 = vunpack.c.h.b16 %v2251
      %v2399 = vunpack.c.l.b16 %v2252
      %v2400 = vunpack.c.h.b16 %v2252
      %v2401 = vpack.c.b16 %v2327, %v2325
      %v2402 = vpack.c.b16 %v2328, %v2326
      %v2403 = vpack.c.b16 %v2331, %v2329
      %v2404 = vpack.c.b16 %v2332, %v2330
      %v2405 = vpack.c.b16 %v2335, %v2333
      %v2406 = vpack.c.b16 %v2336, %v2334
      %v2407 = vpack.c.b16 %v2339, %v2337
      %v2408 = vpack.c.b16 %v2340, %v2338
      %v2409 = vpack.c.b16 %v2343, %v2341
      %v2410 = vpack.c.b16 %v2344, %v2342
      %v2411 = vpack.c.b16 %v2347, %v2345
      %v2412 = vpack.c.b16 %v2348, %v2346
      %v2413 = vpack.c.b16 %v2351, %v2349
      %v2414 = vpack.c.b16 %v2352, %v2350
      %v2415 = vpack.c.b16 %v2355, %v2353
      %v2416 = vpack.c.b16 %v2356, %v2354
      %v2417 = vpack.c.b16 %v2359, %v2357
      %v2418 = vpack.c.b16 %v2360, %v2358
      %v2419 = vpack.c.b16 %v2363, %v2361
      %v2420 = vpack.c.b16 %v2364, %v2362
      %v2421 = vpack.c.b16 %v2367, %v2365
      %v2422 = vpack.c.b16 %v2368, %v2366
      %v2423 = vpack.c.b16 %v2371, %v2369
      %v2424 = vpack.c.b16 %v2372, %v2370
      %v2425 = vpack.c.b16 %v2375, %v2373
      %v2426 = vpack.c.b16 %v2376, %v2374
      %v2427 = vpack.c.b16 %v2379, %v2377
      %v2428 = vpack.c.b16 %v2380, %v2378
      %v2429 = vpack.c.b16 %v2383, %v2381
      %v2430 = vpack.c.b16 %v2384, %v2382
      %v2431 = vpack.c.b16 %v2387, %v2385
      %v2432 = vpack.c.b16 %v2388, %v2386
      %v2433 = vpack.c.b16 %v2391, %v2389
      %v2434 = vpack.c.b16 %v2392, %v2390
      %v2435 = vpack.c.b16 %v2395, %v2393
      %v2436 = vpack.c.b16 %v2396, %v2394
      %v2437 = vpack.c.b16 %v2399, %v2397
      %v2438 = vpack.c.b16 %v2400, %v2398
      %v2476 = vsel %vm571, %v2284, 0
      %v2479 = vsel %vm575, %v2437, 0
      %v2482 = vsel %vm575, %v2438, 0
      %2484 = vmatpush.bf16.msra.mxu0 %v2415
      %2485 = vmatpush.bf16.msra.mxu0 %v2413
      %2486 = vmatpush.bf16.msra.mxu0 %v2411
      %2487 = vmatpush.bf16.msra.mxu0 %v2409
      %2488 = vmatpush.bf16.msra.mxu0 %v2407
      %2489 = vmatpush.bf16.msra.mxu0 %v2405
      %2490 = vmatpush.bf16.msra.mxu0 %v2403
      %2491 = vmatpush.bf16.msra.mxu0 %v2401
      %2492 = vmatmul.bf16.gmra.mxu0 %v2268
      %v2493 = vpop.f32.mrf.mxu0
      %v2494 = vadd.f32 0.0, %v2493
      %v2495 = vpop.f32.mrf.mxu0
      %v2496 = vadd.f32 0.0, %v2495
      %2497 = vdwg.mxu0
      %2498 = vmatpush.bf16.msra.mxu0 %v2431
      %2499 = vmatpush.bf16.msra.mxu0 %v2429
      %2500 = vmatpush.bf16.msra.mxu0 %v2427
      %2501 = vmatpush.bf16.msra.mxu0 %v2425
      %2502 = vmatpush.bf16.msra.mxu0 %v2423
      %2503 = vmatpush.bf16.msra.mxu0 %v2421
      %2504 = vmatpush.bf16.msra.mxu0 %v2419
      %2505 = vmatpush.bf16.msra.mxu0 %v2417
      %2506 = vmatmul.bf16.gmra.mxu0 %v2276
      %v2507 = vpop.f32.mrf.mxu0
      %v2508 = vadd.f32 %v2494, %v2507
      %v2509 = vpop.f32.mrf.mxu0
      %v2510 = vadd.f32 %v2496, %v2509
      %2511 = vdwg.mxu0
      %2512 = vmatpush.bf16.msra.mxu0 0
      %2513 = vmatpush.bf16.msra.mxu0 0
      %2514 = vmatpush.bf16.msra.mxu0 0
      %2515 = vmatpush.bf16.msra.mxu0 0
      %2516 = vmatpush.bf16.msra.mxu0 0
      %2517 = vmatpush.bf16.msra.mxu0 %v2479
      %2518 = vmatpush.bf16.msra.mxu0 %v2435
      %2519 = vmatpush.bf16.msra.mxu0 %v2433
      %2520 = vmatmul.bf16.gmra.mxu0 %v2476
      %v2521 = vpop.f32.mrf.mxu0
      %v2522 = vadd.f32 %v2508, %v2521
      %v2523 = vpop.f32.mrf.mxu0
      %v2524 = vadd.f32 %v2510, %v2523
      %2525 = vdwg.mxu0
      %2526 = vmatpush.bf16.msra.mxu0 %v2416
      %2527 = vmatpush.bf16.msra.mxu0 %v2414
      %2528 = vmatpush.bf16.msra.mxu0 %v2412
      %2529 = vmatpush.bf16.msra.mxu0 %v2410
      %2530 = vmatpush.bf16.msra.mxu0 %v2408
      %2531 = vmatpush.bf16.msra.mxu0 %v2406
      %2532 = vmatpush.bf16.msra.mxu0 %v2404
      %2533 = vmatpush.bf16.msra.mxu0 %v2402
      %2534 = vmatmul.bf16.gmra.mxu0 %v2268
      %v2535 = vpop.f32.mrf.mxu0
      %v2536 = vadd.f32 0.0, %v2535
      %v2537 = vpop.f32.mrf.mxu0
      %v2538 = vadd.f32 0.0, %v2537
      %2539 = vdwg.mxu0
      %2540 = vmatpush.bf16.msra.mxu0 %v2432
      %2541 = vmatpush.bf16.msra.mxu0 %v2430
      %2542 = vmatpush.bf16.msra.mxu0 %v2428
      %2543 = vmatpush.bf16.msra.mxu0 %v2426
      %2544 = vmatpush.bf16.msra.mxu0 %v2424
      %2545 = vmatpush.bf16.msra.mxu0 %v2422
      %2546 = vmatpush.bf16.msra.mxu0 %v2420
      %2547 = vmatpush.bf16.msra.mxu0 %v2418
      %2548 = vmatmul.bf16.gmra.mxu0 %v2276
      %v2549 = vpop.f32.mrf.mxu0
      %v2550 = vadd.f32 %v2536, %v2549
      %v2551 = vpop.f32.mrf.mxu0
      %v2552 = vadd.f32 %v2538, %v2551
      %2553 = vdwg.mxu0
      %2554 = vmatpush.bf16.msra.mxu0 0
      %2555 = vmatpush.bf16.msra.mxu0 0
      %2556 = vmatpush.bf16.msra.mxu0 0
      %2557 = vmatpush.bf16.msra.mxu0 0
      %2558 = vmatpush.bf16.msra.mxu0 0
      %2559 = vmatpush.bf16.msra.mxu0 %v2482
      %2560 = vmatpush.bf16.msra.mxu0 %v2436
      %2561 = vmatpush.bf16.msra.mxu0 %v2434
      %2562 = vmatmul.bf16.gmra.mxu0 %v2476
      %v2563 = vpop.f32.mrf.mxu0
      %v2564 = vadd.f32 %v2550, %v2563
      %v2565 = vpop.f32.mrf.mxu0
      %v2566 = vadd.f32 %v2552, %v2565
      %2567 = vdwg.mxu0
      %v2568 = vadd.f32 %v1887, %v2522
      %v2569 = vadd.f32 %v1888, %v2564
      %v2570 = vadd.f32 %v1889, %v2524
      %v2571 = vadd.f32 %v1890, %v2566
      %s2572 = scalar_lea.vmem %s2, 912
      %v2573 = vld [vmem:[%s2572] sm:$0xff]
      %v2574 = vld [vmem:[%s2572 + $0x8] sm:$0xff]
      %v2575 = vld [vmem:[%s2572 + $0x10] sm:$0xff]
      %v2576 = vld [vmem:[%s2572 + $0x18] sm:$0xff]
      %v2577 = vld [vmem:[%s2572 + $0x20] sm:$0xff]
      %v2578 = vld [vmem:[%s2572 + $0x28] sm:$0xff]
      %v2579 = vld [vmem:[%s2572 + $0x30] sm:$0xff]
      %v2580 = vld [vmem:[%s2572 + $0x38] sm:$0xff]
      %v2581 = vld [vmem:[%s2572 + $0x40] sm:$0xff]
      %v2582 = vld [vmem:[%s2572 + $0x48] sm:$0xff]
      %v2583 = vld [vmem:[%s2572 + $0x50] sm:$0xff]
      %v2584 = vld [vmem:[%s2572 + $0x58] sm:$0xff]
      %v2585 = vld [vmem:[%s2572 + $0x60] sm:$0xff]
      %v2586 = vld [vmem:[%s2572 + $0x68] sm:$0xff]
      %v2587 = vld [vmem:[%s2572 + $0x70] sm:$0xff]
      %v2588 = vld [vmem:[%s2572 + $0x78] sm:$0xff]
      %v2589 = vld [vmem:[%s2572 + $0x80] sm:$0xff]
      %v2590 = vld [vmem:[%s2572 + $0x88] sm:$0xff]
      %v2591 = vld [vmem:[%s2572 + $0x90] sm:$0xff]
      %v2592 = vld [vmem:[%s2572 + $0x98] sm:$0xff]
      %v2593 = vld [vmem:[%s2572 + $0xa0] sm:$0xff]
      %v2594 = vld [vmem:[%s2572 + $0xa8] sm:$0xff]
      %v2595 = vld [vmem:[%s2572 + $0xb0] sm:$0xff]
      %v2596 = vld [vmem:[%s2572 + $0xb8] sm:$0xff]
      %v2597 = vld [vmem:[%s2572 + $0xc0] sm:$0xff]
      %v2598 = vld [vmem:[%s2572 + $0xc8] sm:$0xff]
      %v2599 = vld [vmem:[%s2572 + $0xd0] sm:$0xff]
      %v2600 = vld [vmem:[%s2572 + $0xd8] sm:$0xff]
      %v2601 = vld [vmem:[%s2572 + $0xe0] sm:$0xff]
      %v2602 = vld [vmem:[%s2572 + $0xe8] sm:$0xff]
      %v2603 = vld [vmem:[%s2572 + $0xf0] sm:$0xff]
      %v2604 = vld [vmem:[%s2572 + $0xf8] sm:$0xff]
      %v2605 = vld [vmem:[%s2572 + $0x100] sm:$0xff]
      %v2606 = vld [vmem:[%s2572 + $0x108] sm:$0xff]
      %v2607 = vld [vmem:[%s2572 + $0x110] sm:$0xff]
      %v2608 = vld [vmem:[%s2572 + $0x118] sm:$0xff]
      %v2609 = vld [vmem:[%s2572 + $0x120] sm:$0xff]
      %v2610 = vld [vmem:[%s2572 + $0x128] sm:$0x33]
      %v2649 = vunpack.c.l.b16 %v2573
      %v2650 = vunpack.c.h.b16 %v2573
      %v2651 = vunpack.c.l.b16 %v2574
      %v2652 = vunpack.c.h.b16 %v2574
      %v2653 = vunpack.c.l.b16 %v2575
      %v2654 = vunpack.c.h.b16 %v2575
      %v2655 = vunpack.c.l.b16 %v2576
      %v2656 = vunpack.c.h.b16 %v2576
      %v2657 = vunpack.c.l.b16 %v2577
      %v2658 = vunpack.c.h.b16 %v2577
      %v2659 = vunpack.c.l.b16 %v2578
      %v2660 = vunpack.c.h.b16 %v2578
      %v2661 = vunpack.c.l.b16 %v2579
      %v2662 = vunpack.c.h.b16 %v2579
      %v2663 = vunpack.c.l.b16 %v2580
      %v2664 = vunpack.c.h.b16 %v2580
      %v2665 = vunpack.c.l.b16 %v2581
      %v2666 = vunpack.c.h.b16 %v2581
      %v2667 = vunpack.c.l.b16 %v2582
      %v2668 = vunpack.c.h.b16 %v2582
      %v2669 = vunpack.c.l.b16 %v2583
      %v2670 = vunpack.c.h.b16 %v2583
      %v2671 = vunpack.c.l.b16 %v2584
      %v2672 = vunpack.c.h.b16 %v2584
      %v2673 = vunpack.c.l.b16 %v2585
      %v2674 = vunpack.c.h.b16 %v2585
      %v2675 = vunpack.c.l.b16 %v2586
      %v2676 = vunpack.c.h.b16 %v2586
      %v2677 = vunpack.c.l.b16 %v2587
      %v2678 = vunpack.c.h.b16 %v2587
      %v2679 = vunpack.c.l.b16 %v2588
      %v2680 = vunpack.c.h.b16 %v2588
      %v2681 = vunpack.c.l.b16 %v2589
      %v2682 = vunpack.c.h.b16 %v2589
      %v2683 = vunpack.c.l.b16 %v2590
      %v2684 = vunpack.c.h.b16 %v2590
      %v2685 = vunpack.c.l.b16 %v2591
      %v2686 = vunpack.c.h.b16 %v2591
      %v2687 = vunpack.c.l.b16 %v2592
      %v2688 = vunpack.c.h.b16 %v2592
      %v2689 = vunpack.c.l.b16 %v2593
      %v2690 = vunpack.c.h.b16 %v2593
      %v2691 = vunpack.c.l.b16 %v2594
      %v2692 = vunpack.c.h.b16 %v2594
      %v2693 = vunpack.c.l.b16 %v2595
      %v2694 = vunpack.c.h.b16 %v2595
      %v2695 = vunpack.c.l.b16 %v2596
      %v2696 = vunpack.c.h.b16 %v2596
      %v2697 = vunpack.c.l.b16 %v2597
      %v2698 = vunpack.c.h.b16 %v2597
      %v2699 = vunpack.c.l.b16 %v2598
      %v2700 = vunpack.c.h.b16 %v2598
      %v2701 = vunpack.c.l.b16 %v2599
      %v2702 = vunpack.c.h.b16 %v2599
      %v2703 = vunpack.c.l.b16 %v2600
      %v2704 = vunpack.c.h.b16 %v2600
      %v2705 = vunpack.c.l.b16 %v2601
      %v2706 = vunpack.c.h.b16 %v2601
      %v2707 = vunpack.c.l.b16 %v2602
      %v2708 = vunpack.c.h.b16 %v2602
      %v2709 = vunpack.c.l.b16 %v2603
      %v2710 = vunpack.c.h.b16 %v2603
      %v2711 = vunpack.c.l.b16 %v2604
      %v2712 = vunpack.c.h.b16 %v2604
      %v2713 = vunpack.c.l.b16 %v2605
      %v2714 = vunpack.c.h.b16 %v2605
      %v2715 = vunpack.c.l.b16 %v2606
      %v2716 = vunpack.c.h.b16 %v2606
      %v2717 = vunpack.c.l.b16 %v2607
      %v2718 = vunpack.c.h.b16 %v2607
      %v2719 = vunpack.c.l.b16 %v2608
      %v2720 = vunpack.c.h.b16 %v2608
      %v2721 = vunpack.c.l.b16 %v2609
      %v2722 = vunpack.c.h.b16 %v2609
      %v2723 = vunpack.c.l.b16 %v2610
      %v2724 = vunpack.c.h.b16 %v2610
      %v2725 = vpack.c.b16 %v2651, %v2649
      %v2726 = vpack.c.b16 %v2652, %v2650
      %v2727 = vpack.c.b16 %v2655, %v2653
      %v2728 = vpack.c.b16 %v2656, %v2654
      %v2729 = vpack.c.b16 %v2659, %v2657
      %v2730 = vpack.c.b16 %v2660, %v2658
      %v2731 = vpack.c.b16 %v2663, %v2661
      %v2732 = vpack.c.b16 %v2664, %v2662
      %v2733 = vpack.c.b16 %v2667, %v2665
      %v2734 = vpack.c.b16 %v2668, %v2666
      %v2735 = vpack.c.b16 %v2671, %v2669
      %v2736 = vpack.c.b16 %v2672, %v2670
      %v2737 = vpack.c.b16 %v2675, %v2673
      %v2738 = vpack.c.b16 %v2676, %v2674
      %v2739 = vpack.c.b16 %v2679, %v2677
      %v2740 = vpack.c.b16 %v2680, %v2678
      %v2741 = vpack.c.b16 %v2683, %v2681
      %v2742 = vpack.c.b16 %v2684, %v2682
      %v2743 = vpack.c.b16 %v2687, %v2685
      %v2744 = vpack.c.b16 %v2688, %v2686
      %v2745 = vpack.c.b16 %v2691, %v2689
      %v2746 = vpack.c.b16 %v2692, %v2690
      %v2747 = vpack.c.b16 %v2695, %v2693
      %v2748 = vpack.c.b16 %v2696, %v2694
      %v2749 = vpack.c.b16 %v2699, %v2697
      %v2750 = vpack.c.b16 %v2700, %v2698
      %v2751 = vpack.c.b16 %v2703, %v2701
      %v2752 = vpack.c.b16 %v2704, %v2702
      %v2753 = vpack.c.b16 %v2707, %v2705
      %v2754 = vpack.c.b16 %v2708, %v2706
      %v2755 = vpack.c.b16 %v2711, %v2709
      %v2756 = vpack.c.b16 %v2712, %v2710
      %v2757 = vpack.c.b16 %v2715, %v2713
      %v2758 = vpack.c.b16 %v2716, %v2714
      %v2759 = vpack.c.b16 %v2719, %v2717
      %v2760 = vpack.c.b16 %v2720, %v2718
      %v2761 = vpack.c.b16 %v2723, %v2721
      %v2762 = vpack.c.b16 %v2724, %v2722
      %v2800 = vsel %vm575, %v2761, 0
      %v2803 = vsel %vm575, %v2762, 0
      %2805 = vmatpush.bf16.msra.mxu0 %v2739
      %2806 = vmatpush.bf16.msra.mxu0 %v2737
      %2807 = vmatpush.bf16.msra.mxu0 %v2735
      %2808 = vmatpush.bf16.msra.mxu0 %v2733
      %2809 = vmatpush.bf16.msra.mxu0 %v2731
      %2810 = vmatpush.bf16.msra.mxu0 %v2729
      %2811 = vmatpush.bf16.msra.mxu0 %v2727
      %2812 = vmatpush.bf16.msra.mxu0 %v2725
      %2813 = vmatmul.bf16.gmra.mxu0 %v2268
      %v2814 = vpop.f32.mrf.mxu0
      %v2815 = vadd.f32 0.0, %v2814
      %v2816 = vpop.f32.mrf.mxu0
      %v2817 = vadd.f32 0.0, %v2816
      %2818 = vdwg.mxu0
      %2819 = vmatpush.bf16.msra.mxu0 %v2755
      %2820 = vmatpush.bf16.msra.mxu0 %v2753
      %2821 = vmatpush.bf16.msra.mxu0 %v2751
      %2822 = vmatpush.bf16.msra.mxu0 %v2749
      %2823 = vmatpush.bf16.msra.mxu0 %v2747
      %2824 = vmatpush.bf16.msra.mxu0 %v2745
      %2825 = vmatpush.bf16.msra.mxu0 %v2743
      %2826 = vmatpush.bf16.msra.mxu0 %v2741
      %2827 = vmatmul.bf16.gmra.mxu0 %v2276
      %v2828 = vpop.f32.mrf.mxu0
      %v2829 = vadd.f32 %v2815, %v2828
      %v2830 = vpop.f32.mrf.mxu0
      %v2831 = vadd.f32 %v2817, %v2830
      %2832 = vdwg.mxu0
      %2833 = vmatpush.bf16.msra.mxu0 0
      %2834 = vmatpush.bf16.msra.mxu0 0
      %2835 = vmatpush.bf16.msra.mxu0 0
      %2836 = vmatpush.bf16.msra.mxu0 0
      %2837 = vmatpush.bf16.msra.mxu0 0
      %2838 = vmatpush.bf16.msra.mxu0 %v2800
      %2839 = vmatpush.bf16.msra.mxu0 %v2759
      %2840 = vmatpush.bf16.msra.mxu0 %v2757
      %2841 = vmatmul.bf16.gmra.mxu0 %v2476
      %v2842 = vpop.f32.mrf.mxu0
      %v2843 = vadd.f32 %v2829, %v2842
      %v2844 = vpop.f32.mrf.mxu0
      %v2845 = vadd.f32 %v2831, %v2844
      %2846 = vdwg.mxu0
      %2847 = vmatpush.bf16.msra.mxu0 %v2740
      %2848 = vmatpush.bf16.msra.mxu0 %v2738
      %2849 = vmatpush.bf16.msra.mxu0 %v2736
      %2850 = vmatpush.bf16.msra.mxu0 %v2734
      %2851 = vmatpush.bf16.msra.mxu0 %v2732
      %2852 = vmatpush.bf16.msra.mxu0 %v2730
      %2853 = vmatpush.bf16.msra.mxu0 %v2728
      %2854 = vmatpush.bf16.msra.mxu0 %v2726
      %2855 = vmatmul.bf16.gmra.mxu0 %v2268
      %v2856 = vpop.f32.mrf.mxu0
      %v2857 = vadd.f32 0.0, %v2856
      %v2858 = vpop.f32.mrf.mxu0
      %v2859 = vadd.f32 0.0, %v2858
      %2860 = vdwg.mxu0
      %2861 = vmatpush.bf16.msra.mxu0 %v2756
      %2862 = vmatpush.bf16.msra.mxu0 %v2754
      %2863 = vmatpush.bf16.msra.mxu0 %v2752
      %2864 = vmatpush.bf16.msra.mxu0 %v2750
      %2865 = vmatpush.bf16.msra.mxu0 %v2748
      %2866 = vmatpush.bf16.msra.mxu0 %v2746
      %2867 = vmatpush.bf16.msra.mxu0 %v2744
      %2868 = vmatpush.bf16.msra.mxu0 %v2742
      %2869 = vmatmul.bf16.gmra.mxu0 %v2276
      %v2870 = vpop.f32.mrf.mxu0
      %v2871 = vadd.f32 %v2857, %v2870
      %v2872 = vpop.f32.mrf.mxu0
      %v2873 = vadd.f32 %v2859, %v2872
      %2874 = vdwg.mxu0
      %2875 = vmatpush.bf16.msra.mxu0 0
      %2876 = vmatpush.bf16.msra.mxu0 0
      %2877 = vmatpush.bf16.msra.mxu0 0
      %2878 = vmatpush.bf16.msra.mxu0 0
      %2879 = vmatpush.bf16.msra.mxu0 0
      %2880 = vmatpush.bf16.msra.mxu0 %v2803
      %2881 = vmatpush.bf16.msra.mxu0 %v2760
      %2882 = vmatpush.bf16.msra.mxu0 %v2758
      %2883 = vmatmul.bf16.gmra.mxu0 %v2476
      %v2884 = vpop.f32.mrf.mxu0
      %v2885 = vadd.f32 %v2871, %v2884
      %v2886 = vpop.f32.mrf.mxu0
      %v2887 = vadd.f32 %v2873, %v2886
      %2888 = vdwg.mxu0
      %v2889 = vadd.f32 %v2208, %v2843
      %v2890 = vadd.f32 %v2209, %v2885
      %v2891 = vadd.f32 %v2210, %v2845
      %v2892 = vadd.f32 %v2211, %v2887
      %v2893 = vld [vmem:[%s3] sm:$0x3]
      %v2894 = vld [vmem:[%s4] sm:$0x3]
      %v2896 = vperm.slane %v2893, 0
      %v2897 = vperm.slane %v2893, 1
      %v2900 = vmul.f32 %v2568, %v2896
      %v2901 = vmul.f32 %v2569, %v2897
      %v2902 = vmul.f32 %v2570, %v2896
      %v2903 = vmul.f32 %v2571, %v2897
      %v2905 = vperm.slane %v2894, 0
      %v2906 = vperm.slane %v2894, 1
      %v2909 = vadd.f32 %v2900, %v2905
      %v2910 = vadd.f32 %v2901, %v2906
      %v2911 = vadd.f32 %v2902, %v2905
      %v2912 = vadd.f32 %v2903, %v2906
      %v2913 = vmul.f32 %v2889, %v2896
      %v2914 = vmul.f32 %v2890, %v2897
      %v2915 = vmul.f32 %v2891, %v2896
      %v2916 = vmul.f32 %v2892, %v2897
      %v2917 = vadd.f32 %v2913, %v2905
      %v2918 = vadd.f32 %v2914, %v2906
      %v2919 = vadd.f32 %v2915, %v2905
      %v2920 = vadd.f32 %v2916, %v2906
      %v2921 = vmax.f32 %v2909, %v2917
      %v2922 = vmax.f32 %v2910, %v2918
      %v2923 = vmax.f32 %v2911, %v2919
      %v2924 = vmax.f32 %v2912, %v2920
      %2925 = vst [vmem:[#allocation2] sm:$0xff] %v2921
      %vm2926 = vcmask 916480
      %2927 = vst.msk [vmem:[#allocation2 + $0x8] sm:$0xff] %vm2926, %v2922
      %2928 = vst [vmem:[#allocation2 + $0x10] sm:$0xf] %v2923
      %vm2929 = vcmask 912384
      %2930 = vst.msk [vmem:[#allocation2 + $0x18] sm:$0xf] %vm2929, %v2924
      %v2931 = vld [vmem:[#allocation2] sm:$0x3]
      %v2932 = vld [vmem:[#allocation2 + $0x8] sm:$0x3]
      %vm2933 = vcmask 1041408
      %v2934 = vsel %vm2933, %v2931, -inf
      %v2935 = vrot.slane %v2934, 4
      %v2936 = vmax.f32 %v2934, %v2935
      %v2937 = vrot.slane %v2936, 2
      %v2938 = vmax.f32 %v2936, %v2937
      %v2939 = vrot.slane %v2938, 1
      %v2940 = vmax.f32 %v2938, %v2939
      %vm2941 = vcmask 910336
      %v2942 = vsel %vm2941, %v2932, -inf
      %v2943 = vrot.slane %v2942, 4
      %v2944 = vmax.f32 %v2942, %v2943
      %v2945 = vrot.slane %v2944, 2
      %v2946 = vmax.f32 %v2944, %v2945
      %v2947 = vrot.slane %v2946, 1
      %v2948 = vmax.f32 %v2946, %v2947
      %v2949 = vmax.f32 %v2940, 0.0
      %v2950 = vmax.f32 %v2948, 0.0
      %v2951 = vpack.c.bf16 %v2950, %v2949
      %vm2952 = vcmask 1040384
      %vm2953 = vsmask.f32 256
      %vm2954 = vmand %vm2952, %vm2953
      %vm2955 = vcmask 913412
      %vm2956 = vsmask.f32 4352
      %vm2957 = vmand %vm2955, %vm2956
      %vm2958 = vmor %vm2957, %vm2954
      %v2959 = vld [vmem:[%s224] sm:$0x11]
      %v2960 = vsel %vm2958, %v2951, %v2959
      %2961 = vst [vmem:[%s224] sm:$0x11] %v2960
      %v2962 = vld [vmem:[#allocation2] sm:$0xc]
      %v2963 = vld [vmem:[#allocation2 + $0x8] sm:$0xc]
      %vm2964 = vcmask 1043458
      %v2965 = vsel %vm2964, %v2962, -inf
      %v2966 = vrot.slane %v2965, 4
      %v2967 = vmax.f32 %v2965, %v2966
      %v2968 = vrot.slane %v2967, 2
      %v2969 = vmax.f32 %v2967, %v2968
      %v2970 = vrot.slane %v2969, 1
      %v2971 = vmax.f32 %v2969, %v2970
      %vm2972 = vcmask 912386
      %v2973 = vsel %vm2972, %v2963, -inf
      %v2974 = vrot.slane %v2973, 4
      %v2975 = vmax.f32 %v2973, %v2974
      %v2976 = vrot.slane %v2975, 2
      %v2977 = vmax.f32 %v2975, %v2976
      %v2978 = vrot.slane %v2977, 1
      %v2979 = vmax.f32 %v2977, %v2978
      %v2980 = vmax.f32 %v2971, 0.0
      %v2981 = vmax.f32 %v2979, 0.0
      %v2982 = vpack.c.bf16 %v2981, %v2980
      %vm2983 = vsmask.f32 7938
      %vm2984 = vmand %vm2952, %vm2983
      %vm2985 = vsmask.f32 7954
      %vm2986 = vmand %vm2955, %vm2985
      %vm2987 = vmor %vm2986, %vm2984
      %v2988 = vld [vmem:[%s224] sm:$0x11]
      %v2989 = vsel %vm2987, %v2982, %v2988
      %2990 = vst [vmem:[%s224] sm:$0x11] %v2989
      %v2991 = vld [vmem:[#allocation2] sm:$0x30]
      %v2992 = vld [vmem:[#allocation2 + $0x8] sm:$0x30]
      %vm2993 = vcmask 1045508
      %v2994 = vsel %vm2993, %v2991, -inf
      %v2995 = vrot.slane %v2994, 4
      %v2996 = vmax.f32 %v2994, %v2995
      %v2997 = vrot.slane %v2996, 2
      %v2998 = vmax.f32 %v2996, %v2997
      %v2999 = vrot.slane %v2998, 1
      %v3000 = vmax.f32 %v2998, %v2999
      %vm3001 = vcmask 914436
      %v3002 = vsel %vm3001, %v2992, -inf
      %v3003 = vrot.slane %v3002, 4
      %v3004 = vmax.f32 %v3002, %v3003
      %v3005 = vrot.slane %v3004, 2
      %v3006 = vmax.f32 %v3004, %v3005
      %v3007 = vrot.slane %v3006, 1
      %v3008 = vmax.f32 %v3006, %v3007
      %v3009 = vmax.f32 %v3000, 0.0
      %v3010 = vmax.f32 %v3008, 0.0
      %v3011 = vpack.c.bf16 %v3010, %v3009
      %vm3012 = vcmask 1041409
      %vm3013 = vsmask.f32 1280
      %vm3014 = vmand %vm3012, %vm3013
      %vm3015 = vcmask 914437
      %vm3016 = vsmask.f32 5376
      %vm3017 = vmand %vm3015, %vm3016
      %vm3018 = vmor %vm3017, %vm3014
      %v3019 = vld [vmem:[%s224] sm:$0x22]
      %v3020 = vsel %vm3018, %v3011, %v3019
      %3021 = vst [vmem:[%s224] sm:$0x22] %v3020
      %v3022 = vld [vmem:[#allocation2] sm:$0xc0]
      %v3023 = vld [vmem:[#allocation2 + $0x8] sm:$0xc0]
      %vm3024 = vcmask 1047558
      %v3025 = vsel %vm3024, %v3022, -inf
      %v3026 = vrot.slane %v3025, 4
      %v3027 = vmax.f32 %v3025, %v3026
      %v3028 = vrot.slane %v3027, 2
      %v3029 = vmax.f32 %v3027, %v3028
      %v3030 = vrot.slane %v3029, 1
      %v3031 = vmax.f32 %v3029, %v3030
      %vm3032 = vcmask 916486
      %v3033 = vsel %vm3032, %v3023, -inf
      %v3034 = vrot.slane %v3033, 4
      %v3035 = vmax.f32 %v3033, %v3034
      %v3036 = vrot.slane %v3035, 2
      %v3037 = vmax.f32 %v3035, %v3036
      %v3038 = vrot.slane %v3037, 1
      %v3039 = vmax.f32 %v3037, %v3038
      %v3040 = vmax.f32 %v3031, 0.0
      %v3041 = vmax.f32 %v3039, 0.0
      %v3042 = vpack.c.bf16 %v3041, %v3040
      %vm3043 = vsmask.f32 7942
      %vm3044 = vmand %vm3012, %vm3043
      %vm3045 = vsmask.f32 7958
      %vm3046 = vmand %vm3015, %vm3045
      %vm3047 = vmor %vm3046, %vm3044
      %v3048 = vld [vmem:[%s224] sm:$0x22]
      %v3049 = vsel %vm3047, %v3042, %v3048
      %3050 = vst [vmem:[%s224] sm:$0x22] %v3049
      %v3051 = vld [vmem:[#allocation2 + $0x10] sm:$0x3]
      %v3052 = vld [vmem:[#allocation2 + $0x18] sm:$0x3]
      %v3053 = vsel %vm2933, %v3051, -inf
      %v3054 = vrot.slane %v3053, 4
      %v3055 = vmax.f32 %v3053, %v3054
      %v3056 = vrot.slane %v3055, 2
      %v3057 = vmax.f32 %v3055, %v3056
      %v3058 = vrot.slane %v3057, 1
      %v3059 = vmax.f32 %v3057, %v3058
      %v3060 = vsel %vm2941, %v3052, -inf
      %v3061 = vrot.slane %v3060, 4
      %v3062 = vmax.f32 %v3060, %v3061
      %v3063 = vrot.slane %v3062, 2
      %v3064 = vmax.f32 %v3062, %v3063
      %v3065 = vrot.slane %v3064, 1
      %v3066 = vmax.f32 %v3064, %v3065
      %v3067 = vmax.f32 %v3059, 0.0
      %v3068 = vmax.f32 %v3066, 0.0
      %v3069 = vpack.c.bf16 %v3068, %v3067
      %vm3070 = vcmask 1042434
      %vm3071 = vsmask.f32 2304
      %vm3072 = vmand %vm3070, %vm3071
      %vm3073 = vcmask 915462
      %vm3074 = vsmask.f32 6400
      %vm3075 = vmand %vm3073, %vm3074
      %vm3076 = vmor %vm3075, %vm3072
      %v3077 = vld [vmem:[%s224] sm:$0x44]
      %v3078 = vsel %vm3076, %v3069, %v3077
      %3079 = vst [vmem:[%s224] sm:$0x44] %v3078
      %v3080 = vld [vmem:[#allocation2 + $0x10] sm:$0xc]
      %v3081 = vld [vmem:[#allocation2 + $0x18] sm:$0xc]
      %v3082 = vsel %vm2964, %v3080, -inf
      %v3083 = vrot.slane %v3082, 4
      %v3084 = vmax.f32 %v3082, %v3083
      %v3085 = vrot.slane %v3084, 2
      %v3086 = vmax.f32 %v3084, %v3085
      %v3087 = vrot.slane %v3086, 1
      %v3088 = vmax.f32 %v3086, %v3087
      %v3089 = vsel %vm2972, %v3081, -inf
      %v3090 = vrot.slane %v3089, 4
      %v3091 = vmax.f32 %v3089, %v3090
      %v3092 = vrot.slane %v3091, 2
      %v3093 = vmax.f32 %v3091, %v3092
      %v3094 = vrot.slane %v3093, 1
      %v3095 = vmax.f32 %v3093, %v3094
      %v3096 = vmax.f32 %v3088, 0.0
      %v3097 = vmax.f32 %v3095, 0.0
      %v3098 = vpack.c.bf16 %v3097, %v3096
      %vm3099 = vsmask.f32 7946
      %vm3100 = vmand %vm3070, %vm3099
      %vm3101 = vsmask.f32 7962
      %vm3102 = vmand %vm3073, %vm3101
      %vm3103 = vmor %vm3102, %vm3100
      %v3104 = vld [vmem:[%s224] sm:$0x44]
      %v3105 = vsel %vm3103, %v3098, %v3104
      %3106 = vst [vmem:[%s224] sm:$0x44] %v3105
      %p3107 = scmp.lt.s32.totalorder %s16, 1
      %s3108 = scalar_select %p3107, %s16, 1
      %s3109 = smul.addr %s3108, 2
      %s3110 = smul.addr %s3109, 4
      %s3111 = scalar_lea.vmem %s5, %s3110
      // Predicated region
      $region41: #{forward.4} parent=39 // pred_check
        %p3112 = pneg %p144
      $region42: #{forward.4} parent=39 // pred_check_branch
        %3114 = sbr.rel (%p3112) target = $region44
      $region43: #{forward.4} parent=39 // pred_region
        _
      $region44: #{forward.4} parent=39 // pred_fallthru
        _
    $region40: #{forward.4} parent=5 // pred_fallthru
      _
    %p3115 = scmp.le.s32.totalorder 2, %s11
    // Predicated region
    $region45: #{forward.4} parent=5 // pred_check
      %p3116 = pneg %p3115
    $region46: #{forward.4} parent=5 // pred_check_branch
      %3118 = sbr.rel (%p3116) target = $region48
    $region47: #{forward.4} parent=5 // pred_region
      %s3119 = ssub.s32 %s11, 2
      // Predicated region
      $region49: #{forward.4} parent=47 // pred_check
        %p3120 = pneg %p150
      $region50: #{forward.4} parent=47 // pred_check_branch
        %3122 = sbr.rel (%p3120) target = $region52
      $region51: #{forward.4} parent=47 // pred_region
        %p3123 = scmp.lt.s32.totalorder %s17, 1
        %s3124 = scalar_select %p3123, %s17, 1
        %s3125 = smul.addr %s3124, 2
        %s3126 = smul.addr %s3125, 4
        %s3127 = scalar_lea.vmem %s5, %s3126
      $region52: #{forward.4} parent=47 // pred_fallthru
        _
    $region48: #{forward.4} parent=5 // pred_fallthru
      _
  $region6: #{forward.4} parent=0 // loop_footer
    %s15 = sadd.s32 1, %s11
  $region7: #{forward.4} parent=0 // loop_footer_branch
    %10 = sbr.rel target = $region3
  $region8: #{forward.4} parent=0 // loop_exit
    _

</llo_original>
